<compile_context>
chip_gen: v7x
topology: tpu7x:2x2x1
jax: 0.10.0
libtpu: 0.0.40
codegen_flags: <defaults>
</compile_context>

<pallas_src>
import math
from functools import partial

import jax
import jax.numpy as jnp
from jax import lax
from jax.experimental import pallas as pl
from jax.experimental.pallas import tpu as pltpu

LN_EPS = 1e-5  # torch.nn.LayerNorm default


# ---------------------------------------------------------------------------
# shared math helpers
# ---------------------------------------------------------------------------
def _layernorm_fused(x, g, b):
    # Two independent cross-lane reductions (E[x], E[x^2]) -> they can overlap
    # on the XLU; var = E[x^2] - mean^2.
    mean = jnp.mean(x, axis=-1, keepdims=True)
    mean_sq = jnp.mean(x * x, axis=-1, keepdims=True)
    var = jnp.maximum(mean_sq - mean * mean, 0.0)
    return (x - mean) * lax.rsqrt(var + LN_EPS) * g + b


def _layernorm_ref(x, g, b):
    mu = jnp.mean(x, axis=-1, keepdims=True)
    var = jnp.mean((x - mu) ** 2, axis=-1, keepdims=True)
    return (x - mu) * lax.rsqrt(var + LN_EPS) * g + b


def _gelu_exact(x):
    # torch.nn.GELU() default (erf-based, exact). Kept exact for torch parity;
    # a tanh-approx variant (EUP tanh slot) is a drop-in if ~1e-3 deviation is
    # acceptable.
    return 0.5 * x * (1.0 + lax.erf(x * (1.0 / math.sqrt(2.0))))


# ---------------------------------------------------------------------------
# fused Pallas kernel: embed_ln -> n_blocks Blocks -> action_predictor
# (one grid step == one batch element; all weights VMEM-resident)
# ---------------------------------------------------------------------------
def dt_forward_kernel(x_ref, eg_ref, eb_ref,
                      wqkv_ref, bqkv_ref, wo_ref, bo_ref,
                      ln1g_ref, ln1b_ref, w1_ref, b1_ref, w2_ref, b2_ref,
                      ln2g_ref, ln2b_ref, pw_ref, pb_ref,
                      out_ref, *, n_heads):
    S, H = x_ref.shape
    D = H // n_heads
    n_blocks = wqkv_ref.shape[0]
    T = S // 3
    scale = 1.0 / math.sqrt(D)

    # embedding LayerNorm on this batch element's (S, H) slab
    x = _layernorm_fused(x_ref[...], eg_ref[...], eb_ref[...])

    # causal-mask additive bias, built ONCE directly at its broadcast shape
    # (n_heads, S, S) -> no broadcast_in_dim re-emitted inside the layer loop.
    row = lax.broadcasted_iota(jnp.int32, (n_heads, S, S), 1)
    col = lax.broadcasted_iota(jnp.int32, (n_heads, S, S), 2)
    causal_bias = jnp.where(col <= row, 0.0, -1e30).astype(jnp.float32)

    # TODO(synk): static unroll is fine while n_blocks <= 4; larger configs
    # should move layers onto an "arbitrary" grid axis with Buffered weight
    # specs (layer streaming) — required on v7x (64 MiB VMEM) at scale.
    for l in range(n_blocks):
        # ---- MaskedCausalAttention --------------------------------------
        # one deep fused QKV matmul: (S, H) @ (H, 3H), f32 accumulation
        qkv = jnp.dot(x.astype(jnp.bfloat16), wqkv_ref[l],
                      preferred_element_type=jnp.float32) + bqkv_ref[l]

        # head-batched (n_heads, S, D) operands: contiguous lane slices
        # stacked along a new leading (non-tiled) axis, then ONE batched
        # dot_general each for scores and context (no per-head matmul loop).
        q = jnp.stack([qkv[:, h * D:(h + 1) * D] for h in range(n_heads)])
        k = jnp.stack([qkv[:, H + h * D:H + (h + 1) * D]
                       for h in range(n_heads)])
        v = jnp.stack([qkv[:, 2 * H + h * D:2 * H + (h + 1) * D]
                       for h in range(n_heads)])

        s = jnp.einsum('nqd,nkd->nqk', q.astype(jnp.bfloat16),
                       k.astype(jnp.bfloat16),
                       preferred_element_type=jnp.float32) * scale
        s = s + causal_bias
        m = jnp.max(s, axis=-1, keepdims=True)
        p = jnp.exp(s - m)
        p = p * pl.reciprocal(jnp.sum(p, axis=-1, keepdims=True), approx=True)
        ctx = jnp.einsum('nqk,nkd->nqd', p.astype(jnp.bfloat16),
                         v.astype(jnp.bfloat16),
                         preferred_element_type=jnp.float32)      # (nh, S, D)

        # single lane-contiguous concat + ONE (S,H)@(H,H) output projection
        ctx_cat = jnp.concatenate([ctx[h] for h in range(n_heads)], axis=-1)
        attn = jnp.dot(ctx_cat.astype(jnp.bfloat16), wo_ref[l],
                       preferred_element_type=jnp.float32) + bo_ref[l]

        x = _layernorm_fused(x + attn, ln1g_ref[l], ln1b_ref[l])

        # ---- MLP ---------------------------------------------------------
        hmid = jnp.dot(x.astype(jnp.bfloat16), w1_ref[l],
                       preferred_element_type=jnp.float32) + b1_ref[l]
        hmid = _gelu_exact(hmid)
        mlp = jnp.dot(hmid.astype(jnp.bfloat16), w2_ref[l],
                      preferred_element_type=jnp.float32) + b2_ref[l]
        x = _layernorm_fused(x + mlp, ln2g_ref[l], ln2b_ref[l])

    # ---- action predictor on STATE tokens only (rows 3t+1) ---------------
    # Row selection via a tiny 0/1 matmul on the (otherwise idle) MXU instead
    # of a strided sublane gather; predictor FLOPs and writeback drop 3x.
    trow = lax.broadcasted_iota(jnp.int32, (T, S), 0)
    tcol = lax.broadcasted_iota(jnp.int32, (T, S), 1)
    sel = (tcol == 3 * trow + 1).astype(jnp.bfloat16)               # (T, S)
    xs = jnp.dot(sel, x.astype(jnp.bfloat16),
                 preferred_element_type=jnp.float32)                # (T, H)
    logits = jnp.dot(xs.astype(jnp.bfloat16), pw_ref[...],
                     preferred_element_type=jnp.float32) + pb_ref[...]
    out_ref[...] = logits                                           # (T, Apad)


# ---------------------------------------------------------------------------
# one-time weight packing (OUTSIDE jit): stack / concat / bf16 cast / lane-pad
# ---------------------------------------------------------------------------
def pack_params(params):
    blocks = params['blocks']
    stack = lambda key: jnp.stack([blk[key] for blk in blocks])
    packed = {
        'eg': params['embed_ln_g'], 'eb': params['embed_ln_b'],
        'wqkv': jnp.stack([jnp.concatenate([b['wq'], b['wk'], b['wv']], axis=1)
                           for b in blocks]).astype(jnp.bfloat16),
        'bqkv': jnp.stack([jnp.concatenate([b['bq'], b['bk'], b['bv']], axis=1)
                           for b in blocks]),
        'wo': stack('wo').astype(jnp.bfloat16), 'bo': stack('bo'),
        'ln1g': stack('ln1g'), 'ln1b': stack('ln1b'),
        'w1': stack('w1').astype(jnp.bfloat16), 'b1': stack('b1'),
        'w2': stack('w2').astype(jnp.bfloat16), 'b2': stack('b2'),
        'ln2g': stack('ln2g'), 'ln2b': stack('ln2b'),
    }
    H, A = params['pred_w'].shape
    Apad = ((A + 127) // 128) * 128                 # lane-dense output slab
    packed['pw'] = (jnp.zeros((H, Apad), jnp.float32)
                    .at[:, :A].set(params['pred_w']).astype(jnp.bfloat16))
    packed['pb'] = (jnp.zeros((1, Apad), jnp.float32)
                    .at[:, :A].set(params['pred_b']))
    return packed


def transformer_predict_call(hidden, packed, cfg):
    """hidden: (B, S, H) f32 pre-embed_ln tokens -> (B, T, Apad) state logits."""
    B, S, H = hidden.shape
    T = S // 3
    Apad = packed['pw'].shape[1]

    names = ('eg', 'eb', 'wqkv', 'bqkv', 'wo', 'bo', 'ln1g', 'ln1b',
             'w1', 'b1', 'w2', 'b2', 'ln2g', 'ln2b', 'pw', 'pb')
    weights = [packed[n] for n in names]

    # All weights stay VMEM-resident across the whole call. Guard against
    # configs where that no longer fits comfortably (v7x has 64 MiB VMEM).
    weight_bytes = sum(int(w.size) * w.dtype.itemsize for w in weights)
    assert weight_bytes < 16 * 1024 * 1024, (
        "TODO(synk): switch to a layer-streaming grid axis for this size")

    def full_spec(a):
        ndim = a.ndim
        return pl.BlockSpec(a.shape, lambda b, _nd=ndim: (0,) * _nd)

    return pl.pallas_call(
        partial(dt_forward_kernel, n_heads=cfg['n_heads']),
        grid=(B,),                       # "parallel" -> both TCs on v7x
        in_specs=[pl.BlockSpec((None, S, H), lambda b: (b, 0, 0))]
                 + [full_spec(w) for w in weights],
        out_specs=pl.BlockSpec((None, T, Apad), lambda b: (b, 0, 0)),
        out_shape=jax.ShapeDtypeStruct((B, T, Apad), jnp.float32),
        compiler_params=pltpu.CompilerParams(
            dimension_semantics=("parallel",)),
    )(hidden, *weights)


# ---------------------------------------------------------------------------
# plain-JAX front-end (gathers + tiny 2x2 conv image encoder + interleave)
# ---------------------------------------------------------------------------
def _embed_tokens(params, returns, observation, actions, timestep, cfg):
    states = observation['image']            # (B, T, 7, 7, 2) int
    target = observation['target']           # (B, T) int
    B, T = states.shape[:2]
    H, tes, ies = cfg['hidden_dim'], cfg['token_embed_size'], cfg['image_embed_size']

    time_emb = params['embed_timestep'][timestep]                         # (B,T,H)
    returns_emb = returns @ params['embed_return_w'] + params['embed_return_b'] + time_emb

    # conv image encoder (plain XLA)
    obj_emb = params['object_embed'][states[..., 0]]                      # (B,T,7,7,tes)
    col_emb = params['color_embed'][states[..., 1]]                       # (B,T,7,7,tes)
    img = jnp.concatenate([obj_emb, col_emb], axis=-1)                    # (B,T,7,7,2*tes)
    img = img.reshape(B * T, *img.shape[2:]).transpose(0, 3, 1, 2)        # (N,2tes,7,7)
    dn = ('NCHW', 'OIHW', 'NCHW')
    y = lax.conv_general_dilated(img, params['conv1_w'], (1, 1), 'VALID',
                                 dimension_numbers=dn)
    y = jax.nn.relu(y + params['conv1_b'][None, :, None, None])           # (N,C,6,6)
    N, C = y.shape[:2]
    y = y.reshape(N, C, 3, 2, 3, 2).mean(axis=(3, 5))                     # AvgPool2d(2) -> 3x3
    y = lax.conv_general_dilated(y, params['conv2_w'], (1, 1), 'VALID',
                                 dimension_numbers=dn)
    y = jax.nn.relu(y + params['conv2_b'][None, :, None, None])           # (N,C,2,2)
    y = lax.conv_general_dilated(y, params['conv3_w'], (1, 1), 'VALID',
                                 dimension_numbers=dn)
    y = jax.nn.relu(y + params['conv3_b'][None, :, None, None])           # (N,ies,1,1)
    y = y.reshape(N, ies)
    y = jax.nn.relu(y @ params['img_fc_w'] + params['img_fc_b'])          # (N, H-tes)
    states_core = y.reshape(B, T, H - tes)

    target_emb = params['color_embed'][target]                            # (B,T,tes)
    states_emb = jnp.concatenate([states_core, target_emb], axis=-1) + time_emb

    if cfg['discrete_action']:
        act_emb = params['action_embed'][actions[..., 0]] + time_emb
    else:
        # TODO(synk): continuous embed_action Linear branch left untested here.
        act_emb = actions @ params['embed_action_w'] + params['embed_action_b'] + time_emb

    # interleave (r_t, s_t, a_t) along the sequence axis -> (B, 3T, H)
    hidden = jnp.stack([returns_emb, states_emb, act_emb], axis=1)        # (B,3,T,H)
    hidden = hidden.transpose(0, 2, 1, 3).reshape(B, 3 * T, H)
    return hidden


def forward(params, packed, returns, observation, actions, timestep, cfg):
    hidden = _embed_tokens(params, returns, observation, actions, timestep, cfg)
    logits = transformer_predict_call(hidden, packed, cfg)               # (B, T, Apad)
    return logits[:, :, :cfg['num_actions']]


# ---------------------------------------------------------------------------
# pure-JAX fp32 reference (correctness check only)
# ---------------------------------------------------------------------------
def reference_forward(params, returns, observation, actions, timestep, cfg):
    hidden = _embed_tokens(params, returns, observation, actions, timestep, cfg)
    B, S, H = hidden.shape
    Nh = cfg['n_heads']
    D = H // Nh
    T = S // 3
    x = _layernorm_ref(hidden, params['embed_ln_g'], params['embed_ln_b'])
    causal = jnp.tril(jnp.ones((S, S), dtype=bool))
    for blk in params['blocks']:
        q = (x @ blk['wq'] + blk['bq']).reshape(B, S, Nh, D).transpose(0, 2, 1, 3)
        k = (x @ blk['wk'] + blk['bk']).reshape(B, S, Nh, D).transpose(0, 2, 1, 3)
        v = (x @ blk['wv'] + blk['bv']).reshape(B, S, Nh, D).transpose(0, 2, 1, 3)
        w = jnp.einsum('bnsd,bntd->bnst', q, k) / math.sqrt(D)
        w = jnp.where(causal[None, None], w, -jnp.inf)
        p = jax.nn.softmax(w, axis=-1)
        attn = jnp.einsum('bnst,bntd->bnsd', p, v).transpose(0, 2, 1, 3).reshape(B, S, H)
        attn = attn @ blk['wo'] + blk['bo']
        x = _layernorm_ref(x + attn, blk['ln1g'], blk['ln1b'])
        h = _gelu_exact(x @ blk['w1'] + blk['b1'])
        x = _layernorm_ref(x + h @ blk['w2'] + blk['b2'], blk['ln2g'], blk['ln2b'])
    core = x.reshape(B, T, 3, H)
    return core[:, :, 1] @ params['pred_w'] + params['pred_b']


# ---------------------------------------------------------------------------
# deterministic synthetic parameter init (mirrors module __init__ shapes)
# ---------------------------------------------------------------------------
def init_params(key, cfg):
    H, tes, ies = cfg['hidden_dim'], cfg['token_embed_size'], cfg['image_embed_size']
    A = cfg['num_actions']
    ks = iter(jax.random.split(key, 128))

    def nrm(shape, std=0.02):
        return (std * jax.random.normal(next(ks), shape)).astype(jnp.float32)

    params = {
        'embed_timestep': nrm((cfg['max_timestep'] + 1, H)),
        'embed_return_w': nrm((cfg['action_dim'], H)), 'embed_return_b': nrm((1, H)),
        'action_embed': nrm((A, H)),                      # discrete embed_action
        'object_embed': nrm((cfg['n_objects'], tes)),
        'color_embed': nrm((cfg['n_colors'], tes)),
        'conv1_w': nrm((ies // 2, 2 * tes, 2, 2)), 'conv1_b': nrm((ies // 2,)),
        'conv2_w': nrm((ies // 2, ies // 2, 2, 2)), 'conv2_b': nrm((ies // 2,)),
        'conv3_w': nrm((ies, ies // 2, 2, 2)), 'conv3_b': nrm((ies,)),
        'img_fc_w': nrm((ies, H - tes)), 'img_fc_b': nrm((1, H - tes)),
        'embed_ln_g': 1.0 + nrm((1, H)), 'embed_ln_b': nrm((1, H)),
        'pred_w': nrm((H, A)), 'pred_b': nrm((1, A)),     # action_predictor
        'blocks': [],
    }
    for _ in range(cfg['n_blocks']):
        params['blocks'].append({
            'wq': nrm((H, H)), 'bq': nrm((1, H)),
            'wk': nrm((H, H)), 'bk': nrm((1, H)),
            'wv': nrm((H, H)), 'bv': nrm((1, H)),
            'wo': nrm((H, H)), 'bo': nrm((1, H)),
            'ln1g': 1.0 + nrm((1, H)), 'ln1b': nrm((1, H)),
            'w1': nrm((H, 4 * H)), 'b1': nrm((1, 4 * H)),
            'w2': nrm((4 * H, H)), 'b2': nrm((1, H)),
            'ln2g': 1.0 + nrm((1, H)), 'ln2b': nrm((1, H)),
        })
    return params


# ---------------------------------------------------------------------------
if __name__ == "__main__":
    cfg = dict(
        hidden_dim=32,            # cfg.hidden_dim
        n_heads=2,                # cfg.n_heads
        n_blocks=2,               # cfg.n_blocks
        context_length=8,         # cfg.context_length  (S = 3*T = 24)
        max_timestep=64,          # cfg.max_timestep
        token_embed_size=8,       # cfg.token_embed_size
        image_embed_size=16,      # cfg.image_embed_size
        num_actions=7,            # len(Actions)
        n_objects=11,             # len(OBJECT_TO_IDX)
        n_colors=6,               # len(COLOR_TO_IDX)
        action_dim=1,             # cfg.action_dim
        discrete_action=True,     # cfg.discrete_action
        use_linear_state_encoder=False,
        drop_p=0.0,
    )
    B, T = 2, cfg['context_length']

    key = jax.random.PRNGKey(0)
    k_r, k_obj, k_col, k_tg, k_a, k_t, k_p = jax.random.split(key, 7)
    returns = jax.random.normal(k_r, (B, T, cfg['action_dim']), dtype=jnp.float32)
    image = jnp.stack(
        [jax.random.randint(k_obj, (B, T, 7, 7), 0, cfg['n_objects']),
         jax.random.randint(k_col, (B, T, 7, 7), 0, cfg['n_colors'])], axis=-1)
    target = jax.random.randint(k_tg, (B, T), 0, cfg['n_colors'])
    observation = {'image': image, 'target': target}
    actions = jax.random.randint(k_a, (B, T, 1), 0, cfg['num_actions'])
    timestep = jax.random.randint(k_t, (B, T), 0, cfg['max_timestep'] + 1)
    params = init_params(k_p, cfg)

    # one-time weight packing OUTSIDE jit (review item: no per-call repacking)
    packed = pack_params(params)
    jax.block_until_ready(packed)

    fwd = jax.jit(lambda p, pk, r, o, a, t: forward(p, pk, r, o, a, t, cfg))
    logits = fwd(params, packed, returns, observation, actions, timestep)
    jax.block_until_ready(logits)

    ref_logits = reference_forward(params, returns, observation, actions, timestep, cfg)
    assert logits.shape == (B, T, cfg['num_actions'])
    # bf16 MXU inputs + approx softmax reciprocal => expected error << 1e-2.
    assert jnp.allclose(logits, ref_logits, atol=1e-2, rtol=1e-2), (
        "logits mismatch: max abs err = "
        f"{float(jnp.max(jnp.abs(logits - ref_logits)))}")

    print("KERNEL_OK")
</pallas_src>

<mosaic_0001>
module attributes {stable_mosaic.version = 11 : i64} {
  func.func @dt_forward_kernel(%arg0: i32, %arg1: memref<1x24x32xf32, #tpu.memory_space<vmem>>, %arg2: memref<1x32xf32, #tpu.memory_space<vmem>>, %arg3: memref<1x32xf32, #tpu.memory_space<vmem>>, %arg4: memref<2x32x96xbf16, #tpu.memory_space<vmem>>, %arg5: memref<2x1x96xf32, #tpu.memory_space<vmem>>, %arg6: memref<2x32x32xbf16, #tpu.memory_space<vmem>>, %arg7: memref<2x1x32xf32, #tpu.memory_space<vmem>>, %arg8: memref<2x1x32xf32, #tpu.memory_space<vmem>>, %arg9: memref<2x1x32xf32, #tpu.memory_space<vmem>>, %arg10: memref<2x32x128xbf16, #tpu.memory_space<vmem>>, %arg11: memref<2x1x128xf32, #tpu.memory_space<vmem>>, %arg12: memref<2x128x32xbf16, #tpu.memory_space<vmem>>, %arg13: memref<2x1x32xf32, #tpu.memory_space<vmem>>, %arg14: memref<2x1x32xf32, #tpu.memory_space<vmem>>, %arg15: memref<2x1x32xf32, #tpu.memory_space<vmem>>, %arg16: memref<32x128xbf16, #tpu.memory_space<vmem>>, %arg17: memref<1x128xf32, #tpu.memory_space<vmem>>, %arg18: memref<1x8x128xf32, #tpu.memory_space<vmem>>) attributes {dimension_semantics = [#tpu.dimension_semantics<parallel>], iteration_bounds = array<i64: 2>, scalar_prefetch = 0 : i64, scratch_operands = 0 : i64, tpu.core_type = #tpu.core_type<tc>, window_params = [{transform_indices = @transform_0, window_bounds = array<i64: 1, 24, 32>}, {pipeline_mode = #tpu.pipeline_mode<synchronous>, transform_indices = @transform_1, window_bounds = array<i64: 1, 32>}, {pipeline_mode = #tpu.pipeline_mode<synchronous>, transform_indices = @transform_2, window_bounds = array<i64: 1, 32>}, {pipeline_mode = #tpu.pipeline_mode<synchronous>, transform_indices = @transform_3, window_bounds = array<i64: 2, 32, 96>}, {pipeline_mode = #tpu.pipeline_mode<synchronous>, transform_indices = @transform_4, window_bounds = array<i64: 2, 1, 96>}, {pipeline_mode = #tpu.pipeline_mode<synchronous>, transform_indices = @transform_5, window_bounds = array<i64: 2, 32, 32>}, {pipeline_mode = #tpu.pipeline_mode<synchronous>, transform_indices = @transform_6, window_bounds = array<i64: 2, 1, 32>}, {pipeline_mode = #tpu.pipeline_mode<synchronous>, transform_indices = @transform_7, window_bounds = array<i64: 2, 1, 32>}, {pipeline_mode = #tpu.pipeline_mode<synchronous>, transform_indices = @transform_8, window_bounds = array<i64: 2, 1, 32>}, {pipeline_mode = #tpu.pipeline_mode<synchronous>, transform_indices = @transform_9, window_bounds = array<i64: 2, 32, 128>}, {pipeline_mode = #tpu.pipeline_mode<synchronous>, transform_indices = @transform_10, window_bounds = array<i64: 2, 1, 128>}, {pipeline_mode = #tpu.pipeline_mode<synchronous>, transform_indices = @transform_11, window_bounds = array<i64: 2, 128, 32>}, {pipeline_mode = #tpu.pipeline_mode<synchronous>, transform_indices = @transform_12, window_bounds = array<i64: 2, 1, 32>}, {pipeline_mode = #tpu.pipeline_mode<synchronous>, transform_indices = @transform_13, window_bounds = array<i64: 2, 1, 32>}, {pipeline_mode = #tpu.pipeline_mode<synchronous>, transform_indices = @transform_14, window_bounds = array<i64: 2, 1, 32>}, {pipeline_mode = #tpu.pipeline_mode<synchronous>, transform_indices = @transform_15, window_bounds = array<i64: 32, 128>}, {pipeline_mode = #tpu.pipeline_mode<synchronous>, transform_indices = @transform_16, window_bounds = array<i64: 1, 128>}, {transform_indices = @transform_17, window_bounds = array<i64: 1, 8, 128>}]} {
    %c0 = arith.constant 0 : index
    %c0_0 = arith.constant 0 : index
    %c0_1 = arith.constant 0 : index
    %0 = vector.load %arg1[%c0, %c0_0, %c0_1] : memref<1x24x32xf32, #tpu.memory_space<vmem>>, vector<1x24x32xf32>
    %1 = vector.shape_cast %0 : vector<1x24x32xf32> to vector<24x32xf32>
    %c0_2 = arith.constant 0 : index
    %c0_3 = arith.constant 0 : index
    %2 = vector.load %arg2[%c0_2, %c0_3] : memref<1x32xf32, #tpu.memory_space<vmem>>, vector<1x32xf32>
    %c0_4 = arith.constant 0 : index
    %c0_5 = arith.constant 0 : index
    %3 = vector.load %arg3[%c0_4, %c0_5] : memref<1x32xf32, #tpu.memory_space<vmem>>, vector<1x32xf32>
    %cst = arith.constant dense<0.000000e+00> : vector<24xf32>
    %4 = vector.multi_reduction <add>, %1, %cst [1] : vector<24x32xf32> to vector<24xf32>
    %5 = vector.shape_cast %4 : vector<24xf32> to vector<24x1xf32>
    %cst_6 = arith.constant 3.200000e+01 : f32
    %6 = vector.broadcast %cst_6 : f32 to vector<24x1xf32>
    %7 = arith.divf %5, %6 : vector<24x1xf32>
    %8 = arith.mulf %1, %1 : vector<24x32xf32>
    %cst_7 = arith.constant dense<0.000000e+00> : vector<24xf32>
    %9 = vector.multi_reduction <add>, %8, %cst_7 [1] : vector<24x32xf32> to vector<24xf32>
    %10 = vector.shape_cast %9 : vector<24xf32> to vector<24x1xf32>
    %cst_8 = arith.constant 3.200000e+01 : f32
    %11 = vector.broadcast %cst_8 : f32 to vector<24x1xf32>
    %12 = arith.divf %10, %11 : vector<24x1xf32>
    %13 = arith.mulf %7, %7 : vector<24x1xf32>
    %14 = arith.subf %12, %13 : vector<24x1xf32>
    %cst_9 = arith.constant 0.000000e+00 : f32
    %15 = vector.broadcast %cst_9 : f32 to vector<24x1xf32>
    %16 = arith.maximumf %14, %15 : vector<24x1xf32>
    %17 = vector.broadcast %7 : vector<24x1xf32> to vector<24x32xf32>
    %18 = arith.subf %1, %17 : vector<24x32xf32>
    %cst_10 = arith.constant 9.99999974E-6 : f32
    %19 = vector.broadcast %cst_10 : f32 to vector<24x1xf32>
    %20 = arith.addf %16, %19 : vector<24x1xf32>
    %21 = math.rsqrt %20 : vector<24x1xf32>
    %22 = vector.broadcast %21 : vector<24x1xf32> to vector<24x32xf32>
    %23 = arith.mulf %18, %22 : vector<24x32xf32>
    %24 = vector.broadcast %2 : vector<1x32xf32> to vector<24x32xf32>
    %25 = arith.mulf %23, %24 : vector<24x32xf32>
    %26 = vector.broadcast %3 : vector<1x32xf32> to vector<24x32xf32>
    %27 = arith.addf %25, %26 : vector<24x32xf32>
    %28 = tpu.iota {dimensions = array<i32: 1>} : vector<2x24x24xi32>
    %29 = tpu.iota {dimensions = array<i32: 2>} : vector<2x24x24xi32>
    %30 = arith.cmpi sle, %29, %28 : vector<2x24x24xi32>
    %cst_11 = arith.constant 0.000000e+00 : f32
    %cst_12 = arith.constant -1.000000e+30 : f32
    %31 = vector.broadcast %cst_11 : f32 to vector<2x24x24xf32>
    %32 = vector.broadcast %cst_12 : f32 to vector<2x24x24xf32>
    %33 = arith.select %30, %31, %32 : vector<2x24x24xi1>, vector<2x24x24xf32>
    %34 = arith.truncf %27 : vector<24x32xf32> to vector<24x32xbf16>
    %c0_13 = arith.constant 0 : index
    %c0_14 = arith.constant 0 : index
    %c0_15 = arith.constant 0 : index
    %35 = vector.load %arg4[%c0_13, %c0_14, %c0_15] : memref<2x32x96xbf16, #tpu.memory_space<vmem>>, vector<1x32x96xbf16>
    %36 = vector.shape_cast %35 : vector<1x32x96xbf16> to vector<32x96xbf16>
    %cst_16 = arith.constant dense<0.000000e+00> : vector<24x96xf32>
    %37 = tpu.matmul %34, %36, %cst_16 {dimension_numbers = #tpu.dot_dimension_numbers<[1], [0], [0], [1], [0, 0, 1, 1], [], []>} : vector<24x32xbf16>, vector<32x96xbf16>, vector<24x96xf32> -> vector<24x96xf32>
    %c0_17 = arith.constant 0 : index
    %c0_18 = arith.constant 0 : index
    %c0_19 = arith.constant 0 : index
    %38 = vector.load %arg5[%c0_17, %c0_18, %c0_19] : memref<2x1x96xf32, #tpu.memory_space<vmem>>, vector<1x1x96xf32>
    %39 = vector.shape_cast %38 : vector<1x1x96xf32> to vector<1x96xf32>
    %40 = vector.broadcast %39 : vector<1x96xf32> to vector<24x96xf32>
    %41 = arith.addf %37, %40 : vector<24x96xf32>
    %42 = vector.extract_strided_slice %41 {offsets = [0, 0], sizes = [24, 16], strides = [1, 1]} : vector<24x96xf32> to vector<24x16xf32>
    %43 = vector.extract_strided_slice %41 {offsets = [0, 16], sizes = [24, 16], strides = [1, 1]} : vector<24x96xf32> to vector<24x16xf32>
    %44 = vector.shape_cast %42 : vector<24x16xf32> to vector<1x24x16xf32>
    %45 = vector.shape_cast %43 : vector<24x16xf32> to vector<1x24x16xf32>
    %46 = tpu.concatenate %44, %45 in 0 : vector<1x24x16xf32>, vector<1x24x16xf32> -> vector<2x24x16xf32>
    %47 = vector.extract_strided_slice %41 {offsets = [0, 32], sizes = [24, 16], strides = [1, 1]} : vector<24x96xf32> to vector<24x16xf32>
    %48 = vector.extract_strided_slice %41 {offsets = [0, 48], sizes = [24, 16], strides = [1, 1]} : vector<24x96xf32> to vector<24x16xf32>
    %49 = vector.shape_cast %47 : vector<24x16xf32> to vector<1x24x16xf32>
    %50 = vector.shape_cast %48 : vector<24x16xf32> to vector<1x24x16xf32>
    %51 = tpu.concatenate %49, %50 in 0 : vector<1x24x16xf32>, vector<1x24x16xf32> -> vector<2x24x16xf32>
    %52 = vector.extract_strided_slice %41 {offsets = [0, 64], sizes = [24, 16], strides = [1, 1]} : vector<24x96xf32> to vector<24x16xf32>
    %53 = vector.extract_strided_slice %41 {offsets = [0, 80], sizes = [24, 16], strides = [1, 1]} : vector<24x96xf32> to vector<24x16xf32>
    %54 = vector.shape_cast %52 : vector<24x16xf32> to vector<1x24x16xf32>
    %55 = vector.shape_cast %53 : vector<24x16xf32> to vector<1x24x16xf32>
    %56 = tpu.concatenate %54, %55 in 0 : vector<1x24x16xf32>, vector<1x24x16xf32> -> vector<2x24x16xf32>
    %57 = arith.truncf %46 : vector<2x24x16xf32> to vector<2x24x16xbf16>
    %58 = arith.truncf %51 : vector<2x24x16xf32> to vector<2x24x16xbf16>
    "tpu.trace_start"() <{level = 10 : i32, message = "nqd,nkd->nqk"}> : () -> ()
    %cst_20 = arith.constant dense<0.000000e+00> : vector<2x24x24xf32>
    %59 = tpu.matmul %57, %58, %cst_20 {dimension_numbers = #tpu.dot_dimension_numbers<[2], [2], [1], [1], [0, 0, 0, 1, 1, 1], [0], [0]>} : vector<2x24x16xbf16>, vector<2x24x16xbf16>, vector<2x24x24xf32> -> vector<2x24x24xf32>
    "tpu.trace_stop"() : () -> ()
    %cst_21 = arith.constant 2.500000e-01 : f32
    %60 = vector.broadcast %cst_21 : f32 to vector<2x24x24xf32>
    %61 = arith.mulf %59, %60 : vector<2x24x24xf32>
    %62 = arith.addf %61, %33 : vector<2x24x24xf32>
    %cst_22 = arith.constant dense<0xFF800000> : vector<2x24xf32>
    %63 = vector.multi_reduction <maximumf>, %62, %cst_22 [2] : vector<2x24x24xf32> to vector<2x24xf32>
    %64 = vector.shape_cast %63 : vector<2x24xf32> to vector<2x24x1xf32>
    %65 = vector.broadcast %64 : vector<2x24x1xf32> to vector<2x24x24xf32>
    %66 = arith.subf %62, %65 : vector<2x24x24xf32>
    %67 = math.exp %66 : vector<2x24x24xf32>
    %cst_23 = arith.constant dense<0.000000e+00> : vector<2x24xf32>
    %68 = vector.multi_reduction <add>, %67, %cst_23 [2] : vector<2x24x24xf32> to vector<2x24xf32>
    %69 = vector.shape_cast %68 : vector<2x24xf32> to vector<2x24x1xf32>
    %70 = tpu.reciprocal %69 {approx = true} : vector<2x24x1xf32> -> vector<2x24x1xf32>
    %71 = vector.broadcast %70 : vector<2x24x1xf32> to vector<2x24x24xf32>
    %72 = arith.mulf %67, %71 : vector<2x24x24xf32>
    %73 = arith.truncf %72 : vector<2x24x24xf32> to vector<2x24x24xbf16>
    %74 = arith.truncf %56 : vector<2x24x16xf32> to vector<2x24x16xbf16>
    "tpu.trace_start"() <{level = 10 : i32, message = "nqk,nkd->nqd"}> : () -> ()
    %cst_24 = arith.constant dense<0.000000e+00> : vector<2x24x16xf32>
    %75 = tpu.matmul %73, %74, %cst_24 {dimension_numbers = #tpu.dot_dimension_numbers<[2], [1], [1], [2], [0, 0, 0, 1, 1, 2], [0], [0]>} : vector<2x24x24xbf16>, vector<2x24x16xbf16>, vector<2x24x16xf32> -> vector<2x24x16xf32>
    "tpu.trace_stop"() : () -> ()
    %76 = vector.extract_strided_slice %75 {offsets = [0, 0, 0], sizes = [1, 24, 16], strides = [1, 1, 1]} : vector<2x24x16xf32> to vector<1x24x16xf32>
    %77 = vector.shape_cast %76 : vector<1x24x16xf32> to vector<24x16xf32>
    %78 = vector.extract_strided_slice %75 {offsets = [1, 0, 0], sizes = [1, 24, 16], strides = [1, 1, 1]} : vector<2x24x16xf32> to vector<1x24x16xf32>
    %79 = vector.shape_cast %78 : vector<1x24x16xf32> to vector<24x16xf32>
    %80 = tpu.concatenate %77, %79 in 1 : vector<24x16xf32>, vector<24x16xf32> -> vector<24x32xf32>
    %81 = arith.truncf %80 : vector<24x32xf32> to vector<24x32xbf16>
    %c0_25 = arith.constant 0 : index
    %c0_26 = arith.constant 0 : index
    %c0_27 = arith.constant 0 : index
    %82 = vector.load %arg6[%c0_25, %c0_26, %c0_27] : memref<2x32x32xbf16, #tpu.memory_space<vmem>>, vector<1x32x32xbf16>
    %83 = vector.shape_cast %82 : vector<1x32x32xbf16> to vector<32x32xbf16>
    %cst_28 = arith.constant dense<0.000000e+00> : vector<24x32xf32>
    %84 = tpu.matmul %81, %83, %cst_28 {dimension_numbers = #tpu.dot_dimension_numbers<[1], [0], [0], [1], [0, 0, 1, 1], [], []>} : vector<24x32xbf16>, vector<32x32xbf16>, vector<24x32xf32> -> vector<24x32xf32>
    %c0_29 = arith.constant 0 : index
    %c0_30 = arith.constant 0 : index
    %c0_31 = arith.constant 0 : index
    %85 = vector.load %arg7[%c0_29, %c0_30, %c0_31] : memref<2x1x32xf32, #tpu.memory_space<vmem>>, vector<1x1x32xf32>
    %86 = vector.shape_cast %85 : vector<1x1x32xf32> to vector<1x32xf32>
    %87 = vector.broadcast %86 : vector<1x32xf32> to vector<24x32xf32>
    %88 = arith.addf %84, %87 : vector<24x32xf32>
    %89 = arith.addf %27, %88 : vector<24x32xf32>
    %c0_32 = arith.constant 0 : index
    %c0_33 = arith.constant 0 : index
    %c0_34 = arith.constant 0 : index
    %90 = vector.load %arg8[%c0_32, %c0_33, %c0_34] : memref<2x1x32xf32, #tpu.memory_space<vmem>>, vector<1x1x32xf32>
    %91 = vector.shape_cast %90 : vector<1x1x32xf32> to vector<1x32xf32>
    %c0_35 = arith.constant 0 : index
    %c0_36 = arith.constant 0 : index
    %c0_37 = arith.constant 0 : index
    %92 = vector.load %arg9[%c0_35, %c0_36, %c0_37] : memref<2x1x32xf32, #tpu.memory_space<vmem>>, vector<1x1x32xf32>
    %93 = vector.shape_cast %92 : vector<1x1x32xf32> to vector<1x32xf32>
    %cst_38 = arith.constant dense<0.000000e+00> : vector<24xf32>
    %94 = vector.multi_reduction <add>, %89, %cst_38 [1] : vector<24x32xf32> to vector<24xf32>
    %95 = vector.shape_cast %94 : vector<24xf32> to vector<24x1xf32>
    %cst_39 = arith.constant 3.200000e+01 : f32
    %96 = vector.broadcast %cst_39 : f32 to vector<24x1xf32>
    %97 = arith.divf %95, %96 : vector<24x1xf32>
    %98 = arith.mulf %89, %89 : vector<24x32xf32>
    %cst_40 = arith.constant dense<0.000000e+00> : vector<24xf32>
    %99 = vector.multi_reduction <add>, %98, %cst_40 [1] : vector<24x32xf32> to vector<24xf32>
    %100 = vector.shape_cast %99 : vector<24xf32> to vector<24x1xf32>
    %cst_41 = arith.constant 3.200000e+01 : f32
    %101 = vector.broadcast %cst_41 : f32 to vector<24x1xf32>
    %102 = arith.divf %100, %101 : vector<24x1xf32>
    %103 = arith.mulf %97, %97 : vector<24x1xf32>
    %104 = arith.subf %102, %103 : vector<24x1xf32>
    %cst_42 = arith.constant 0.000000e+00 : f32
    %105 = vector.broadcast %cst_42 : f32 to vector<24x1xf32>
    %106 = arith.maximumf %104, %105 : vector<24x1xf32>
    %107 = vector.broadcast %97 : vector<24x1xf32> to vector<24x32xf32>
    %108 = arith.subf %89, %107 : vector<24x32xf32>
    %cst_43 = arith.constant 9.99999974E-6 : f32
    %109 = vector.broadcast %cst_43 : f32 to vector<24x1xf32>
    %110 = arith.addf %106, %109 : vector<24x1xf32>
    %111 = math.rsqrt %110 : vector<24x1xf32>
    %112 = vector.broadcast %111 : vector<24x1xf32> to vector<24x32xf32>
    %113 = arith.mulf %108, %112 : vector<24x32xf32>
    %114 = vector.broadcast %91 : vector<1x32xf32> to vector<24x32xf32>
    %115 = arith.mulf %113, %114 : vector<24x32xf32>
    %116 = vector.broadcast %93 : vector<1x32xf32> to vector<24x32xf32>
    %117 = arith.addf %115, %116 : vector<24x32xf32>
    %118 = arith.truncf %117 : vector<24x32xf32> to vector<24x32xbf16>
    %c0_44 = arith.constant 0 : index
    %c0_45 = arith.constant 0 : index
    %c0_46 = arith.constant 0 : index
    %119 = vector.load %arg10[%c0_44, %c0_45, %c0_46] : memref<2x32x128xbf16, #tpu.memory_space<vmem>>, vector<1x32x128xbf16>
    %120 = vector.shape_cast %119 : vector<1x32x128xbf16> to vector<32x128xbf16>
    %cst_47 = arith.constant dense<0.000000e+00> : vector<24x128xf32>
    %121 = tpu.matmul %118, %120, %cst_47 {dimension_numbers = #tpu.dot_dimension_numbers<[1], [0], [0], [1], [0, 0, 1, 1], [], []>} : vector<24x32xbf16>, vector<32x128xbf16>, vector<24x128xf32> -> vector<24x128xf32>
    %c0_48 = arith.constant 0 : index
    %c0_49 = arith.constant 0 : index
    %c0_50 = arith.constant 0 : index
    %122 = vector.load %arg11[%c0_48, %c0_49, %c0_50] : memref<2x1x128xf32, #tpu.memory_space<vmem>>, vector<1x1x128xf32>
    %123 = vector.shape_cast %122 : vector<1x1x128xf32> to vector<1x128xf32>
    %124 = vector.broadcast %123 : vector<1x128xf32> to vector<24x128xf32>
    %125 = arith.addf %121, %124 : vector<24x128xf32>
    %cst_51 = arith.constant 5.000000e-01 : f32
    %126 = vector.broadcast %cst_51 : f32 to vector<24x128xf32>
    %127 = arith.mulf %126, %125 : vector<24x128xf32>
    %cst_52 = arith.constant 0.707106769 : f32
    %128 = vector.broadcast %cst_52 : f32 to vector<24x128xf32>
    %129 = arith.mulf %125, %128 : vector<24x128xf32>
    %130 = math.erf %129 : vector<24x128xf32>
    %cst_53 = arith.constant 1.000000e+00 : f32
    %131 = vector.broadcast %cst_53 : f32 to vector<24x128xf32>
    %132 = arith.addf %131, %130 : vector<24x128xf32>
    %133 = arith.mulf %127, %132 : vector<24x128xf32>
    %134 = arith.truncf %133 : vector<24x128xf32> to vector<24x128xbf16>
    %c0_54 = arith.constant 0 : index
    %c0_55 = arith.constant 0 : index
    %c0_56 = arith.constant 0 : index
    %135 = vector.load %arg12[%c0_54, %c0_55, %c0_56] : memref<2x128x32xbf16, #tpu.memory_space<vmem>>, vector<1x128x32xbf16>
    %136 = vector.shape_cast %135 : vector<1x128x32xbf16> to vector<128x32xbf16>
    %cst_57 = arith.constant dense<0.000000e+00> : vector<24x32xf32>
    %137 = tpu.matmul %134, %136, %cst_57 {dimension_numbers = #tpu.dot_dimension_numbers<[1], [0], [0], [1], [0, 0, 1, 1], [], []>} : vector<24x128xbf16>, vector<128x32xbf16>, vector<24x32xf32> -> vector<24x32xf32>
    %c0_58 = arith.constant 0 : index
    %c0_59 = arith.constant 0 : index
    %c0_60 = arith.constant 0 : index
    %138 = vector.load %arg13[%c0_58, %c0_59, %c0_60] : memref<2x1x32xf32, #tpu.memory_space<vmem>>, vector<1x1x32xf32>
    %139 = vector.shape_cast %138 : vector<1x1x32xf32> to vector<1x32xf32>
    %140 = vector.broadcast %139 : vector<1x32xf32> to vector<24x32xf32>
    %141 = arith.addf %137, %140 : vector<24x32xf32>
    %142 = arith.addf %117, %141 : vector<24x32xf32>
    %c0_61 = arith.constant 0 : index
    %c0_62 = arith.constant 0 : index
    %c0_63 = arith.constant 0 : index
    %143 = vector.load %arg14[%c0_61, %c0_62, %c0_63] : memref<2x1x32xf32, #tpu.memory_space<vmem>>, vector<1x1x32xf32>
    %144 = vector.shape_cast %143 : vector<1x1x32xf32> to vector<1x32xf32>
    %c0_64 = arith.constant 0 : index
    %c0_65 = arith.constant 0 : index
    %c0_66 = arith.constant 0 : index
    %145 = vector.load %arg15[%c0_64, %c0_65, %c0_66] : memref<2x1x32xf32, #tpu.memory_space<vmem>>, vector<1x1x32xf32>
    %146 = vector.shape_cast %145 : vector<1x1x32xf32> to vector<1x32xf32>
    %cst_67 = arith.constant dense<0.000000e+00> : vector<24xf32>
    %147 = vector.multi_reduction <add>, %142, %cst_67 [1] : vector<24x32xf32> to vector<24xf32>
    %148 = vector.shape_cast %147 : vector<24xf32> to vector<24x1xf32>
    %cst_68 = arith.constant 3.200000e+01 : f32
    %149 = vector.broadcast %cst_68 : f32 to vector<24x1xf32>
    %150 = arith.divf %148, %149 : vector<24x1xf32>
    %151 = arith.mulf %142, %142 : vector<24x32xf32>
    %cst_69 = arith.constant dense<0.000000e+00> : vector<24xf32>
    %152 = vector.multi_reduction <add>, %151, %cst_69 [1] : vector<24x32xf32> to vector<24xf32>
    %153 = vector.shape_cast %152 : vector<24xf32> to vector<24x1xf32>
    %cst_70 = arith.constant 3.200000e+01 : f32
    %154 = vector.broadcast %cst_70 : f32 to vector<24x1xf32>
    %155 = arith.divf %153, %154 : vector<24x1xf32>
    %156 = arith.mulf %150, %150 : vector<24x1xf32>
    %157 = arith.subf %155, %156 : vector<24x1xf32>
    %cst_71 = arith.constant 0.000000e+00 : f32
    %158 = vector.broadcast %cst_71 : f32 to vector<24x1xf32>
    %159 = arith.maximumf %157, %158 : vector<24x1xf32>
    %160 = vector.broadcast %150 : vector<24x1xf32> to vector<24x32xf32>
    %161 = arith.subf %142, %160 : vector<24x32xf32>
    %cst_72 = arith.constant 9.99999974E-6 : f32
    %162 = vector.broadcast %cst_72 : f32 to vector<24x1xf32>
    %163 = arith.addf %159, %162 : vector<24x1xf32>
    %164 = math.rsqrt %163 : vector<24x1xf32>
    %165 = vector.broadcast %164 : vector<24x1xf32> to vector<24x32xf32>
    %166 = arith.mulf %161, %165 : vector<24x32xf32>
    %167 = vector.broadcast %144 : vector<1x32xf32> to vector<24x32xf32>
    %168 = arith.mulf %166, %167 : vector<24x32xf32>
    %169 = vector.broadcast %146 : vector<1x32xf32> to vector<24x32xf32>
    %170 = arith.addf %168, %169 : vector<24x32xf32>
    %171 = arith.truncf %170 : vector<24x32xf32> to vector<24x32xbf16>
    %c1 = arith.constant 1 : index
    %c0_73 = arith.constant 0 : index
    %c0_74 = arith.constant 0 : index
    %172 = vector.load %arg4[%c1, %c0_73, %c0_74] : memref<2x32x96xbf16, #tpu.memory_space<vmem>>, vector<1x32x96xbf16>
    %173 = vector.shape_cast %172 : vector<1x32x96xbf16> to vector<32x96xbf16>
    %cst_75 = arith.constant dense<0.000000e+00> : vector<24x96xf32>
    %174 = tpu.matmul %171, %173, %cst_75 {dimension_numbers = #tpu.dot_dimension_numbers<[1], [0], [0], [1], [0, 0, 1, 1], [], []>} : vector<24x32xbf16>, vector<32x96xbf16>, vector<24x96xf32> -> vector<24x96xf32>
    %c1_76 = arith.constant 1 : index
    %c0_77 = arith.constant 0 : index
    %c0_78 = arith.constant 0 : index
    %175 = vector.load %arg5[%c1_76, %c0_77, %c0_78] : memref<2x1x96xf32, #tpu.memory_space<vmem>>, vector<1x1x96xf32>
    %176 = vector.shape_cast %175 : vector<1x1x96xf32> to vector<1x96xf32>
    %177 = vector.broadcast %176 : vector<1x96xf32> to vector<24x96xf32>
    %178 = arith.addf %174, %177 : vector<24x96xf32>
    %179 = vector.extract_strided_slice %178 {offsets = [0, 0], sizes = [24, 16], strides = [1, 1]} : vector<24x96xf32> to vector<24x16xf32>
    %180 = vector.extract_strided_slice %178 {offsets = [0, 16], sizes = [24, 16], strides = [1, 1]} : vector<24x96xf32> to vector<24x16xf32>
    %181 = vector.shape_cast %179 : vector<24x16xf32> to vector<1x24x16xf32>
    %182 = vector.shape_cast %180 : vector<24x16xf32> to vector<1x24x16xf32>
    %183 = tpu.concatenate %181, %182 in 0 : vector<1x24x16xf32>, vector<1x24x16xf32> -> vector<2x24x16xf32>
    %184 = vector.extract_strided_slice %178 {offsets = [0, 32], sizes = [24, 16], strides = [1, 1]} : vector<24x96xf32> to vector<24x16xf32>
    %185 = vector.extract_strided_slice %178 {offsets = [0, 48], sizes = [24, 16], strides = [1, 1]} : vector<24x96xf32> to vector<24x16xf32>
    %186 = vector.shape_cast %184 : vector<24x16xf32> to vector<1x24x16xf32>
    %187 = vector.shape_cast %185 : vector<24x16xf32> to vector<1x24x16xf32>
    %188 = tpu.concatenate %186, %187 in 0 : vector<1x24x16xf32>, vector<1x24x16xf32> -> vector<2x24x16xf32>
    %189 = vector.extract_strided_slice %178 {offsets = [0, 64], sizes = [24, 16], strides = [1, 1]} : vector<24x96xf32> to vector<24x16xf32>
    %190 = vector.extract_strided_slice %178 {offsets = [0, 80], sizes = [24, 16], strides = [1, 1]} : vector<24x96xf32> to vector<24x16xf32>
    %191 = vector.shape_cast %189 : vector<24x16xf32> to vector<1x24x16xf32>
    %192 = vector.shape_cast %190 : vector<24x16xf32> to vector<1x24x16xf32>
    %193 = tpu.concatenate %191, %192 in 0 : vector<1x24x16xf32>, vector<1x24x16xf32> -> vector<2x24x16xf32>
    %194 = arith.truncf %183 : vector<2x24x16xf32> to vector<2x24x16xbf16>
    %195 = arith.truncf %188 : vector<2x24x16xf32> to vector<2x24x16xbf16>
    "tpu.trace_start"() <{level = 10 : i32, message = "nqd,nkd->nqk"}> : () -> ()
    %cst_79 = arith.constant dense<0.000000e+00> : vector<2x24x24xf32>
    %196 = tpu.matmul %194, %195, %cst_79 {dimension_numbers = #tpu.dot_dimension_numbers<[2], [2], [1], [1], [0, 0, 0, 1, 1, 1], [0], [0]>} : vector<2x24x16xbf16>, vector<2x24x16xbf16>, vector<2x24x24xf32> -> vector<2x24x24xf32>
    "tpu.trace_stop"() : () -> ()
    %cst_80 = arith.constant 2.500000e-01 : f32
    %197 = vector.broadcast %cst_80 : f32 to vector<2x24x24xf32>
    %198 = arith.mulf %196, %197 : vector<2x24x24xf32>
    %199 = arith.addf %198, %33 : vector<2x24x24xf32>
    %cst_81 = arith.constant dense<0xFF800000> : vector<2x24xf32>
    %200 = vector.multi_reduction <maximumf>, %199, %cst_81 [2] : vector<2x24x24xf32> to vector<2x24xf32>
    %201 = vector.shape_cast %200 : vector<2x24xf32> to vector<2x24x1xf32>
    %202 = vector.broadcast %201 : vector<2x24x1xf32> to vector<2x24x24xf32>
    %203 = arith.subf %199, %202 : vector<2x24x24xf32>
    %204 = math.exp %203 : vector<2x24x24xf32>
    %cst_82 = arith.constant dense<0.000000e+00> : vector<2x24xf32>
    %205 = vector.multi_reduction <add>, %204, %cst_82 [2] : vector<2x24x24xf32> to vector<2x24xf32>
    %206 = vector.shape_cast %205 : vector<2x24xf32> to vector<2x24x1xf32>
    %207 = tpu.reciprocal %206 {approx = true} : vector<2x24x1xf32> -> vector<2x24x1xf32>
    %208 = vector.broadcast %207 : vector<2x24x1xf32> to vector<2x24x24xf32>
    %209 = arith.mulf %204, %208 : vector<2x24x24xf32>
    %210 = arith.truncf %209 : vector<2x24x24xf32> to vector<2x24x24xbf16>
    %211 = arith.truncf %193 : vector<2x24x16xf32> to vector<2x24x16xbf16>
    "tpu.trace_start"() <{level = 10 : i32, message = "nqk,nkd->nqd"}> : () -> ()
    %cst_83 = arith.constant dense<0.000000e+00> : vector<2x24x16xf32>
    %212 = tpu.matmul %210, %211, %cst_83 {dimension_numbers = #tpu.dot_dimension_numbers<[2], [1], [1], [2], [0, 0, 0, 1, 1, 2], [0], [0]>} : vector<2x24x24xbf16>, vector<2x24x16xbf16>, vector<2x24x16xf32> -> vector<2x24x16xf32>
    "tpu.trace_stop"() : () -> ()
    %213 = vector.extract_strided_slice %212 {offsets = [0, 0, 0], sizes = [1, 24, 16], strides = [1, 1, 1]} : vector<2x24x16xf32> to vector<1x24x16xf32>
    %214 = vector.shape_cast %213 : vector<1x24x16xf32> to vector<24x16xf32>
    %215 = vector.extract_strided_slice %212 {offsets = [1, 0, 0], sizes = [1, 24, 16], strides = [1, 1, 1]} : vector<2x24x16xf32> to vector<1x24x16xf32>
    %216 = vector.shape_cast %215 : vector<1x24x16xf32> to vector<24x16xf32>
    %217 = tpu.concatenate %214, %216 in 1 : vector<24x16xf32>, vector<24x16xf32> -> vector<24x32xf32>
    %218 = arith.truncf %217 : vector<24x32xf32> to vector<24x32xbf16>
    %c1_84 = arith.constant 1 : index
    %c0_85 = arith.constant 0 : index
    %c0_86 = arith.constant 0 : index
    %219 = vector.load %arg6[%c1_84, %c0_85, %c0_86] : memref<2x32x32xbf16, #tpu.memory_space<vmem>>, vector<1x32x32xbf16>
    %220 = vector.shape_cast %219 : vector<1x32x32xbf16> to vector<32x32xbf16>
    %cst_87 = arith.constant dense<0.000000e+00> : vector<24x32xf32>
    %221 = tpu.matmul %218, %220, %cst_87 {dimension_numbers = #tpu.dot_dimension_numbers<[1], [0], [0], [1], [0, 0, 1, 1], [], []>} : vector<24x32xbf16>, vector<32x32xbf16>, vector<24x32xf32> -> vector<24x32xf32>
    %c1_88 = arith.constant 1 : index
    %c0_89 = arith.constant 0 : index
    %c0_90 = arith.constant 0 : index
    %222 = vector.load %arg7[%c1_88, %c0_89, %c0_90] : memref<2x1x32xf32, #tpu.memory_space<vmem>>, vector<1x1x32xf32>
    %223 = vector.shape_cast %222 : vector<1x1x32xf32> to vector<1x32xf32>
    %224 = vector.broadcast %223 : vector<1x32xf32> to vector<24x32xf32>
    %225 = arith.addf %221, %224 : vector<24x32xf32>
    %226 = arith.addf %170, %225 : vector<24x32xf32>
    %c1_91 = arith.constant 1 : index
    %c0_92 = arith.constant 0 : index
    %c0_93 = arith.constant 0 : index
    %227 = vector.load %arg8[%c1_91, %c0_92, %c0_93] : memref<2x1x32xf32, #tpu.memory_space<vmem>>, vector<1x1x32xf32>
    %228 = vector.shape_cast %227 : vector<1x1x32xf32> to vector<1x32xf32>
    %c1_94 = arith.constant 1 : index
    %c0_95 = arith.constant 0 : index
    %c0_96 = arith.constant 0 : index
    %229 = vector.load %arg9[%c1_94, %c0_95, %c0_96] : memref<2x1x32xf32, #tpu.memory_space<vmem>>, vector<1x1x32xf32>
    %230 = vector.shape_cast %229 : vector<1x1x32xf32> to vector<1x32xf32>
    %cst_97 = arith.constant dense<0.000000e+00> : vector<24xf32>
    %231 = vector.multi_reduction <add>, %226, %cst_97 [1] : vector<24x32xf32> to vector<24xf32>
    %232 = vector.shape_cast %231 : vector<24xf32> to vector<24x1xf32>
    %cst_98 = arith.constant 3.200000e+01 : f32
    %233 = vector.broadcast %cst_98 : f32 to vector<24x1xf32>
    %234 = arith.divf %232, %233 : vector<24x1xf32>
    %235 = arith.mulf %226, %226 : vector<24x32xf32>
    %cst_99 = arith.constant dense<0.000000e+00> : vector<24xf32>
    %236 = vector.multi_reduction <add>, %235, %cst_99 [1] : vector<24x32xf32> to vector<24xf32>
    %237 = vector.shape_cast %236 : vector<24xf32> to vector<24x1xf32>
    %cst_100 = arith.constant 3.200000e+01 : f32
    %238 = vector.broadcast %cst_100 : f32 to vector<24x1xf32>
    %239 = arith.divf %237, %238 : vector<24x1xf32>
    %240 = arith.mulf %234, %234 : vector<24x1xf32>
    %241 = arith.subf %239, %240 : vector<24x1xf32>
    %cst_101 = arith.constant 0.000000e+00 : f32
    %242 = vector.broadcast %cst_101 : f32 to vector<24x1xf32>
    %243 = arith.maximumf %241, %242 : vector<24x1xf32>
    %244 = vector.broadcast %234 : vector<24x1xf32> to vector<24x32xf32>
    %245 = arith.subf %226, %244 : vector<24x32xf32>
    %cst_102 = arith.constant 9.99999974E-6 : f32
    %246 = vector.broadcast %cst_102 : f32 to vector<24x1xf32>
    %247 = arith.addf %243, %246 : vector<24x1xf32>
    %248 = math.rsqrt %247 : vector<24x1xf32>
    %249 = vector.broadcast %248 : vector<24x1xf32> to vector<24x32xf32>
    %250 = arith.mulf %245, %249 : vector<24x32xf32>
    %251 = vector.broadcast %228 : vector<1x32xf32> to vector<24x32xf32>
    %252 = arith.mulf %250, %251 : vector<24x32xf32>
    %253 = vector.broadcast %230 : vector<1x32xf32> to vector<24x32xf32>
    %254 = arith.addf %252, %253 : vector<24x32xf32>
    %255 = arith.truncf %254 : vector<24x32xf32> to vector<24x32xbf16>
    %c1_103 = arith.constant 1 : index
    %c0_104 = arith.constant 0 : index
    %c0_105 = arith.constant 0 : index
    %256 = vector.load %arg10[%c1_103, %c0_104, %c0_105] : memref<2x32x128xbf16, #tpu.memory_space<vmem>>, vector<1x32x128xbf16>
    %257 = vector.shape_cast %256 : vector<1x32x128xbf16> to vector<32x128xbf16>
    %cst_106 = arith.constant dense<0.000000e+00> : vector<24x128xf32>
    %258 = tpu.matmul %255, %257, %cst_106 {dimension_numbers = #tpu.dot_dimension_numbers<[1], [0], [0], [1], [0, 0, 1, 1], [], []>} : vector<24x32xbf16>, vector<32x128xbf16>, vector<24x128xf32> -> vector<24x128xf32>
    %c1_107 = arith.constant 1 : index
    %c0_108 = arith.constant 0 : index
    %c0_109 = arith.constant 0 : index
    %259 = vector.load %arg11[%c1_107, %c0_108, %c0_109] : memref<2x1x128xf32, #tpu.memory_space<vmem>>, vector<1x1x128xf32>
    %260 = vector.shape_cast %259 : vector<1x1x128xf32> to vector<1x128xf32>
    %261 = vector.broadcast %260 : vector<1x128xf32> to vector<24x128xf32>
    %262 = arith.addf %258, %261 : vector<24x128xf32>
    %cst_110 = arith.constant 5.000000e-01 : f32
    %263 = vector.broadcast %cst_110 : f32 to vector<24x128xf32>
    %264 = arith.mulf %263, %262 : vector<24x128xf32>
    %cst_111 = arith.constant 0.707106769 : f32
    %265 = vector.broadcast %cst_111 : f32 to vector<24x128xf32>
    %266 = arith.mulf %262, %265 : vector<24x128xf32>
    %267 = math.erf %266 : vector<24x128xf32>
    %cst_112 = arith.constant 1.000000e+00 : f32
    %268 = vector.broadcast %cst_112 : f32 to vector<24x128xf32>
    %269 = arith.addf %268, %267 : vector<24x128xf32>
    %270 = arith.mulf %264, %269 : vector<24x128xf32>
    %271 = arith.truncf %270 : vector<24x128xf32> to vector<24x128xbf16>
    %c1_113 = arith.constant 1 : index
    %c0_114 = arith.constant 0 : index
    %c0_115 = arith.constant 0 : index
    %272 = vector.load %arg12[%c1_113, %c0_114, %c0_115] : memref<2x128x32xbf16, #tpu.memory_space<vmem>>, vector<1x128x32xbf16>
    %273 = vector.shape_cast %272 : vector<1x128x32xbf16> to vector<128x32xbf16>
    %cst_116 = arith.constant dense<0.000000e+00> : vector<24x32xf32>
    %274 = tpu.matmul %271, %273, %cst_116 {dimension_numbers = #tpu.dot_dimension_numbers<[1], [0], [0], [1], [0, 0, 1, 1], [], []>} : vector<24x128xbf16>, vector<128x32xbf16>, vector<24x32xf32> -> vector<24x32xf32>
    %c1_117 = arith.constant 1 : index
    %c0_118 = arith.constant 0 : index
    %c0_119 = arith.constant 0 : index
    %275 = vector.load %arg13[%c1_117, %c0_118, %c0_119] : memref<2x1x32xf32, #tpu.memory_space<vmem>>, vector<1x1x32xf32>
    %276 = vector.shape_cast %275 : vector<1x1x32xf32> to vector<1x32xf32>
    %277 = vector.broadcast %276 : vector<1x32xf32> to vector<24x32xf32>
    %278 = arith.addf %274, %277 : vector<24x32xf32>
    %279 = arith.addf %254, %278 : vector<24x32xf32>
    %c1_120 = arith.constant 1 : index
    %c0_121 = arith.constant 0 : index
    %c0_122 = arith.constant 0 : index
    %280 = vector.load %arg14[%c1_120, %c0_121, %c0_122] : memref<2x1x32xf32, #tpu.memory_space<vmem>>, vector<1x1x32xf32>
    %281 = vector.shape_cast %280 : vector<1x1x32xf32> to vector<1x32xf32>
    %c1_123 = arith.constant 1 : index
    %c0_124 = arith.constant 0 : index
    %c0_125 = arith.constant 0 : index
    %282 = vector.load %arg15[%c1_123, %c0_124, %c0_125] : memref<2x1x32xf32, #tpu.memory_space<vmem>>, vector<1x1x32xf32>
    %283 = vector.shape_cast %282 : vector<1x1x32xf32> to vector<1x32xf32>
    %cst_126 = arith.constant dense<0.000000e+00> : vector<24xf32>
    %284 = vector.multi_reduction <add>, %279, %cst_126 [1] : vector<24x32xf32> to vector<24xf32>
    %285 = vector.shape_cast %284 : vector<24xf32> to vector<24x1xf32>
    %cst_127 = arith.constant 3.200000e+01 : f32
    %286 = vector.broadcast %cst_127 : f32 to vector<24x1xf32>
    %287 = arith.divf %285, %286 : vector<24x1xf32>
    %288 = arith.mulf %279, %279 : vector<24x32xf32>
    %cst_128 = arith.constant dense<0.000000e+00> : vector<24xf32>
    %289 = vector.multi_reduction <add>, %288, %cst_128 [1] : vector<24x32xf32> to vector<24xf32>
    %290 = vector.shape_cast %289 : vector<24xf32> to vector<24x1xf32>
    %cst_129 = arith.constant 3.200000e+01 : f32
    %291 = vector.broadcast %cst_129 : f32 to vector<24x1xf32>
    %292 = arith.divf %290, %291 : vector<24x1xf32>
    %293 = arith.mulf %287, %287 : vector<24x1xf32>
    %294 = arith.subf %292, %293 : vector<24x1xf32>
    %cst_130 = arith.constant 0.000000e+00 : f32
    %295 = vector.broadcast %cst_130 : f32 to vector<24x1xf32>
    %296 = arith.maximumf %294, %295 : vector<24x1xf32>
    %297 = vector.broadcast %287 : vector<24x1xf32> to vector<24x32xf32>
    %298 = arith.subf %279, %297 : vector<24x32xf32>
    %cst_131 = arith.constant 9.99999974E-6 : f32
    %299 = vector.broadcast %cst_131 : f32 to vector<24x1xf32>
    %300 = arith.addf %296, %299 : vector<24x1xf32>
    %301 = math.rsqrt %300 : vector<24x1xf32>
    %302 = vector.broadcast %301 : vector<24x1xf32> to vector<24x32xf32>
    %303 = arith.mulf %298, %302 : vector<24x32xf32>
    %304 = vector.broadcast %281 : vector<1x32xf32> to vector<24x32xf32>
    %305 = arith.mulf %303, %304 : vector<24x32xf32>
    %306 = vector.broadcast %283 : vector<1x32xf32> to vector<24x32xf32>
    %307 = arith.addf %305, %306 : vector<24x32xf32>
    %308 = tpu.iota {dimensions = array<i32: 0>} : vector<8x24xi32>
    %309 = tpu.iota {dimensions = array<i32: 1>} : vector<8x24xi32>
    %c3_i32 = arith.constant 3 : i32
    %310 = vector.broadcast %c3_i32 : i32 to vector<8x24xi32>
    %311 = arith.muli %310, %308 : vector<8x24xi32>
    %c1_i32 = arith.constant 1 : i32
    %312 = vector.broadcast %c1_i32 : i32 to vector<8x24xi32>
    %313 = arith.addi %311, %312 : vector<8x24xi32>
    %314 = arith.cmpi eq, %309, %313 : vector<8x24xi32>
    %315 = arith.extui %314 : vector<8x24xi1> to vector<8x24xi32>
    %316 = arith.sitofp %315 : vector<8x24xi32> to vector<8x24xf32>
    %317 = arith.truncf %316 : vector<8x24xf32> to vector<8x24xbf16>
    %318 = arith.truncf %307 : vector<24x32xf32> to vector<24x32xbf16>
    %cst_132 = arith.constant dense<0.000000e+00> : vector<8x32xf32>
    %319 = tpu.matmul %317, %318, %cst_132 {dimension_numbers = #tpu.dot_dimension_numbers<[1], [0], [0], [1], [0, 0, 1, 1], [], []>} : vector<8x24xbf16>, vector<24x32xbf16>, vector<8x32xf32> -> vector<8x32xf32>
    %320 = arith.truncf %319 : vector<8x32xf32> to vector<8x32xbf16>
    %c0_133 = arith.constant 0 : index
    %c0_134 = arith.constant 0 : index
    %321 = vector.load %arg16[%c0_133, %c0_134] : memref<32x128xbf16, #tpu.memory_space<vmem>>, vector<32x128xbf16>
    %cst_135 = arith.constant dense<0.000000e+00> : vector<8x128xf32>
    %322 = tpu.matmul %320, %321, %cst_135 {dimension_numbers = #tpu.dot_dimension_numbers<[1], [0], [0], [1], [0, 0, 1, 1], [], []>} : vector<8x32xbf16>, vector<32x128xbf16>, vector<8x128xf32> -> vector<8x128xf32>
    %c0_136 = arith.constant 0 : index
    %c0_137 = arith.constant 0 : index
    %323 = vector.load %arg17[%c0_136, %c0_137] : memref<1x128xf32, #tpu.memory_space<vmem>>, vector<1x128xf32>
    %324 = vector.broadcast %323 : vector<1x128xf32> to vector<8x128xf32>
    %325 = arith.addf %322, %324 : vector<8x128xf32>
    %c0_138 = arith.constant 0 : index
    %c0_139 = arith.constant 0 : index
    %c0_140 = arith.constant 0 : index
    %326 = vector.load %arg18[%c0_138, %c0_139, %c0_140] : memref<1x8x128xf32, #tpu.memory_space<vmem>>, vector<1x8x128xf32>
    %327 = vector.shape_cast %326 : vector<1x8x128xf32> to vector<8x128xf32>
    %328 = vector.shape_cast %325 : vector<8x128xf32> to vector<1x8x128xf32>
    tpu.vector_store %arg18[%c0_138, %c0_139, %c0_140], %328 {strides = array<i32>} : memref<1x8x128xf32, #tpu.memory_space<vmem>>, vector<1x8x128xf32>,
    return
  }
  func.func @transform_0(%arg0: i32) -> (i32, i32, i32) {
    %c0_i32 = arith.constant 0 : i32
    %c0_i32_0 = arith.constant 0 : i32
    %c0_i32_1 = arith.constant 0 : i32
    return %arg0, %c0_i32, %c0_i32_0 : i32, i32, i32
  }
  func.func @transform_1(%arg0: i32) -> (i32, i32) {
    %c0_i32 = arith.constant 0 : i32
    %c0_i32_0 = arith.constant 0 : i32
    %c0_i32_1 = arith.constant 0 : i32
    return %c0_i32, %c0_i32_0 : i32, i32
  }
  func.func @transform_2(%arg0: i32) -> (i32, i32) {
    %c0_i32 = arith.constant 0 : i32
    %c0_i32_0 = arith.constant 0 : i32
    %c0_i32_1 = arith.constant 0 : i32
    return %c0_i32, %c0_i32_0 : i32, i32
  }
  func.func @transform_3(%arg0: i32) -> (i32, i32, i32) {
    %c0_i32 = arith.constant 0 : i32
    %c0_i32_0 = arith.constant 0 : i32
    %c0_i32_1 = arith.constant 0 : i32
    %c0_i32_2 = arith.constant 0 : i32
    return %c0_i32, %c0_i32_0, %c0_i32_1 : i32, i32, i32
  }
  func.func @transform_4(%arg0: i32) -> (i32, i32, i32) {
    %c0_i32 = arith.constant 0 : i32
    %c0_i32_0 = arith.constant 0 : i32
    %c0_i32_1 = arith.constant 0 : i32
    %c0_i32_2 = arith.constant 0 : i32
    return %c0_i32, %c0_i32_0, %c0_i32_1 : i32, i32, i32
  }
  func.func @transform_5(%arg0: i32) -> (i32, i32, i32) {
    %c0_i32 = arith.constant 0 : i32
    %c0_i32_0 = arith.constant 0 : i32
    %c0_i32_1 = arith.constant 0 : i32
    %c0_i32_2 = arith.constant 0 : i32
    return %c0_i32, %c0_i32_0, %c0_i32_1 : i32, i32, i32
  }
  func.func @transform_6(%arg0: i32) -> (i32, i32, i32) {
    %c0_i32 = arith.constant 0 : i32
    %c0_i32_0 = arith.constant 0 : i32
    %c0_i32_1 = arith.constant 0 : i32
    %c0_i32_2 = arith.constant 0 : i32
    return %c0_i32, %c0_i32_0, %c0_i32_1 : i32, i32, i32
  }
  func.func @transform_7(%arg0: i32) -> (i32, i32, i32) {
    %c0_i32 = arith.constant 0 : i32
    %c0_i32_0 = arith.constant 0 : i32
    %c0_i32_1 = arith.constant 0 : i32
    %c0_i32_2 = arith.constant 0 : i32
    return %c0_i32, %c0_i32_0, %c0_i32_1 : i32, i32, i32
  }
  func.func @transform_8(%arg0: i32) -> (i32, i32, i32) {
    %c0_i32 = arith.constant 0 : i32
    %c0_i32_0 = arith.constant 0 : i32
    %c0_i32_1 = arith.constant 0 : i32
    %c0_i32_2 = arith.constant 0 : i32
    return %c0_i32, %c0_i32_0, %c0_i32_1 : i32, i32, i32
  }
  func.func @transform_9(%arg0: i32) -> (i32, i32, i32) {
    %c0_i32 = arith.constant 0 : i32
    %c0_i32_0 = arith.constant 0 : i32
    %c0_i32_1 = arith.constant 0 : i32
    %c0_i32_2 = arith.constant 0 : i32
    return %c0_i32, %c0_i32_0, %c0_i32_1 : i32, i32, i32
  }
  func.func @transform_10(%arg0: i32) -> (i32, i32, i32) {
    %c0_i32 = arith.constant 0 : i32
    %c0_i32_0 = arith.constant 0 : i32
    %c0_i32_1 = arith.constant 0 : i32
    %c0_i32_2 = arith.constant 0 : i32
    return %c0_i32, %c0_i32_0, %c0_i32_1 : i32, i32, i32
  }
  func.func @transform_11(%arg0: i32) -> (i32, i32, i32) {
    %c0_i32 = arith.constant 0 : i32
    %c0_i32_0 = arith.constant 0 : i32
    %c0_i32_1 = arith.constant 0 : i32
    %c0_i32_2 = arith.constant 0 : i32
    return %c0_i32, %c0_i32_0, %c0_i32_1 : i32, i32, i32
  }
  func.func @transform_12(%arg0: i32) -> (i32, i32, i32) {
    %c0_i32 = arith.constant 0 : i32
    %c0_i32_0 = arith.constant 0 : i32
    %c0_i32_1 = arith.constant 0 : i32
    %c0_i32_2 = arith.constant 0 : i32
    return %c0_i32, %c0_i32_0, %c0_i32_1 : i32, i32, i32
  }
  func.func @transform_13(%arg0: i32) -> (i32, i32, i32) {
    %c0_i32 = arith.constant 0 : i32
    %c0_i32_0 = arith.constant 0 : i32
    %c0_i32_1 = arith.constant 0 : i32
    %c0_i32_2 = arith.constant 0 : i32
    return %c0_i32, %c0_i32_0, %c0_i32_1 : i32, i32, i32
  }
  func.func @transform_14(%arg0: i32) -> (i32, i32, i32) {
    %c0_i32 = arith.constant 0 : i32
    %c0_i32_0 = arith.constant 0 : i32
    %c0_i32_1 = arith.constant 0 : i32
    %c0_i32_2 = arith.constant 0 : i32
    return %c0_i32, %c0_i32_0, %c0_i32_1 : i32, i32, i32
  }
  func.func @transform_15(%arg0: i32) -> (i32, i32) {
    %c0_i32 = arith.constant 0 : i32
    %c0_i32_0 = arith.constant 0 : i32
    %c0_i32_1 = arith.constant 0 : i32
    return %c0_i32, %c0_i32_0 : i32, i32
  }
  func.func @transform_16(%arg0: i32) -> (i32, i32) {
    %c0_i32 = arith.constant 0 : i32
    %c0_i32_0 = arith.constant 0 : i32
    %c0_i32_1 = arith.constant 0 : i32
    return %c0_i32, %c0_i32_0 : i32, i32
  }
  func.func @transform_17(%arg0: i32) -> (i32, i32, i32) {
    %c0_i32 = arith.constant 0 : i32
    %c0_i32_0 = arith.constant 0 : i32
    %c0_i32_1 = arith.constant 0 : i32
    return %arg0, %c0_i32, %c0_i32_0 : i32, i32, i32
  }
}

</mosaic_0001>

<llo_original>
// kernel: _lambda_.1
$region0: #{_lambda_.1}
  #allocation0 [shape = 'u32[]', space=smem, size = 0x4, offset = 0x4, fixed_abs, tag = 'smem constant byte address 0x4 - core index']
  #allocation1 [shape = 'u32[144,128]{1,0:T(1,128)}', space=vmem, size = 0x12000, scoped, tag = 'internal scratch']
  %s0 = inlined_call_operand.vmem [shape: f32[2,24,32], index: 0, kind: input, shape index: {}]
  %s1 = inlined_call_operand.vmem [shape: f32[1,32], index: 1, kind: input, shape index: {}]
  %s2 = inlined_call_operand.vmem [shape: f32[1,32], index: 2, kind: input, shape index: {}]
  %s3 = inlined_call_operand.vmem [shape: bf16[2,32,96], index: 3, kind: input, shape index: {}]
  %s4 = inlined_call_operand.vmem [shape: f32[2,1,96], index: 4, kind: input, shape index: {}]
  %s5 = inlined_call_operand.vmem [shape: bf16[2,32,32], index: 5, kind: input, shape index: {}]
  %s6 = inlined_call_operand.vmem [shape: f32[2,1,32], index: 6, kind: input, shape index: {}]
  %s7 = inlined_call_operand.vmem [shape: f32[2,1,32], index: 7, kind: input, shape index: {}]
  %s8 = inlined_call_operand.vmem [shape: f32[2,1,32], index: 8, kind: input, shape index: {}]
  %s9 = inlined_call_operand.vmem [shape: bf16[2,32,128], index: 9, kind: input, shape index: {}]
  %s10 = inlined_call_operand.vmem [shape: f32[2,1,128], index: 10, kind: input, shape index: {}]
  %s11 = inlined_call_operand.vmem [shape: bf16[2,128,32], index: 11, kind: input, shape index: {}]
  %s12 = inlined_call_operand.vmem [shape: f32[2,1,32], index: 12, kind: input, shape index: {}]
  %s13 = inlined_call_operand.vmem [shape: f32[2,1,32], index: 13, kind: input, shape index: {}]
  %s14 = inlined_call_operand.vmem [shape: f32[2,1,32], index: 14, kind: input, shape index: {}]
  %s15 = inlined_call_operand.vmem [shape: bf16[32,128], index: 15, kind: input, shape index: {}]
  %s16 = inlined_call_operand.vmem [shape: f32[1,128], index: 16, kind: input, shape index: {}]
  %s17 = inlined_call_operand.vmem [shape: f32[2,8,128], index: 17, kind: output, shape index: {}]
  %s18 = sld [smem:[#allocation0]]
  $region101: #{_lambda_.1} parent=0
    _
  %s20 = ssub.s32 1, %s18
  %s21 = scalar_select 0, %s20, %s18
  loop: start=0, step=1, limit=4
  $region2: #{_lambda_.1} parent=0 // loop_pre_header
    _
  $region3: #{_lambda_.1} parent=0 // loop_header
    %s23 = sphi 0, %s27
    %p24 = scmp.ge.s32.totalorder %s23, 4
    %s33 = sphi 0, %s35
    %s36 = sphi 0, %s33
    %s37 = sphi 0, %s36
    %s53 = sphi 0, %s37
    %s57 = sphi 0, %s57
    %s59 = sphi 0, %s57
    %s60 = sphi 0, %s59
    %s74 = sphi 0, %s60
    %s78 = sphi 0, %s78
    %s80 = sphi 0, %s78
    %s81 = sphi 0, %s80
    %s95 = sphi 0, %s81
    %s99 = sphi 0, %s99
    %s101 = sphi 0, %s99
    %s102 = sphi 0, %s101
    %s116 = sphi 0, %s102
    %s120 = sphi 0, %s120
    %s122 = sphi 0, %s120
    %s123 = sphi 0, %s122
    %s137 = sphi 0, %s123
    %s141 = sphi 0, %s141
    %s143 = sphi 0, %s141
    %s144 = sphi 0, %s143
    %s158 = sphi 0, %s144
    %s162 = sphi 0, %s162
    %s164 = sphi 0, %s162
    %s165 = sphi 0, %s164
    %s179 = sphi 0, %s165
    %s183 = sphi 0, %s183
    %s185 = sphi 0, %s183
    %s186 = sphi 0, %s185
    %s200 = sphi 0, %s186
    %s204 = sphi 0, %s204
    %s206 = sphi 0, %s204
    %s207 = sphi 0, %s206
    %s221 = sphi 0, %s207
    %s225 = sphi 0, %s225
    %s227 = sphi 0, %s225
    %s228 = sphi 0, %s227
    %s242 = sphi 0, %s228
    %s246 = sphi 0, %s246
    %s248 = sphi 0, %s246
    %s249 = sphi 0, %s248
    %s263 = sphi 0, %s249
    %s267 = sphi 0, %s267
    %s269 = sphi 0, %s267
    %s270 = sphi 0, %s269
    %s284 = sphi 0, %s270
    %s288 = sphi 0, %s288
    %s290 = sphi 0, %s288
    %s291 = sphi 0, %s290
    %s305 = sphi 0, %s291
    %s309 = sphi 0, %s309
    %s311 = sphi 0, %s309
    %s312 = sphi 0, %s311
    %s326 = sphi 0, %s312
    %s330 = sphi 0, %s330
    %s332 = sphi 0, %s330
    %s333 = sphi 0, %s332
    %s347 = sphi 0, %s333
    %s351 = sphi 0, %s351
    %s353 = sphi 0, %s351
    %s354 = sphi 0, %s353
    %s368 = sphi 0, %s354
    %s372 = sphi 0, %s372
    %s374 = sphi 0, %s372
    %s375 = sphi 0, %s374
    %s389 = sphi 0, %s375
    %s395 = sphi 0, %s397
    %s398 = sphi 0, %s395
    %s399 = sphi 0, %s398
    %s415 = sphi 0, %s399
  $region4: #{_lambda_.1} parent=0 // loop_header_branch
    %26 = sbr.rel (%p24) target = $region8
  $region5: #{_lambda_.1} parent=0 // loop_body
    %s28 = ssub.s32 %s23, 1
    %s29 = ssub.s32 %s23, 2
    %s30 = sadd.s32 %s23, 1
    %s31 = ssub.s32 %s23, %s30
    %p32 = scmp.eq.s32.totalorder %s31, 0
    %s34 = sadd.s32 %s33, 1
    %s35 = scalar_select %p32, %s33, %s34
    %p38 = pneg %p32
    %p39 = scmp.eq.s32.totalorder %s23, 1
    %p40 = por %p38, %p39
    %p41 = scmp.ne.s32.totalorder %s33, %s36
    %p42 = scmp.eq.s32.totalorder %s23, 0
    %p43 = por %p41, %p42
    %p44 = scmp.ne.s32.totalorder %s33, %s36
    %p45 = scmp.eq.s32.totalorder %s28, 1
    %p46 = por %p44, %p45
    %p47 = scmp.ne.s32.totalorder %s36, %s37
    %p48 = scmp.eq.s32.totalorder %s28, 0
    %p49 = por %p47, %p48
    %p50 = scmp.ne.s32.totalorder %s36, %s37
    %p51 = scmp.eq.s32.totalorder %s29, 1
    %p52 = por %p50, %p51
    %p54 = scmp.ne.s32.totalorder %s37, %s53
    %p55 = scmp.eq.s32.totalorder %s29, 0
    %p56 = por %p54, %p55
    %s58 = sadd.s32 %s57, 1
    %p61 = scmp.eq.s32.totalorder %s23, 1
    %p62 = scmp.ne.s32.totalorder %s57, %s59
    %p63 = scmp.eq.s32.totalorder %s23, 0
    %p64 = por %p62, %p63
    %p65 = scmp.ne.s32.totalorder %s57, %s59
    %p66 = scmp.eq.s32.totalorder %s28, 1
    %p67 = por %p65, %p66
    %p68 = scmp.ne.s32.totalorder %s59, %s60
    %p69 = scmp.eq.s32.totalorder %s28, 0
    %p70 = por %p68, %p69
    %p71 = scmp.ne.s32.totalorder %s59, %s60
    %p72 = scmp.eq.s32.totalorder %s29, 1
    %p73 = por %p71, %p72
    %p75 = scmp.ne.s32.totalorder %s60, %s74
    %p76 = scmp.eq.s32.totalorder %s29, 0
    %p77 = por %p75, %p76
    %s79 = sadd.s32 %s78, 1
    %p82 = scmp.eq.s32.totalorder %s23, 1
    %p83 = scmp.ne.s32.totalorder %s78, %s80
    %p84 = scmp.eq.s32.totalorder %s23, 0
    %p85 = por %p83, %p84
    %p86 = scmp.ne.s32.totalorder %s78, %s80
    %p87 = scmp.eq.s32.totalorder %s28, 1
    %p88 = por %p86, %p87
    %p89 = scmp.ne.s32.totalorder %s80, %s81
    %p90 = scmp.eq.s32.totalorder %s28, 0
    %p91 = por %p89, %p90
    %p92 = scmp.ne.s32.totalorder %s80, %s81
    %p93 = scmp.eq.s32.totalorder %s29, 1
    %p94 = por %p92, %p93
    %p96 = scmp.ne.s32.totalorder %s81, %s95
    %p97 = scmp.eq.s32.totalorder %s29, 0
    %p98 = por %p96, %p97
    %s100 = sadd.s32 %s99, 1
    %p103 = scmp.eq.s32.totalorder %s23, 1
    %p104 = scmp.ne.s32.totalorder %s99, %s101
    %p105 = scmp.eq.s32.totalorder %s23, 0
    %p106 = por %p104, %p105
    %p107 = scmp.ne.s32.totalorder %s99, %s101
    %p108 = scmp.eq.s32.totalorder %s28, 1
    %p109 = por %p107, %p108
    %p110 = scmp.ne.s32.totalorder %s101, %s102
    %p111 = scmp.eq.s32.totalorder %s28, 0
    %p112 = por %p110, %p111
    %p113 = scmp.ne.s32.totalorder %s101, %s102
    %p114 = scmp.eq.s32.totalorder %s29, 1
    %p115 = por %p113, %p114
    %p117 = scmp.ne.s32.totalorder %s102, %s116
    %p118 = scmp.eq.s32.totalorder %s29, 0
    %p119 = por %p117, %p118
    %s121 = sadd.s32 %s120, 1
    %p124 = scmp.eq.s32.totalorder %s23, 1
    %p125 = scmp.ne.s32.totalorder %s120, %s122
    %p126 = scmp.eq.s32.totalorder %s23, 0
    %p127 = por %p125, %p126
    %p128 = scmp.ne.s32.totalorder %s120, %s122
    %p129 = scmp.eq.s32.totalorder %s28, 1
    %p130 = por %p128, %p129
    %p131 = scmp.ne.s32.totalorder %s122, %s123
    %p132 = scmp.eq.s32.totalorder %s28, 0
    %p133 = por %p131, %p132
    %p134 = scmp.ne.s32.totalorder %s122, %s123
    %p135 = scmp.eq.s32.totalorder %s29, 1
    %p136 = por %p134, %p135
    %p138 = scmp.ne.s32.totalorder %s123, %s137
    %p139 = scmp.eq.s32.totalorder %s29, 0
    %p140 = por %p138, %p139
    %s142 = sadd.s32 %s141, 1
    %p145 = scmp.eq.s32.totalorder %s23, 1
    %p146 = scmp.ne.s32.totalorder %s141, %s143
    %p147 = scmp.eq.s32.totalorder %s23, 0
    %p148 = por %p146, %p147
    %p149 = scmp.ne.s32.totalorder %s141, %s143
    %p150 = scmp.eq.s32.totalorder %s28, 1
    %p151 = por %p149, %p150
    %p152 = scmp.ne.s32.totalorder %s143, %s144
    %p153 = scmp.eq.s32.totalorder %s28, 0
    %p154 = por %p152, %p153
    %p155 = scmp.ne.s32.totalorder %s143, %s144
    %p156 = scmp.eq.s32.totalorder %s29, 1
    %p157 = por %p155, %p156
    %p159 = scmp.ne.s32.totalorder %s144, %s158
    %p160 = scmp.eq.s32.totalorder %s29, 0
    %p161 = por %p159, %p160
    %s163 = sadd.s32 %s162, 1
    %p166 = scmp.eq.s32.totalorder %s23, 1
    %p167 = scmp.ne.s32.totalorder %s162, %s164
    %p168 = scmp.eq.s32.totalorder %s23, 0
    %p169 = por %p167, %p168
    %p170 = scmp.ne.s32.totalorder %s162, %s164
    %p171 = scmp.eq.s32.totalorder %s28, 1
    %p172 = por %p170, %p171
    %p173 = scmp.ne.s32.totalorder %s164, %s165
    %p174 = scmp.eq.s32.totalorder %s28, 0
    %p175 = por %p173, %p174
    %p176 = scmp.ne.s32.totalorder %s164, %s165
    %p177 = scmp.eq.s32.totalorder %s29, 1
    %p178 = por %p176, %p177
    %p180 = scmp.ne.s32.totalorder %s165, %s179
    %p181 = scmp.eq.s32.totalorder %s29, 0
    %p182 = por %p180, %p181
    %s184 = sadd.s32 %s183, 1
    %p187 = scmp.eq.s32.totalorder %s23, 1
    %p188 = scmp.ne.s32.totalorder %s183, %s185
    %p189 = scmp.eq.s32.totalorder %s23, 0
    %p190 = por %p188, %p189
    %p191 = scmp.ne.s32.totalorder %s183, %s185
    %p192 = scmp.eq.s32.totalorder %s28, 1
    %p193 = por %p191, %p192
    %p194 = scmp.ne.s32.totalorder %s185, %s186
    %p195 = scmp.eq.s32.totalorder %s28, 0
    %p196 = por %p194, %p195
    %p197 = scmp.ne.s32.totalorder %s185, %s186
    %p198 = scmp.eq.s32.totalorder %s29, 1
    %p199 = por %p197, %p198
    %p201 = scmp.ne.s32.totalorder %s186, %s200
    %p202 = scmp.eq.s32.totalorder %s29, 0
    %p203 = por %p201, %p202
    %s205 = sadd.s32 %s204, 1
    %p208 = scmp.eq.s32.totalorder %s23, 1
    %p209 = scmp.ne.s32.totalorder %s204, %s206
    %p210 = scmp.eq.s32.totalorder %s23, 0
    %p211 = por %p209, %p210
    %p212 = scmp.ne.s32.totalorder %s204, %s206
    %p213 = scmp.eq.s32.totalorder %s28, 1
    %p214 = por %p212, %p213
    %p215 = scmp.ne.s32.totalorder %s206, %s207
    %p216 = scmp.eq.s32.totalorder %s28, 0
    %p217 = por %p215, %p216
    %p218 = scmp.ne.s32.totalorder %s206, %s207
    %p219 = scmp.eq.s32.totalorder %s29, 1
    %p220 = por %p218, %p219
    %p222 = scmp.ne.s32.totalorder %s207, %s221
    %p223 = scmp.eq.s32.totalorder %s29, 0
    %p224 = por %p222, %p223
    %s226 = sadd.s32 %s225, 1
    %p229 = scmp.eq.s32.totalorder %s23, 1
    %p230 = scmp.ne.s32.totalorder %s225, %s227
    %p231 = scmp.eq.s32.totalorder %s23, 0
    %p232 = por %p230, %p231
    %p233 = scmp.ne.s32.totalorder %s225, %s227
    %p234 = scmp.eq.s32.totalorder %s28, 1
    %p235 = por %p233, %p234
    %p236 = scmp.ne.s32.totalorder %s227, %s228
    %p237 = scmp.eq.s32.totalorder %s28, 0
    %p238 = por %p236, %p237
    %p239 = scmp.ne.s32.totalorder %s227, %s228
    %p240 = scmp.eq.s32.totalorder %s29, 1
    %p241 = por %p239, %p240
    %p243 = scmp.ne.s32.totalorder %s228, %s242
    %p244 = scmp.eq.s32.totalorder %s29, 0
    %p245 = por %p243, %p244
    %s247 = sadd.s32 %s246, 1
    %p250 = scmp.eq.s32.totalorder %s23, 1
    %p251 = scmp.ne.s32.totalorder %s246, %s248
    %p252 = scmp.eq.s32.totalorder %s23, 0
    %p253 = por %p251, %p252
    %p254 = scmp.ne.s32.totalorder %s246, %s248
    %p255 = scmp.eq.s32.totalorder %s28, 1
    %p256 = por %p254, %p255
    %p257 = scmp.ne.s32.totalorder %s248, %s249
    %p258 = scmp.eq.s32.totalorder %s28, 0
    %p259 = por %p257, %p258
    %p260 = scmp.ne.s32.totalorder %s248, %s249
    %p261 = scmp.eq.s32.totalorder %s29, 1
    %p262 = por %p260, %p261
    %p264 = scmp.ne.s32.totalorder %s249, %s263
    %p265 = scmp.eq.s32.totalorder %s29, 0
    %p266 = por %p264, %p265
    %s268 = sadd.s32 %s267, 1
    %p271 = scmp.eq.s32.totalorder %s23, 1
    %p272 = scmp.ne.s32.totalorder %s267, %s269
    %p273 = scmp.eq.s32.totalorder %s23, 0
    %p274 = por %p272, %p273
    %p275 = scmp.ne.s32.totalorder %s267, %s269
    %p276 = scmp.eq.s32.totalorder %s28, 1
    %p277 = por %p275, %p276
    %p278 = scmp.ne.s32.totalorder %s269, %s270
    %p279 = scmp.eq.s32.totalorder %s28, 0
    %p280 = por %p278, %p279
    %p281 = scmp.ne.s32.totalorder %s269, %s270
    %p282 = scmp.eq.s32.totalorder %s29, 1
    %p283 = por %p281, %p282
    %p285 = scmp.ne.s32.totalorder %s270, %s284
    %p286 = scmp.eq.s32.totalorder %s29, 0
    %p287 = por %p285, %p286
    %s289 = sadd.s32 %s288, 1
    %p292 = scmp.eq.s32.totalorder %s23, 1
    %p293 = scmp.ne.s32.totalorder %s288, %s290
    %p294 = scmp.eq.s32.totalorder %s23, 0
    %p295 = por %p293, %p294
    %p296 = scmp.ne.s32.totalorder %s288, %s290
    %p297 = scmp.eq.s32.totalorder %s28, 1
    %p298 = por %p296, %p297
    %p299 = scmp.ne.s32.totalorder %s290, %s291
    %p300 = scmp.eq.s32.totalorder %s28, 0
    %p301 = por %p299, %p300
    %p302 = scmp.ne.s32.totalorder %s290, %s291
    %p303 = scmp.eq.s32.totalorder %s29, 1
    %p304 = por %p302, %p303
    %p306 = scmp.ne.s32.totalorder %s291, %s305
    %p307 = scmp.eq.s32.totalorder %s29, 0
    %p308 = por %p306, %p307
    %s310 = sadd.s32 %s309, 1
    %p313 = scmp.eq.s32.totalorder %s23, 1
    %p314 = scmp.ne.s32.totalorder %s309, %s311
    %p315 = scmp.eq.s32.totalorder %s23, 0
    %p316 = por %p314, %p315
    %p317 = scmp.ne.s32.totalorder %s309, %s311
    %p318 = scmp.eq.s32.totalorder %s28, 1
    %p319 = por %p317, %p318
    %p320 = scmp.ne.s32.totalorder %s311, %s312
    %p321 = scmp.eq.s32.totalorder %s28, 0
    %p322 = por %p320, %p321
    %p323 = scmp.ne.s32.totalorder %s311, %s312
    %p324 = scmp.eq.s32.totalorder %s29, 1
    %p325 = por %p323, %p324
    %p327 = scmp.ne.s32.totalorder %s312, %s326
    %p328 = scmp.eq.s32.totalorder %s29, 0
    %p329 = por %p327, %p328
    %s331 = sadd.s32 %s330, 1
    %p334 = scmp.eq.s32.totalorder %s23, 1
    %p335 = scmp.ne.s32.totalorder %s330, %s332
    %p336 = scmp.eq.s32.totalorder %s23, 0
    %p337 = por %p335, %p336
    %p338 = scmp.ne.s32.totalorder %s330, %s332
    %p339 = scmp.eq.s32.totalorder %s28, 1
    %p340 = por %p338, %p339
    %p341 = scmp.ne.s32.totalorder %s332, %s333
    %p342 = scmp.eq.s32.totalorder %s28, 0
    %p343 = por %p341, %p342
    %p344 = scmp.ne.s32.totalorder %s332, %s333
    %p345 = scmp.eq.s32.totalorder %s29, 1
    %p346 = por %p344, %p345
    %p348 = scmp.ne.s32.totalorder %s333, %s347
    %p349 = scmp.eq.s32.totalorder %s29, 0
    %p350 = por %p348, %p349
    %s352 = sadd.s32 %s351, 1
    %p355 = scmp.eq.s32.totalorder %s23, 1
    %p356 = scmp.ne.s32.totalorder %s351, %s353
    %p357 = scmp.eq.s32.totalorder %s23, 0
    %p358 = por %p356, %p357
    %p359 = scmp.ne.s32.totalorder %s351, %s353
    %p360 = scmp.eq.s32.totalorder %s28, 1
    %p361 = por %p359, %p360
    %p362 = scmp.ne.s32.totalorder %s353, %s354
    %p363 = scmp.eq.s32.totalorder %s28, 0
    %p364 = por %p362, %p363
    %p365 = scmp.ne.s32.totalorder %s353, %s354
    %p366 = scmp.eq.s32.totalorder %s29, 1
    %p367 = por %p365, %p366
    %p369 = scmp.ne.s32.totalorder %s354, %s368
    %p370 = scmp.eq.s32.totalorder %s29, 0
    %p371 = por %p369, %p370
    %s373 = sadd.s32 %s372, 1
    %p376 = scmp.eq.s32.totalorder %s23, 1
    %p377 = scmp.ne.s32.totalorder %s372, %s374
    %p378 = scmp.eq.s32.totalorder %s23, 0
    %p379 = por %p377, %p378
    %p380 = scmp.ne.s32.totalorder %s372, %s374
    %p381 = scmp.eq.s32.totalorder %s28, 1
    %p382 = por %p380, %p381
    %p383 = scmp.ne.s32.totalorder %s374, %s375
    %p384 = scmp.eq.s32.totalorder %s28, 0
    %p385 = por %p383, %p384
    %p386 = scmp.ne.s32.totalorder %s374, %s375
    %p387 = scmp.eq.s32.totalorder %s29, 1
    %p388 = por %p386, %p387
    %p390 = scmp.ne.s32.totalorder %s375, %s389
    %p391 = scmp.eq.s32.totalorder %s29, 0
    %p392 = por %p390, %p391
    %s393 = ssub.s32 %s23, %s30
    %p394 = scmp.eq.s32.totalorder %s393, 0
    %s396 = sadd.s32 %s395, 1
    %s397 = scalar_select %p394, %s395, %s396
    %p400 = pneg %p394
    %p401 = scmp.eq.s32.totalorder %s23, 1
    %p402 = por %p400, %p401
    %p403 = scmp.ne.s32.totalorder %s395, %s398
    %p404 = scmp.eq.s32.totalorder %s23, 0
    %p405 = por %p403, %p404
    %p406 = scmp.ne.s32.totalorder %s395, %s398
    %p407 = scmp.eq.s32.totalorder %s28, 1
    %p408 = por %p406, %p407
    %p409 = scmp.ne.s32.totalorder %s398, %s399
    %p410 = scmp.eq.s32.totalorder %s28, 0
    %p411 = por %p409, %p410
    %p412 = scmp.ne.s32.totalorder %s398, %s399
    %p413 = scmp.eq.s32.totalorder %s29, 1
    %p414 = por %p412, %p413
    %p416 = scmp.ne.s32.totalorder %s399, %s415
    %p417 = scmp.eq.s32.totalorder %s29, 0
    %p418 = por %p416, %p417
    %p419 = scmp.le.s32.totalorder 1, %s23
    %p420 = scmp.lt.s32.totalorder %s23, 3
    %p421 = pnand %p419, %p420
    %p422 = pneg %p421
    // Predicated region
    $region9: #{_lambda_.1} parent=5 // pred_check
      _
    $region10: #{_lambda_.1} parent=5 // pred_check_branch
      %424 = sbr.rel (%p421) target = $region12
    $region11: #{_lambda_.1} parent=5 // pred_region
      %s425 = ssub.s32 %s23, 1
      // Predicated region
      $region13: #{_lambda_.1} parent=11 // pred_check
        %p426 = pneg %p70
      $region14: #{_lambda_.1} parent=11 // pred_check_branch
        %428 = sbr.rel (%p426) target = $region16
      $region15: #{_lambda_.1} parent=11 // pred_region
        _
      $region16: #{_lambda_.1} parent=11 // pred_fallthru
        _
      // Predicated region
      $region17: #{_lambda_.1} parent=11 // pred_check
        %p429 = pneg %p91
      $region18: #{_lambda_.1} parent=11 // pred_check_branch
        %431 = sbr.rel (%p429) target = $region20
      $region19: #{_lambda_.1} parent=11 // pred_region
        _
      $region20: #{_lambda_.1} parent=11 // pred_fallthru
        _
      // Predicated region
      $region21: #{_lambda_.1} parent=11 // pred_check
        %p432 = pneg %p112
      $region22: #{_lambda_.1} parent=11 // pred_check_branch
        %434 = sbr.rel (%p432) target = $region24
      $region23: #{_lambda_.1} parent=11 // pred_region
        _
      $region24: #{_lambda_.1} parent=11 // pred_fallthru
        _
      // Predicated region
      $region25: #{_lambda_.1} parent=11 // pred_check
        %p435 = pneg %p133
      $region26: #{_lambda_.1} parent=11 // pred_check_branch
        %437 = sbr.rel (%p435) target = $region28
      $region27: #{_lambda_.1} parent=11 // pred_region
        _
      $region28: #{_lambda_.1} parent=11 // pred_fallthru
        _
      // Predicated region
      $region29: #{_lambda_.1} parent=11 // pred_check
        %p438 = pneg %p154
      $region30: #{_lambda_.1} parent=11 // pred_check_branch
        %440 = sbr.rel (%p438) target = $region32
      $region31: #{_lambda_.1} parent=11 // pred_region
        _
      $region32: #{_lambda_.1} parent=11 // pred_fallthru
        _
      // Predicated region
      $region33: #{_lambda_.1} parent=11 // pred_check
        %p441 = pneg %p175
      $region34: #{_lambda_.1} parent=11 // pred_check_branch
        %443 = sbr.rel (%p441) target = $region36
      $region35: #{_lambda_.1} parent=11 // pred_region
        _
      $region36: #{_lambda_.1} parent=11 // pred_fallthru
        _
      // Predicated region
      $region37: #{_lambda_.1} parent=11 // pred_check
        %p444 = pneg %p196
      $region38: #{_lambda_.1} parent=11 // pred_check_branch
        %446 = sbr.rel (%p444) target = $region40
      $region39: #{_lambda_.1} parent=11 // pred_region
        _
      $region40: #{_lambda_.1} parent=11 // pred_fallthru
        _
      // Predicated region
      $region41: #{_lambda_.1} parent=11 // pred_check
        %p447 = pneg %p217
      $region42: #{_lambda_.1} parent=11 // pred_check_branch
        %449 = sbr.rel (%p447) target = $region44
      $region43: #{_lambda_.1} parent=11 // pred_region
        _
      $region44: #{_lambda_.1} parent=11 // pred_fallthru
        _
      // Predicated region
      $region45: #{_lambda_.1} parent=11 // pred_check
        %p450 = pneg %p238
      $region46: #{_lambda_.1} parent=11 // pred_check_branch
        %452 = sbr.rel (%p450) target = $region48
      $region47: #{_lambda_.1} parent=11 // pred_region
        _
      $region48: #{_lambda_.1} parent=11 // pred_fallthru
        _
      // Predicated region
      $region49: #{_lambda_.1} parent=11 // pred_check
        %p453 = pneg %p259
      $region50: #{_lambda_.1} parent=11 // pred_check_branch
        %455 = sbr.rel (%p453) target = $region52
      $region51: #{_lambda_.1} parent=11 // pred_region
        _
      $region52: #{_lambda_.1} parent=11 // pred_fallthru
        _
      // Predicated region
      $region53: #{_lambda_.1} parent=11 // pred_check
        %p456 = pneg %p280
      $region54: #{_lambda_.1} parent=11 // pred_check_branch
        %458 = sbr.rel (%p456) target = $region56
      $region55: #{_lambda_.1} parent=11 // pred_region
        _
      $region56: #{_lambda_.1} parent=11 // pred_fallthru
        _
      // Predicated region
      $region57: #{_lambda_.1} parent=11 // pred_check
        %p459 = pneg %p301
      $region58: #{_lambda_.1} parent=11 // pred_check_branch
        %461 = sbr.rel (%p459) target = $region60
      $region59: #{_lambda_.1} parent=11 // pred_region
        _
      $region60: #{_lambda_.1} parent=11 // pred_fallthru
        _
      // Predicated region
      $region61: #{_lambda_.1} parent=11 // pred_check
        %p462 = pneg %p322
      $region62: #{_lambda_.1} parent=11 // pred_check_branch
        %464 = sbr.rel (%p462) target = $region64
      $region63: #{_lambda_.1} parent=11 // pred_region
        _
      $region64: #{_lambda_.1} parent=11 // pred_fallthru
        _
      // Predicated region
      $region65: #{_lambda_.1} parent=11 // pred_check
        %p465 = pneg %p343
      $region66: #{_lambda_.1} parent=11 // pred_check_branch
        %467 = sbr.rel (%p465) target = $region68
      $region67: #{_lambda_.1} parent=11 // pred_region
        _
      $region68: #{_lambda_.1} parent=11 // pred_fallthru
        _
      // Predicated region
      $region69: #{_lambda_.1} parent=11 // pred_check
        %p468 = pneg %p364
      $region70: #{_lambda_.1} parent=11 // pred_check_branch
        %470 = sbr.rel (%p468) target = $region72
      $region71: #{_lambda_.1} parent=11 // pred_region
        _
      $region72: #{_lambda_.1} parent=11 // pred_fallthru
        _
      // Predicated region
      $region73: #{_lambda_.1} parent=11 // pred_check
        %p471 = pneg %p385
      $region74: #{_lambda_.1} parent=11 // pred_check_branch
        %473 = sbr.rel (%p471) target = $region76
      $region75: #{_lambda_.1} parent=11 // pred_region
        _
      $region76: #{_lambda_.1} parent=11 // pred_fallthru
        _
    $region12: #{_lambda_.1} parent=5 // pred_fallthru
      _
    %p474 = scmp.lt.s32.totalorder %s23, 2
    // Predicated region
    $region77: #{_lambda_.1} parent=5 // pred_check
      %p475 = pneg %p474
    $region78: #{_lambda_.1} parent=5 // pred_check_branch
      %477 = sbr.rel (%p475) target = $region80
    $region79: #{_lambda_.1} parent=5 // pred_region
      // Predicated region
      $region81: #{_lambda_.1} parent=79 // pred_check
        %p478 = pneg %p43
      $region82: #{_lambda_.1} parent=79 // pred_check_branch
        %480 = sbr.rel (%p478) target = $region84
      $region83: #{_lambda_.1} parent=79 // pred_region
        %p481 = scmp.lt.s32.totalorder %s23, 1
        %s482 = scalar_select %p481, %s23, 1
        %s483 = smul.addr %s482, 3
        %s484 = smul.addr %s483, 8
        %s485 = scalar_lea.vmem %s0, %s484
      $region84: #{_lambda_.1} parent=79 // pred_fallthru
        _
    $region80: #{_lambda_.1} parent=5 // pred_fallthru
      _
    %p486 = scmp.le.s32.totalorder 1, %s23
    %p487 = scmp.lt.s32.totalorder %s23, 3
    %p488 = pnand %p486, %p487
    %p489 = pneg %p488
    // Predicated region
    $region85: #{_lambda_.1} parent=5 // pred_check
      _
    $region86: #{_lambda_.1} parent=5 // pred_check_branch
      %491 = sbr.rel (%p488) target = $region88
    $region87: #{_lambda_.1} parent=5 // pred_region
      %s492 = ssub.s32 %s23, 1
      %p493 = scmp.lt.s32.totalorder %s28, 1
      %s494 = scalar_select %p493, %s28, 1
      %s495 = smul.addr %s494, 3
      %s496 = smul.addr %s495, 8
      %s497 = scalar_lea.vmem %s0, %s496
      %p498 = pneg %p49
      %p499 = pneg %p46
      %p500 = pneg %p70
      %p501 = pneg %p67
      %p502 = pneg %p91
      %p503 = pneg %p88
      %p504 = pneg %p112
      %p505 = pneg %p109
      %p506 = pneg %p133
      %p507 = pneg %p130
      %p508 = pneg %p154
      %p509 = pneg %p151
      %p510 = pneg %p175
      %p511 = pneg %p172
      %p512 = pneg %p196
      %p513 = pneg %p193
      %p514 = pneg %p217
      %p515 = pneg %p214
      %p516 = pneg %p238
      %p517 = pneg %p235
      %p518 = pneg %p259
      %p519 = pneg %p256
      %p520 = pneg %p280
      %p521 = pneg %p277
      %p522 = pneg %p301
      %p523 = pneg %p298
      %p524 = pneg %p322
      %p525 = pneg %p319
      %p526 = pneg %p343
      %p527 = pneg %p340
      %p528 = pneg %p364
      %p529 = pneg %p361
      %p530 = pneg %p385
      %p531 = pneg %p382
      %p532 = pneg %p411
      %p533 = pneg %p408
      %p534 = scmp.lt.s32.totalorder %s28, 1
      %s535 = scalar_select %p534, %s28, 1
      %s536 = smul.addr %s535, 8
      %s537 = scalar_lea.vmem %s17, %s536
      %p538 = scmp.lt.s32.totalorder %s28, 1
      %s539 = scalar_select %p538, %s28, 1
      %s540 = smul.addr %s539, 3
      %s541 = smul.addr %s540, 8
      %s542 = scalar_lea.vmem %s0, %s541
      %p543 = scmp.lt.s32.totalorder %s28, 1
      %s544 = scalar_select %p543, %s28, 1
      %s545 = smul.addr %s544, 8
      %s546 = scalar_lea.vmem %s17, %s545
      %v548 = vld [vmem:[%s542] sm:$0xff]
      %v549 = vld [vmem:[%s542 + $0x8] sm:$0xff]
      %v550 = vld [vmem:[%s542 + $0x10] sm:$0xff]
      %v551 = vld [vmem:[%s1] sm:$0x1]
      %v552 = vld [vmem:[%s2] sm:$0x1]
      %vm553 = vcmask 261120
      %v554 = vsel %vm553, %v548, 0.0
      %555 = vadd.xlane.f32.xlu0 %v554
      %v556 = vpop.xlane.xlu0 %555
      %v557 = vsel %vm553, %v549, 0.0
      %558 = vadd.xlane.f32.xlu0 %v557
      %v559 = vpop.xlane.xlu0 %558
      %v560 = vsel %vm553, %v550, 0.0
      %561 = vadd.xlane.f32.xlu0 %v560
      %v562 = vpop.xlane.xlu0 %561
      %v563 = vrcp.pop 32.0
      %v564 = vmul.f32 %v556, %v563
      %v565 = vmul.f32 %v559, %v563
      %v566 = vmul.f32 %v562, %v563
      %v567 = vmul.f32 %v548, %v548
      %v568 = vmul.f32 %v549, %v549
      %v569 = vmul.f32 %v550, %v550
      %v570 = vsel %vm553, %v567, 0.0
      %571 = vadd.xlane.f32.xlu0 %v570
      %v572 = vpop.xlane.xlu0 %571
      %v573 = vsel %vm553, %v568, 0.0
      %574 = vadd.xlane.f32.xlu0 %v573
      %v575 = vpop.xlane.xlu0 %574
      %v576 = vsel %vm553, %v569, 0.0
      %577 = vadd.xlane.f32.xlu0 %v576
      %v578 = vpop.xlane.xlu0 %577
      %v579 = vmul.f32 %v572, %v563
      %v580 = vmul.f32 %v575, %v563
      %v581 = vmul.f32 %v578, %v563
      %v582 = vmul.f32 %v564, %v564
      %v583 = vmul.f32 %v565, %v565
      %v584 = vmul.f32 %v566, %v566
      %v585 = vsub.f32 %v579, %v582
      %v586 = vsub.f32 %v580, %v583
      %v587 = vsub.f32 %v581, %v584
      %v588 = vmax.f32 %v585, 0.0
      %v589 = vmax.f32 %v586, 0.0
      %v590 = vmax.f32 %v587, 0.0
      %v591 = vsub.f32 %v548, %v564
      %v592 = vsub.f32 %v549, %v565
      %v593 = vsub.f32 %v550, %v566
      %v594 = vadd.f32 %v588, 1e-05
      %v595 = vadd.f32 %v589, 1e-05
      %v596 = vadd.f32 %v590, 1e-05
      %v597 = vrsqrt.pop %v594
      %v598 = vrsqrt.pop %v595
      %v599 = vrsqrt.pop %v596
      %v600 = vmul.f32 %v591, %v597
      %v601 = vmul.f32 %v592, %v598
      %v602 = vmul.f32 %v593, %v599
      %v604 = vlaneseq
      %v605 = vshrl.u32 %v604, 7
      %v606 = vsub.s32 0, %v605
      %v607 = vrot.slane %v551, %v606
      %v609 = vmul.f32 %v600, %v607
      %v610 = vmul.f32 %v601, %v607
      %v611 = vmul.f32 %v602, %v607
      %v613 = vlaneseq
      %v614 = vshrl.u32 %v613, 7
      %v615 = vsub.s32 0, %v614
      %v616 = vrot.slane %v552, %v615
      %v618 = vadd.f32 %v609, %v616
      %v619 = vadd.f32 %v610, %v616
      %v620 = vadd.f32 %v611, %v616
      %v621 = vlaneseq
      %v622 = vshrl.u32 %v621, 7
      %v623 = vadd.s32 %v622, 8
      %v624 = vadd.s32 %v622, 16
      %v625 = vlaneseq
      %v626 = vand.u32 %v625, 127
      %vm627 = vcmp.le.s32.totalorder %v626, %v622
      %vm628 = vcmp.le.s32.totalorder %v626, %v623
      %vm629 = vcmp.le.s32.totalorder %v626, %v624
      %v630 = vsel %vm627, 0.0, -1e+30
      %v631 = vsel %vm628, 0.0, -1e+30
      %v632 = vsel %vm629, 0.0, -1e+30
      %v633 = vpack.c.bf16 %v619, %v618
      %v634 = vpack.c.bf16 %v620, %v620
      %v635 = vld [vmem:[%s3] sm:$0xf]
      %v636 = vld [vmem:[%s3 + $0x4] sm:$0xf]
      %v637 = vld [vmem:[%s3 + $0x8] sm:$0xf]
      %v638 = vld [vmem:[%s3 + $0xc] sm:$0xf]
      %v639 = vld [vmem:[%s4] sm:$0x1]
      %v641 = vlaneseq
      %v642 = vshrl.u32 %v641, 7
      %v643 = vsub.s32 0, %v642
      %v644 = vrot.slane %v639, %v643
      %v650 = vunpack.c.l.b16 %v635
      %v651 = vunpack.c.l.b16 %v636
      %v652 = vunpack.c.l.b16 %v637
      %v653 = vunpack.c.l.b16 %v638
      %v654 = vpack.c.b16 %v651, %v650
      %v655 = vpack.c.b16 %v653, %v652
      %v659 = vsel %vm553, %v633, 0
      %v662 = vsel %vm553, %v634, 0
      %664 = vmatprep.subr.bf16.mxu0 0
      %665 = vmatpush1.bf16.msra.mxu0 %v654
      %666 = vmatprep.subr.bf16.mxu0 0
      %667 = vmatpush1.bf16.msra.mxu0 %v655
      %668 = vmatprep.subr.bf16.mxu0 0
      %669 = vmatpush1.bf16.msra.mxu0 0
      %670 = vmatprep.subr.bf16.mxu0 0
      %671 = vmatpush1.bf16.msra.mxu0 0
      %672 = vmatprep.subr.bf16.mxu0 0
      %673 = vmatpush1.bf16.msra.mxu0 0
      %674 = vmatprep.subr.bf16.mxu0 0
      %675 = vmatpush1.bf16.msra.mxu0 0
      %676 = vmatprep.subr.bf16.mxu0 0
      %677 = vmatpush1.bf16.msra.mxu0 0
      %678 = vmatprep.subr.bf16.mxu0 0
      %679 = vmatpush1.bf16.msra.mxu0 0
      %680 = vmatprep.subr.bf16.mxu0 0
      %681 = vmatpush1.bf16.msra.mxu0 0
      %682 = vmatprep.subr.bf16.mxu0 0
      %683 = vmatpush1.bf16.msra.mxu0 0
      %684 = vmatprep.subr.bf16.mxu0 0
      %685 = vmatpush1.bf16.msra.mxu0 0
      %686 = vmatprep.subr.bf16.mxu0 0
      %687 = vmatpush1.bf16.msra.mxu0 0
      %688 = vmatprep.subr.bf16.mxu0 0
      %689 = vmatpush1.bf16.msra.mxu0 0
      %690 = vmatprep.subr.bf16.mxu0 0
      %691 = vmatpush1.bf16.msra.mxu0 0
      %692 = vmatprep.subr.bf16.mxu0 0
      %693 = vmatpush1.bf16.msra.mxu0 0
      %694 = vmatprep.subr.bf16.mxu0 0
      %695 = vmatpush1.bf16.msra.mxu0 0
      %696 = vmatprep.mubr.bf16.mxu0 0
      %697 = vmatmul.mubr.bf16.gmra.mrb[0].mxu0 %v659
      %v698 = vpop.f32.mrb[0].mxu0
      %v699 = vadd.f32 %v644, %v698
      %v700 = vpop.f32.mrb[0].mxu0
      %v701 = vpop.f32.mrb[0].mxu0
      %v702 = vadd.f32 %v644, %v701
      %v703 = vpop.f32.mrb[0].mxu0
      %704 = vmatprep.mubr.bf16.mxu0 0
      %705 = vmatmul.mubr.bf16.gmra.mrb[0].mxu0 %v662
      %v706 = vpop.f32.mrb[0].mxu0
      %v707 = vadd.f32 %v644, %v706
      %v708 = vpop.f32.mrb[0].mxu0
      %v709 = vpop.f32.mrb[0].mxu0
      %v710 = vpop.f32.mrb[0].mxu0
      %711 = vdwg.mxu0
      %715 = vrot.lane.b32.xlu0 %v699, 112
      %v716 = vpop.permute.xlu0 %715
      %717 = vrot.lane.b32.xlu0 %v702, 112
      %v718 = vpop.permute.xlu0 %717
      %719 = vrot.lane.b32.xlu0 %v707, 112
      %v720 = vpop.permute.xlu0 %719
      %v724 = vpack.c.bf16 %v702, %v699
      %v725 = vpack.c.bf16 %v707, %v707
      %v726 = vpack.c.bf16 %v718, %v716
      %v727 = vpack.c.bf16 %v720, %v720
      %730 = vrot.lane.b32.xlu0 %v724, 96
      %v731 = vpop.permute.xlu0 %730
      %732 = vrot.lane.b32.xlu0 %v725, 96
      %v733 = vpop.permute.xlu0 %732
      %vm734 = vcmask 130048
      %v736 = vsel %vm734, %v724, 0
      %v739 = vsel %vm734, %v725, 0
      %v742 = vsel %vm734, %v731, 0
      %v745 = vsel %vm734, %v733, 0
      %747 = vmatprep.subr.bf16.mxu0 0
      %748 = vmatpush1.bf16.xpose.msra.mxu0 %v742
      %749 = vmatprep.subr.bf16.mxu0 0
      %750 = vmatpush1.bf16.xpose.msra.mxu0 %v745
      %751 = vmatprep.subr.bf16.mxu0 0
      %752 = vmatpush1.bf16.xpose.msra.mxu0 0
      %753 = vmatprep.subr.bf16.mxu0 0
      %754 = vmatpush1.bf16.xpose.msra.mxu0 0
      %755 = vmatprep.subr.bf16.mxu0 0
      %756 = vmatpush1.bf16.xpose.msra.mxu0 0
      %757 = vmatprep.subr.bf16.mxu0 0
      %758 = vmatpush1.bf16.xpose.msra.mxu0 0
      %759 = vmatprep.subr.bf16.mxu0 0
      %760 = vmatpush1.bf16.xpose.msra.mxu0 0
      %761 = vmatprep.subr.bf16.mxu0 0
      %762 = vmatpush1.bf16.xpose.msra.mxu0 0
      %763 = vmatprep.subr.bf16.mxu0 0
      %764 = vmatpush1.bf16.xpose.msra.mxu0 0
      %765 = vmatprep.subr.bf16.mxu0 0
      %766 = vmatpush1.bf16.xpose.msra.mxu0 0
      %767 = vmatprep.subr.bf16.mxu0 0
      %768 = vmatpush1.bf16.xpose.msra.mxu0 0
      %769 = vmatprep.subr.bf16.mxu0 0
      %770 = vmatpush1.bf16.xpose.msra.mxu0 0
      %771 = vmatprep.subr.bf16.mxu0 0
      %772 = vmatpush1.bf16.xpose.msra.mxu0 0
      %773 = vmatprep.subr.bf16.mxu0 0
      %774 = vmatpush1.bf16.xpose.msra.mxu0 0
      %775 = vmatprep.subr.bf16.mxu0 0
      %776 = vmatpush1.bf16.xpose.msra.mxu0 0
      %777 = vmatprep.subr.bf16.mxu0 0
      %778 = vmatpush1.bf16.xpose.msra.mxu0 0
      %779 = vmatprep.mubr.bf16.mxu0 0
      %780 = vmatmul.mubr.bf16.gmra.mrb[0].mxu0 %v736
      %v781 = vpop.f32.mrb[0].mxu0
      %v782 = vadd.f32 0.0, %v781
      %v783 = vpop.f32.mrb[0].mxu0
      %v784 = vpop.f32.mrb[0].mxu0
      %v785 = vadd.f32 0.0, %v784
      %v786 = vpop.f32.mrb[0].mxu0
      %787 = vmatprep.mubr.bf16.mxu0 0
      %788 = vmatmul.mubr.bf16.gmra.mrb[0].mxu0 %v739
      %v789 = vpop.f32.mrb[0].mxu0
      %v790 = vadd.f32 0.0, %v789
      %v791 = vpop.f32.mrb[0].mxu0
      %v792 = vpop.f32.mrb[0].mxu0
      %v793 = vpop.f32.mrb[0].mxu0
      %794 = vdwg.mxu0
      %797 = vrot.lane.b32.xlu0 %v726, 96
      %v798 = vpop.permute.xlu0 %797
      %799 = vrot.lane.b32.xlu0 %v727, 96
      %v800 = vpop.permute.xlu0 %799
      %v802 = vsel %vm734, %v726, 0
      %v805 = vsel %vm734, %v727, 0
      %v808 = vsel %vm734, %v798, 0
      %v811 = vsel %vm734, %v800, 0
      %813 = vmatprep.subr.bf16.mxu0 0
      %814 = vmatpush1.bf16.xpose.msra.mxu0 %v808
      %815 = vmatprep.subr.bf16.mxu0 0
      %816 = vmatpush1.bf16.xpose.msra.mxu0 %v811
      %817 = vmatprep.subr.bf16.mxu0 0
      %818 = vmatpush1.bf16.xpose.msra.mxu0 0
      %819 = vmatprep.subr.bf16.mxu0 0
      %820 = vmatpush1.bf16.xpose.msra.mxu0 0
      %821 = vmatprep.subr.bf16.mxu0 0
      %822 = vmatpush1.bf16.xpose.msra.mxu0 0
      %823 = vmatprep.subr.bf16.mxu0 0
      %824 = vmatpush1.bf16.xpose.msra.mxu0 0
      %825 = vmatprep.subr.bf16.mxu0 0
      %826 = vmatpush1.bf16.xpose.msra.mxu0 0
      %827 = vmatprep.subr.bf16.mxu0 0
      %828 = vmatpush1.bf16.xpose.msra.mxu0 0
      %829 = vmatprep.subr.bf16.mxu0 0
      %830 = vmatpush1.bf16.xpose.msra.mxu0 0
      %831 = vmatprep.subr.bf16.mxu0 0
      %832 = vmatpush1.bf16.xpose.msra.mxu0 0
      %833 = vmatprep.subr.bf16.mxu0 0
      %834 = vmatpush1.bf16.xpose.msra.mxu0 0
      %835 = vmatprep.subr.bf16.mxu0 0
      %836 = vmatpush1.bf16.xpose.msra.mxu0 0
      %837 = vmatprep.subr.bf16.mxu0 0
      %838 = vmatpush1.bf16.xpose.msra.mxu0 0
      %839 = vmatprep.subr.bf16.mxu0 0
      %840 = vmatpush1.bf16.xpose.msra.mxu0 0
      %841 = vmatprep.subr.bf16.mxu0 0
      %842 = vmatpush1.bf16.xpose.msra.mxu0 0
      %843 = vmatprep.subr.bf16.mxu0 0
      %844 = vmatpush1.bf16.xpose.msra.mxu0 0
      %845 = vmatprep.mubr.bf16.mxu0 0
      %846 = vmatmul.mubr.bf16.gmra.mrb[0].mxu0 %v802
      %v847 = vpop.f32.mrb[0].mxu0
      %v848 = vadd.f32 0.0, %v847
      %v849 = vpop.f32.mrb[0].mxu0
      %v850 = vpop.f32.mrb[0].mxu0
      %v851 = vadd.f32 0.0, %v850
      %v852 = vpop.f32.mrb[0].mxu0
      %853 = vmatprep.mubr.bf16.mxu0 0
      %854 = vmatmul.mubr.bf16.gmra.mrb[0].mxu0 %v805
      %v855 = vpop.f32.mrb[0].mxu0
      %v856 = vadd.f32 0.0, %v855
      %v857 = vpop.f32.mrb[0].mxu0
      %v858 = vpop.f32.mrb[0].mxu0
      %v859 = vpop.f32.mrb[0].mxu0
      %860 = vdwg.mxu0
      %v861 = vmul.f32 %v782, 0.25
      %v862 = vmul.f32 %v785, 0.25
      %v863 = vmul.f32 %v790, 0.25
      %v864 = vmul.f32 %v848, 0.25
      %v865 = vmul.f32 %v851, 0.25
      %v866 = vmul.f32 %v856, 0.25
      %v867 = vadd.f32 %v861, %v630
      %v868 = vadd.f32 %v862, %v631
      %v869 = vadd.f32 %v863, %v632
      %v870 = vadd.f32 %v864, %v630
      %v871 = vadd.f32 %v865, %v631
      %v872 = vadd.f32 %v866, %v632
      %vm873 = vcmask 195584
      %v874 = vsel %vm873, %v867, -inf
      %875 = vmax.xlane.f32.xlu0 %v874
      %v876 = vpop.xlane.xlu0 %875
      %v877 = vsel %vm873, %v868, -inf
      %878 = vmax.xlane.f32.xlu0 %v877
      %v879 = vpop.xlane.xlu0 %878
      %v880 = vsel %vm873, %v869, -inf
      %881 = vmax.xlane.f32.xlu0 %v880
      %v882 = vpop.xlane.xlu0 %881
      %v883 = vsel %vm873, %v870, -inf
      %884 = vmax.xlane.f32.xlu0 %v883
      %v885 = vpop.xlane.xlu0 %884
      %v886 = vsel %vm873, %v871, -inf
      %887 = vmax.xlane.f32.xlu0 %v886
      %v888 = vpop.xlane.xlu0 %887
      %v889 = vsel %vm873, %v872, -inf
      %890 = vmax.xlane.f32.xlu0 %v889
      %v891 = vpop.xlane.xlu0 %890
      %v892 = vsub.f32 %v867, %v876
      %v893 = vsub.f32 %v868, %v879
      %v894 = vsub.f32 %v869, %v882
      %v895 = vsub.f32 %v870, %v885
      %v896 = vsub.f32 %v871, %v888
      %v897 = vsub.f32 %v872, %v891
      %v898 = vmul.f32 %v892, 1.442695
      %v899 = vpow.pop %v898
      %v900 = vmul.f32 %v893, 1.442695
      %v901 = vpow.pop %v900
      %v902 = vmul.f32 %v894, 1.442695
      %v903 = vpow.pop %v902
      %v904 = vmul.f32 %v895, 1.442695
      %v905 = vpow.pop %v904
      %v906 = vmul.f32 %v896, 1.442695
      %v907 = vpow.pop %v906
      %v908 = vmul.f32 %v897, 1.442695
      %v909 = vpow.pop %v908
      %v910 = vsel %vm873, %v899, 0.0
      %911 = vadd.xlane.f32.xlu0 %v910
      %v912 = vpop.xlane.xlu0 %911
      %v913 = vsel %vm873, %v901, 0.0
      %914 = vadd.xlane.f32.xlu0 %v913
      %v915 = vpop.xlane.xlu0 %914
      %v916 = vsel %vm873, %v903, 0.0
      %917 = vadd.xlane.f32.xlu0 %v916
      %v918 = vpop.xlane.xlu0 %917
      %v919 = vsel %vm873, %v905, 0.0
      %920 = vadd.xlane.f32.xlu0 %v919
      %v921 = vpop.xlane.xlu0 %920
      %v922 = vsel %vm873, %v907, 0.0
      %923 = vadd.xlane.f32.xlu0 %v922
      %v924 = vpop.xlane.xlu0 %923
      %v925 = vsel %vm873, %v909, 0.0
      %926 = vadd.xlane.f32.xlu0 %v925
      %v927 = vpop.xlane.xlu0 %926
      %v928 = vrcp.pop %v912
      %v929 = vrcp.pop %v915
      %v930 = vrcp.pop %v918
      %v931 = vrcp.pop %v921
      %v932 = vrcp.pop %v924
      %v933 = vrcp.pop %v927
      %v934 = vmul.f32 %v899, %v928
      %v935 = vmul.f32 %v901, %v929
      %v936 = vmul.f32 %v903, %v930
      %v937 = vmul.f32 %v905, %v931
      %v938 = vmul.f32 %v907, %v932
      %v939 = vmul.f32 %v909, %v933
      %v940 = vpack.c.bf16 %v935, %v934
      %v941 = vpack.c.bf16 %v936, %v936
      %v942 = vpack.c.bf16 %v938, %v937
      %v943 = vpack.c.bf16 %v939, %v939
      %944 = vrot.lane.b32.xlu0 %v724, 64
      %v945 = vpop.permute.xlu0 %944
      %946 = vrot.lane.b32.xlu0 %v725, 64
      %v947 = vpop.permute.xlu0 %946
      %v950 = vsel %vm873, %v940, 0
      %v953 = vsel %vm873, %v941, 0
      %vm955 = vcmask 1043456
      %v957 = vsel %vm955, %v947, 0
      %959 = vmatprep.subr.bf16.mxu0 0
      %960 = vmatpush1.bf16.msra.mxu0 %v945
      %961 = vmatprep.subr.bf16.mxu0 0
      %962 = vmatpush1.bf16.msra.mxu0 %v957
      %963 = vmatprep.subr.bf16.mxu0 0
      %964 = vmatpush1.bf16.msra.mxu0 0
      %965 = vmatprep.subr.bf16.mxu0 0
      %966 = vmatpush1.bf16.msra.mxu0 0
      %967 = vmatprep.subr.bf16.mxu0 0
      %968 = vmatpush1.bf16.msra.mxu0 0
      %969 = vmatprep.subr.bf16.mxu0 0
      %970 = vmatpush1.bf16.msra.mxu0 0
      %971 = vmatprep.subr.bf16.mxu0 0
      %972 = vmatpush1.bf16.msra.mxu0 0
      %973 = vmatprep.subr.bf16.mxu0 0
      %974 = vmatpush1.bf16.msra.mxu0 0
      %975 = vmatprep.subr.bf16.mxu0 0
      %976 = vmatpush1.bf16.msra.mxu0 0
      %977 = vmatprep.subr.bf16.mxu0 0
      %978 = vmatpush1.bf16.msra.mxu0 0
      %979 = vmatprep.subr.bf16.mxu0 0
      %980 = vmatpush1.bf16.msra.mxu0 0
      %981 = vmatprep.subr.bf16.mxu0 0
      %982 = vmatpush1.bf16.msra.mxu0 0
      %983 = vmatprep.subr.bf16.mxu0 0
      %984 = vmatpush1.bf16.msra.mxu0 0
      %985 = vmatprep.subr.bf16.mxu0 0
      %986 = vmatpush1.bf16.msra.mxu0 0
      %987 = vmatprep.subr.bf16.mxu0 0
      %988 = vmatpush1.bf16.msra.mxu0 0
      %989 = vmatprep.subr.bf16.mxu0 0
      %990 = vmatpush1.bf16.msra.mxu0 0
      %991 = vmatprep.mubr.bf16.mxu0 0
      %992 = vmatmul.mubr.bf16.gmra.mrb[0].mxu0 %v950
      %v993 = vpop.f32.mrb[0].mxu0
      %v994 = vadd.f32 0.0, %v993
      %v995 = vpop.f32.mrb[0].mxu0
      %v996 = vpop.f32.mrb[0].mxu0
      %v997 = vadd.f32 0.0, %v996
      %v998 = vpop.f32.mrb[0].mxu0
      %999 = vmatprep.mubr.bf16.mxu0 0
      %1000 = vmatmul.mubr.bf16.gmra.mrb[0].mxu0 %v953
      %v1001 = vpop.f32.mrb[0].mxu0
      %v1002 = vadd.f32 0.0, %v1001
      %v1003 = vpop.f32.mrb[0].mxu0
      %v1004 = vpop.f32.mrb[0].mxu0
      %v1005 = vpop.f32.mrb[0].mxu0
      %1006 = vdwg.mxu0
      %1007 = vrot.lane.b32.xlu0 %v726, 64
      %v1008 = vpop.permute.xlu0 %1007
      %1009 = vrot.lane.b32.xlu0 %v727, 64
      %v1010 = vpop.permute.xlu0 %1009
      %v1013 = vsel %vm873, %v942, 0
      %v1016 = vsel %vm873, %v943, 0
      %v1019 = vsel %vm955, %v1010, 0
      %1021 = vmatprep.subr.bf16.mxu0 0
      %1022 = vmatpush1.bf16.msra.mxu0 %v1008
      %1023 = vmatprep.subr.bf16.mxu0 0
      %1024 = vmatpush1.bf16.msra.mxu0 %v1019
      %1025 = vmatprep.subr.bf16.mxu0 0
      %1026 = vmatpush1.bf16.msra.mxu0 0
      %1027 = vmatprep.subr.bf16.mxu0 0
      %1028 = vmatpush1.bf16.msra.mxu0 0
      %1029 = vmatprep.subr.bf16.mxu0 0
      %1030 = vmatpush1.bf16.msra.mxu0 0
      %1031 = vmatprep.subr.bf16.mxu0 0
      %1032 = vmatpush1.bf16.msra.mxu0 0
      %1033 = vmatprep.subr.bf16.mxu0 0
      %1034 = vmatpush1.bf16.msra.mxu0 0
      %1035 = vmatprep.subr.bf16.mxu0 0
      %1036 = vmatpush1.bf16.msra.mxu0 0
      %1037 = vmatprep.subr.bf16.mxu0 0
      %1038 = vmatpush1.bf16.msra.mxu0 0
      %1039 = vmatprep.subr.bf16.mxu0 0
      %1040 = vmatpush1.bf16.msra.mxu0 0
      %1041 = vmatprep.subr.bf16.mxu0 0
      %1042 = vmatpush1.bf16.msra.mxu0 0
      %1043 = vmatprep.subr.bf16.mxu0 0
      %1044 = vmatpush1.bf16.msra.mxu0 0
      %1045 = vmatprep.subr.bf16.mxu0 0
      %1046 = vmatpush1.bf16.msra.mxu0 0
      %1047 = vmatprep.subr.bf16.mxu0 0
      %1048 = vmatpush1.bf16.msra.mxu0 0
      %1049 = vmatprep.subr.bf16.mxu0 0
      %1050 = vmatpush1.bf16.msra.mxu0 0
      %1051 = vmatprep.subr.bf16.mxu0 0
      %1052 = vmatpush1.bf16.msra.mxu0 0
      %1053 = vmatprep.mubr.bf16.mxu0 0
      %1054 = vmatmul.mubr.bf16.gmra.mrb[0].mxu0 %v1013
      %v1055 = vpop.f32.mrb[0].mxu0
      %v1056 = vadd.f32 0.0, %v1055
      %v1057 = vpop.f32.mrb[0].mxu0
      %v1058 = vpop.f32.mrb[0].mxu0
      %v1059 = vadd.f32 0.0, %v1058
      %v1060 = vpop.f32.mrb[0].mxu0
      %1061 = vmatprep.mubr.bf16.mxu0 0
      %1062 = vmatmul.mubr.bf16.gmra.mrb[0].mxu0 %v1016
      %v1063 = vpop.f32.mrb[0].mxu0
      %v1064 = vadd.f32 0.0, %v1063
      %v1065 = vpop.f32.mrb[0].mxu0
      %v1066 = vpop.f32.mrb[0].mxu0
      %v1067 = vpop.f32.mrb[0].mxu0
      %1068 = vdwg.mxu0
      %1072 = vrot.lane.b32.xlu0 %v1056, 16
      %v1073 = vpop.permute.xlu0 %1072
      %1074 = vrot.lane.b32.xlu0 %v1059, 16
      %v1075 = vpop.permute.xlu0 %1074
      %1076 = vrot.lane.b32.xlu0 %v1064, 16
      %v1077 = vpop.permute.xlu0 %1076
      %v1081 = vsel %vm734, %v994, %v1073
      %v1082 = vsel %vm734, %v997, %v1075
      %v1083 = vsel %vm734, %v1002, %v1077
      %v1084 = vpack.c.bf16 %v1082, %v1081
      %v1085 = vpack.c.bf16 %v1083, %v1083
      %v1086 = vld [vmem:[%s5] sm:$0xf]
      %v1087 = vld [vmem:[%s5 + $0x4] sm:$0xf]
      %v1088 = vld [vmem:[%s5 + $0x8] sm:$0xf]
      %v1089 = vld [vmem:[%s5 + $0xc] sm:$0xf]
      %v1090 = vld [vmem:[%s6] sm:$0x1]
      %v1092 = vlaneseq
      %v1093 = vshrl.u32 %v1092, 7
      %v1094 = vsub.s32 0, %v1093
      %v1095 = vrot.slane %v1090, %v1094
      %v1101 = vunpack.c.l.b16 %v1086
      %v1102 = vunpack.c.l.b16 %v1087
      %v1103 = vunpack.c.l.b16 %v1088
      %v1104 = vunpack.c.l.b16 %v1089
      %v1105 = vpack.c.b16 %v1102, %v1101
      %v1106 = vpack.c.b16 %v1104, %v1103
      %v1110 = vsel %vm553, %v1084, 0
      %v1113 = vsel %vm553, %v1085, 0
      %1115 = vmatprep.subr.bf16.mxu0 0
      %1116 = vmatpush1.bf16.msra.mxu0 %v1105
      %1117 = vmatprep.subr.bf16.mxu0 0
      %1118 = vmatpush1.bf16.msra.mxu0 %v1106
      %1119 = vmatprep.subr.bf16.mxu0 0
      %1120 = vmatpush1.bf16.msra.mxu0 0
      %1121 = vmatprep.subr.bf16.mxu0 0
      %1122 = vmatpush1.bf16.msra.mxu0 0
      %1123 = vmatprep.subr.bf16.mxu0 0
      %1124 = vmatpush1.bf16.msra.mxu0 0
      %1125 = vmatprep.subr.bf16.mxu0 0
      %1126 = vmatpush1.bf16.msra.mxu0 0
      %1127 = vmatprep.subr.bf16.mxu0 0
      %1128 = vmatpush1.bf16.msra.mxu0 0
      %1129 = vmatprep.subr.bf16.mxu0 0
      %1130 = vmatpush1.bf16.msra.mxu0 0
      %1131 = vmatprep.subr.bf16.mxu0 0
      %1132 = vmatpush1.bf16.msra.mxu0 0
      %1133 = vmatprep.subr.bf16.mxu0 0
      %1134 = vmatpush1.bf16.msra.mxu0 0
      %1135 = vmatprep.subr.bf16.mxu0 0
      %1136 = vmatpush1.bf16.msra.mxu0 0
      %1137 = vmatprep.subr.bf16.mxu0 0
      %1138 = vmatpush1.bf16.msra.mxu0 0
      %1139 = vmatprep.subr.bf16.mxu0 0
      %1140 = vmatpush1.bf16.msra.mxu0 0
      %1141 = vmatprep.subr.bf16.mxu0 0
      %1142 = vmatpush1.bf16.msra.mxu0 0
      %1143 = vmatprep.subr.bf16.mxu0 0
      %1144 = vmatpush1.bf16.msra.mxu0 0
      %1145 = vmatprep.subr.bf16.mxu0 0
      %1146 = vmatpush1.bf16.msra.mxu0 0
      %1147 = vmatprep.mubr.bf16.mxu0 0
      %1148 = vmatmul.mubr.bf16.gmra.mrb[0].mxu0 %v1110
      %v1149 = vpop.f32.mrb[0].mxu0
      %v1150 = vadd.f32 %v1095, %v1149
      %v1151 = vpop.f32.mrb[0].mxu0
      %v1152 = vpop.f32.mrb[0].mxu0
      %v1153 = vadd.f32 %v1095, %v1152
      %v1154 = vpop.f32.mrb[0].mxu0
      %1155 = vmatprep.mubr.bf16.mxu0 0
      %1156 = vmatmul.mubr.bf16.gmra.mrb[0].mxu0 %v1113
      %v1157 = vpop.f32.mrb[0].mxu0
      %v1158 = vadd.f32 %v1095, %v1157
      %v1159 = vpop.f32.mrb[0].mxu0
      %v1160 = vpop.f32.mrb[0].mxu0
      %v1161 = vpop.f32.mrb[0].mxu0
      %1162 = vdwg.mxu0
      %v1163 = vadd.f32 %v618, %v1150
      %v1164 = vadd.f32 %v619, %v1153
      %v1165 = vadd.f32 %v620, %v1158
      %v1166 = vld [vmem:[%s7] sm:$0x1]
      %v1167 = vld [vmem:[%s8] sm:$0x1]
      %v1168 = vsel %vm553, %v1163, 0.0
      %1169 = vadd.xlane.f32.xlu0 %v1168
      %v1170 = vpop.xlane.xlu0 %1169
      %v1171 = vsel %vm553, %v1164, 0.0
      %1172 = vadd.xlane.f32.xlu0 %v1171
      %v1173 = vpop.xlane.xlu0 %1172
      %v1174 = vsel %vm553, %v1165, 0.0
      %1175 = vadd.xlane.f32.xlu0 %v1174
      %v1176 = vpop.xlane.xlu0 %1175
      %v1177 = vmul.f32 %v1170, %v563
      %v1178 = vmul.f32 %v1173, %v563
      %v1179 = vmul.f32 %v1176, %v563
      %v1180 = vmul.f32 %v1163, %v1163
      %v1181 = vmul.f32 %v1164, %v1164
      %v1182 = vmul.f32 %v1165, %v1165
      %v1183 = vsel %vm553, %v1180, 0.0
      %1184 = vadd.xlane.f32.xlu0 %v1183
      %v1185 = vpop.xlane.xlu0 %1184
      %v1186 = vsel %vm553, %v1181, 0.0
      %1187 = vadd.xlane.f32.xlu0 %v1186
      %v1188 = vpop.xlane.xlu0 %1187
      %v1189 = vsel %vm553, %v1182, 0.0
      %1190 = vadd.xlane.f32.xlu0 %v1189
      %v1191 = vpop.xlane.xlu0 %1190
      %v1192 = vmul.f32 %v1185, %v563
      %v1193 = vmul.f32 %v1188, %v563
      %v1194 = vmul.f32 %v1191, %v563
      %v1195 = vmul.f32 %v1177, %v1177
      %v1196 = vmul.f32 %v1178, %v1178
      %v1197 = vmul.f32 %v1179, %v1179
      %v1198 = vsub.f32 %v1192, %v1195
      %v1199 = vsub.f32 %v1193, %v1196
      %v1200 = vsub.f32 %v1194, %v1197
      %v1201 = vmax.f32 %v1198, 0.0
      %v1202 = vmax.f32 %v1199, 0.0
      %v1203 = vmax.f32 %v1200, 0.0
      %v1204 = vsub.f32 %v1163, %v1177
      %v1205 = vsub.f32 %v1164, %v1178
      %v1206 = vsub.f32 %v1165, %v1179
      %v1207 = vadd.f32 %v1201, 1e-05
      %v1208 = vadd.f32 %v1202, 1e-05
      %v1209 = vadd.f32 %v1203, 1e-05
      %v1210 = vrsqrt.pop %v1207
      %v1211 = vrsqrt.pop %v1208
      %v1212 = vrsqrt.pop %v1209
      %v1213 = vmul.f32 %v1204, %v1210
      %v1214 = vmul.f32 %v1205, %v1211
      %v1215 = vmul.f32 %v1206, %v1212
      %v1217 = vlaneseq
      %v1218 = vshrl.u32 %v1217, 7
      %v1219 = vsub.s32 0, %v1218
      %v1220 = vrot.slane %v1166, %v1219
      %v1222 = vmul.f32 %v1213, %v1220
      %v1223 = vmul.f32 %v1214, %v1220
      %v1224 = vmul.f32 %v1215, %v1220
      %v1226 = vlaneseq
      %v1227 = vshrl.u32 %v1226, 7
      %v1228 = vsub.s32 0, %v1227
      %v1229 = vrot.slane %v1167, %v1228
      %v1231 = vadd.f32 %v1222, %v1229
      %v1232 = vadd.f32 %v1223, %v1229
      %v1233 = vadd.f32 %v1224, %v1229
      %v1234 = vpack.c.bf16 %v1232, %v1231
      %v1235 = vpack.c.bf16 %v1233, %v1233
      %v1236 = vld [vmem:[%s9] sm:$0xf]
      %v1237 = vld [vmem:[%s9 + $0x4] sm:$0xf]
      %v1238 = vld [vmem:[%s9 + $0x8] sm:$0xf]
      %v1239 = vld [vmem:[%s9 + $0xc] sm:$0xf]
      %v1240 = vld [vmem:[%s10] sm:$0x1]
      %v1242 = vlaneseq
      %v1243 = vshrl.u32 %v1242, 7
      %v1244 = vsub.s32 0, %v1243
      %v1245 = vrot.slane %v1240, %v1244
      %v1251 = vunpack.c.l.b16 %v1236
      %v1252 = vunpack.c.l.b16 %v1237
      %v1253 = vunpack.c.l.b16 %v1238
      %v1254 = vunpack.c.l.b16 %v1239
      %v1255 = vpack.c.b16 %v1252, %v1251
      %v1256 = vpack.c.b16 %v1254, %v1253
      %v1260 = vsel %vm553, %v1234, 0
      %v1263 = vsel %vm553, %v1235, 0
      %1265 = vmatprep.subr.bf16.mxu0 0
      %1266 = vmatpush1.bf16.msra.mxu0 %v1255
      %1267 = vmatprep.subr.bf16.mxu0 0
      %1268 = vmatpush1.bf16.msra.mxu0 %v1256
      %1269 = vmatprep.subr.bf16.mxu0 0
      %1270 = vmatpush1.bf16.msra.mxu0 0
      %1271 = vmatprep.subr.bf16.mxu0 0
      %1272 = vmatpush1.bf16.msra.mxu0 0
      %1273 = vmatprep.subr.bf16.mxu0 0
      %1274 = vmatpush1.bf16.msra.mxu0 0
      %1275 = vmatprep.subr.bf16.mxu0 0
      %1276 = vmatpush1.bf16.msra.mxu0 0
      %1277 = vmatprep.subr.bf16.mxu0 0
      %1278 = vmatpush1.bf16.msra.mxu0 0
      %1279 = vmatprep.subr.bf16.mxu0 0
      %1280 = vmatpush1.bf16.msra.mxu0 0
      %1281 = vmatprep.subr.bf16.mxu0 0
      %1282 = vmatpush1.bf16.msra.mxu0 0
      %1283 = vmatprep.subr.bf16.mxu0 0
      %1284 = vmatpush1.bf16.msra.mxu0 0
      %1285 = vmatprep.subr.bf16.mxu0 0
      %1286 = vmatpush1.bf16.msra.mxu0 0
      %1287 = vmatprep.subr.bf16.mxu0 0
      %1288 = vmatpush1.bf16.msra.mxu0 0
      %1289 = vmatprep.subr.bf16.mxu0 0
      %1290 = vmatpush1.bf16.msra.mxu0 0
      %1291 = vmatprep.subr.bf16.mxu0 0
      %1292 = vmatpush1.bf16.msra.mxu0 0
      %1293 = vmatprep.subr.bf16.mxu0 0
      %1294 = vmatpush1.bf16.msra.mxu0 0
      %1295 = vmatprep.subr.bf16.mxu0 0
      %1296 = vmatpush1.bf16.msra.mxu0 0
      %1297 = vmatprep.mubr.bf16.mxu0 0
      %1298 = vmatmul.mubr.bf16.gmra.mrb[0].mxu0 %v1260
      %v1299 = vpop.f32.mrb[0].mxu0
      %v1300 = vadd.f32 %v1245, %v1299
      %v1301 = vpop.f32.mrb[0].mxu0
      %v1302 = vpop.f32.mrb[0].mxu0
      %v1303 = vadd.f32 %v1245, %v1302
      %v1304 = vpop.f32.mrb[0].mxu0
      %1305 = vmatprep.mubr.bf16.mxu0 0
      %1306 = vmatmul.mubr.bf16.gmra.mrb[0].mxu0 %v1263
      %v1307 = vpop.f32.mrb[0].mxu0
      %v1308 = vadd.f32 %v1245, %v1307
      %v1309 = vpop.f32.mrb[0].mxu0
      %v1310 = vpop.f32.mrb[0].mxu0
      %v1311 = vpop.f32.mrb[0].mxu0
      %1312 = vdwg.mxu0
      %v1313 = vmul.f32 %v1300, 0.5
      %v1314 = vmul.f32 %v1303, 0.5
      %v1315 = vmul.f32 %v1308, 0.5
      %v1316 = vmul.f32 %v1300, 0.70710677
      %v1317 = vmul.f32 %v1303, 0.70710677
      %v1318 = vmul.f32 %v1308, 0.70710677
      %v1319 = verf.f32.pop %v1316
      %v1320 = verf.f32.pop %v1317
      %v1321 = verf.f32.pop %v1318
      %v1322 = vadd.f32 %v1319, 1.0
      %v1323 = vadd.f32 %v1320, 1.0
      %v1324 = vadd.f32 %v1321, 1.0
      %v1325 = vmul.f32 %v1313, %v1322
      %v1326 = vmul.f32 %v1314, %v1323
      %v1327 = vmul.f32 %v1315, %v1324
      %v1328 = vpack.c.bf16 %v1326, %v1325
      %v1329 = vpack.c.bf16 %v1327, %v1327
      %v1330 = vld [vmem:[%s11] sm:$0xf]
      %v1331 = vld [vmem:[%s11 + $0x4] sm:$0xf]
      %v1332 = vld [vmem:[%s11 + $0x8] sm:$0xf]
      %v1333 = vld [vmem:[%s11 + $0xc] sm:$0xf]
      %v1334 = vld [vmem:[%s11 + $0x10] sm:$0xf]
      %v1335 = vld [vmem:[%s11 + $0x14] sm:$0xf]
      %v1336 = vld [vmem:[%s11 + $0x18] sm:$0xf]
      %v1337 = vld [vmem:[%s11 + $0x1c] sm:$0xf]
      %v1338 = vld [vmem:[%s11 + $0x20] sm:$0xf]
      %v1339 = vld [vmem:[%s11 + $0x24] sm:$0xf]
      %v1340 = vld [vmem:[%s11 + $0x28] sm:$0xf]
      %v1341 = vld [vmem:[%s11 + $0x2c] sm:$0xf]
      %v1342 = vld [vmem:[%s11 + $0x30] sm:$0xf]
      %v1343 = vld [vmem:[%s11 + $0x34] sm:$0xf]
      %v1344 = vld [vmem:[%s11 + $0x38] sm:$0xf]
      %v1345 = vld [vmem:[%s11 + $0x3c] sm:$0xf]
      %v1346 = vld [vmem:[%s12] sm:$0x1]
      %v1348 = vlaneseq
      %v1349 = vshrl.u32 %v1348, 7
      %v1350 = vsub.s32 0, %v1349
      %v1351 = vrot.slane %v1346, %v1350
      %v1369 = vunpack.c.l.b16 %v1330
      %v1370 = vunpack.c.l.b16 %v1331
      %v1371 = vunpack.c.l.b16 %v1332
      %v1372 = vunpack.c.l.b16 %v1333
      %v1373 = vunpack.c.l.b16 %v1334
      %v1374 = vunpack.c.l.b16 %v1335
      %v1375 = vunpack.c.l.b16 %v1336
      %v1376 = vunpack.c.l.b16 %v1337
      %v1377 = vunpack.c.l.b16 %v1338
      %v1378 = vunpack.c.l.b16 %v1339
      %v1379 = vunpack.c.l.b16 %v1340
      %v1380 = vunpack.c.l.b16 %v1341
      %v1381 = vunpack.c.l.b16 %v1342
      %v1382 = vunpack.c.l.b16 %v1343
      %v1383 = vunpack.c.l.b16 %v1344
      %v1384 = vunpack.c.l.b16 %v1345
      %v1385 = vpack.c.b16 %v1370, %v1369
      %v1386 = vpack.c.b16 %v1372, %v1371
      %v1387 = vpack.c.b16 %v1374, %v1373
      %v1388 = vpack.c.b16 %v1376, %v1375
      %v1389 = vpack.c.b16 %v1378, %v1377
      %v1390 = vpack.c.b16 %v1380, %v1379
      %v1391 = vpack.c.b16 %v1382, %v1381
      %v1392 = vpack.c.b16 %v1384, %v1383
      %1401 = vmatprep.subr.bf16.mxu0 0
      %1402 = vmatpush1.bf16.msra.mxu0 %v1385
      %1403 = vmatprep.subr.bf16.mxu0 0
      %1404 = vmatpush1.bf16.msra.mxu0 %v1386
      %1405 = vmatprep.subr.bf16.mxu0 0
      %1406 = vmatpush1.bf16.msra.mxu0 %v1387
      %1407 = vmatprep.subr.bf16.mxu0 0
      %1408 = vmatpush1.bf16.msra.mxu0 %v1388
      %1409 = vmatprep.subr.bf16.mxu0 0
      %1410 = vmatpush1.bf16.msra.mxu0 %v1389
      %1411 = vmatprep.subr.bf16.mxu0 0
      %1412 = vmatpush1.bf16.msra.mxu0 %v1390
      %1413 = vmatprep.subr.bf16.mxu0 0
      %1414 = vmatpush1.bf16.msra.mxu0 %v1391
      %1415 = vmatprep.subr.bf16.mxu0 0
      %1416 = vmatpush1.bf16.msra.mxu0 %v1392
      %1417 = vmatprep.subr.bf16.mxu0 0
      %1418 = vmatpush1.bf16.msra.mxu0 0
      %1419 = vmatprep.subr.bf16.mxu0 0
      %1420 = vmatpush1.bf16.msra.mxu0 0
      %1421 = vmatprep.subr.bf16.mxu0 0
      %1422 = vmatpush1.bf16.msra.mxu0 0
      %1423 = vmatprep.subr.bf16.mxu0 0
      %1424 = vmatpush1.bf16.msra.mxu0 0
      %1425 = vmatprep.subr.bf16.mxu0 0
      %1426 = vmatpush1.bf16.msra.mxu0 0
      %1427 = vmatprep.subr.bf16.mxu0 0
      %1428 = vmatpush1.bf16.msra.mxu0 0
      %1429 = vmatprep.subr.bf16.mxu0 0
      %1430 = vmatpush1.bf16.msra.mxu0 0
      %1431 = vmatprep.subr.bf16.mxu0 0
      %1432 = vmatpush1.bf16.msra.mxu0 0
      %1433 = vmatprep.mubr.bf16.mxu0 0
      %1434 = vmatmul.mubr.bf16.gmra.mrb[0].mxu0 %v1328
      %v1435 = vpop.f32.mrb[0].mxu0
      %v1436 = vadd.f32 %v1351, %v1435
      %v1437 = vpop.f32.mrb[0].mxu0
      %v1438 = vpop.f32.mrb[0].mxu0
      %v1439 = vadd.f32 %v1351, %v1438
      %v1440 = vpop.f32.mrb[0].mxu0
      %1441 = vmatprep.mubr.bf16.mxu0 0
      %1442 = vmatmul.mubr.bf16.gmra.mrb[0].mxu0 %v1329
      %v1443 = vpop.f32.mrb[0].mxu0
      %v1444 = vadd.f32 %v1351, %v1443
      %v1445 = vpop.f32.mrb[0].mxu0
      %v1446 = vpop.f32.mrb[0].mxu0
      %v1447 = vpop.f32.mrb[0].mxu0
      %1448 = vdwg.mxu0
      %v1449 = vadd.f32 %v1231, %v1436
      %v1450 = vadd.f32 %v1232, %v1439
      %v1451 = vadd.f32 %v1233, %v1444
      %v1452 = vld [vmem:[%s13] sm:$0x1]
      %v1453 = vld [vmem:[%s14] sm:$0x1]
      %v1454 = vsel %vm553, %v1449, 0.0
      %1455 = vadd.xlane.f32.xlu0 %v1454
      %v1456 = vpop.xlane.xlu0 %1455
      %v1457 = vsel %vm553, %v1450, 0.0
      %1458 = vadd.xlane.f32.xlu0 %v1457
      %v1459 = vpop.xlane.xlu0 %1458
      %v1460 = vsel %vm553, %v1451, 0.0
      %1461 = vadd.xlane.f32.xlu0 %v1460
      %v1462 = vpop.xlane.xlu0 %1461
      %v1463 = vmul.f32 %v1456, %v563
      %v1464 = vmul.f32 %v1459, %v563
      %v1465 = vmul.f32 %v1462, %v563
      %v1466 = vmul.f32 %v1449, %v1449
      %v1467 = vmul.f32 %v1450, %v1450
      %v1468 = vmul.f32 %v1451, %v1451
      %v1469 = vsel %vm553, %v1466, 0.0
      %1470 = vadd.xlane.f32.xlu0 %v1469
      %v1471 = vpop.xlane.xlu0 %1470
      %v1472 = vsel %vm553, %v1467, 0.0
      %1473 = vadd.xlane.f32.xlu0 %v1472
      %v1474 = vpop.xlane.xlu0 %1473
      %v1475 = vsel %vm553, %v1468, 0.0
      %1476 = vadd.xlane.f32.xlu0 %v1475
      %v1477 = vpop.xlane.xlu0 %1476
      %v1478 = vmul.f32 %v1471, %v563
      %v1479 = vmul.f32 %v1474, %v563
      %v1480 = vmul.f32 %v1477, %v563
      %v1481 = vmul.f32 %v1463, %v1463
      %v1482 = vmul.f32 %v1464, %v1464
      %v1483 = vmul.f32 %v1465, %v1465
      %v1484 = vsub.f32 %v1478, %v1481
      %v1485 = vsub.f32 %v1479, %v1482
      %v1486 = vsub.f32 %v1480, %v1483
      %v1487 = vmax.f32 %v1484, 0.0
      %v1488 = vmax.f32 %v1485, 0.0
      %v1489 = vmax.f32 %v1486, 0.0
      %v1490 = vsub.f32 %v1449, %v1463
      %v1491 = vsub.f32 %v1450, %v1464
      %v1492 = vsub.f32 %v1451, %v1465
      %v1493 = vadd.f32 %v1487, 1e-05
      %v1494 = vadd.f32 %v1488, 1e-05
      %v1495 = vadd.f32 %v1489, 1e-05
      %v1496 = vrsqrt.pop %v1493
      %v1497 = vrsqrt.pop %v1494
      %v1498 = vrsqrt.pop %v1495
      %v1499 = vmul.f32 %v1490, %v1496
      %v1500 = vmul.f32 %v1491, %v1497
      %v1501 = vmul.f32 %v1492, %v1498
      %v1503 = vlaneseq
      %v1504 = vshrl.u32 %v1503, 7
      %v1505 = vsub.s32 0, %v1504
      %v1506 = vrot.slane %v1452, %v1505
      %v1508 = vmul.f32 %v1499, %v1506
      %v1509 = vmul.f32 %v1500, %v1506
      %v1510 = vmul.f32 %v1501, %v1506
      %v1512 = vlaneseq
      %v1513 = vshrl.u32 %v1512, 7
      %v1514 = vsub.s32 0, %v1513
      %v1515 = vrot.slane %v1453, %v1514
      %v1517 = vadd.f32 %v1508, %v1515
      %v1518 = vadd.f32 %v1509, %v1515
      %v1519 = vadd.f32 %v1510, %v1515
      %v1520 = vpack.c.bf16 %v1518, %v1517
      %v1521 = vpack.c.bf16 %v1519, %v1519
      %s1522 = scalar_lea.vmem %s3, 16
      %v1523 = vld [vmem:[%s1522] sm:$0xf]
      %v1524 = vld [vmem:[%s1522 + $0x4] sm:$0xf]
      %v1525 = vld [vmem:[%s1522 + $0x8] sm:$0xf]
      %v1526 = vld [vmem:[%s1522 + $0xc] sm:$0xf]
      %s1527 = scalar_lea.vmem %s4, 1
      %v1528 = vld [vmem:[%s1527] sm:$0x1]
      %v1530 = vlaneseq
      %v1531 = vshrl.u32 %v1530, 7
      %v1532 = vsub.s32 0, %v1531
      %v1533 = vrot.slane %v1528, %v1532
      %v1539 = vunpack.c.l.b16 %v1523
      %v1540 = vunpack.c.l.b16 %v1524
      %v1541 = vunpack.c.l.b16 %v1525
      %v1542 = vunpack.c.l.b16 %v1526
      %v1543 = vpack.c.b16 %v1540, %v1539
      %v1544 = vpack.c.b16 %v1542, %v1541
      %v1548 = vsel %vm553, %v1520, 0
      %v1551 = vsel %vm553, %v1521, 0
      %1553 = vmatprep.subr.bf16.mxu0 0
      %1554 = vmatpush1.bf16.msra.mxu0 %v1543
      %1555 = vmatprep.subr.bf16.mxu0 0
      %1556 = vmatpush1.bf16.msra.mxu0 %v1544
      %1557 = vmatprep.subr.bf16.mxu0 0
      %1558 = vmatpush1.bf16.msra.mxu0 0
      %1559 = vmatprep.subr.bf16.mxu0 0
      %1560 = vmatpush1.bf16.msra.mxu0 0
      %1561 = vmatprep.subr.bf16.mxu0 0
      %1562 = vmatpush1.bf16.msra.mxu0 0
      %1563 = vmatprep.subr.bf16.mxu0 0
      %1564 = vmatpush1.bf16.msra.mxu0 0
      %1565 = vmatprep.subr.bf16.mxu0 0
      %1566 = vmatpush1.bf16.msra.mxu0 0
      %1567 = vmatprep.subr.bf16.mxu0 0
      %1568 = vmatpush1.bf16.msra.mxu0 0
      %1569 = vmatprep.subr.bf16.mxu0 0
      %1570 = vmatpush1.bf16.msra.mxu0 0
      %1571 = vmatprep.subr.bf16.mxu0 0
      %1572 = vmatpush1.bf16.msra.mxu0 0
      %1573 = vmatprep.subr.bf16.mxu0 0
      %1574 = vmatpush1.bf16.msra.mxu0 0
      %1575 = vmatprep.subr.bf16.mxu0 0
      %1576 = vmatpush1.bf16.msra.mxu0 0
      %1577 = vmatprep.subr.bf16.mxu0 0
      %1578 = vmatpush1.bf16.msra.mxu0 0
      %1579 = vmatprep.subr.bf16.mxu0 0
      %1580 = vmatpush1.bf16.msra.mxu0 0
      %1581 = vmatprep.subr.bf16.mxu0 0
      %1582 = vmatpush1.bf16.msra.mxu0 0
      %1583 = vmatprep.subr.bf16.mxu0 0
      %1584 = vmatpush1.bf16.msra.mxu0 0
      %1585 = vmatprep.mubr.bf16.mxu0 0
      %1586 = vmatmul.mubr.bf16.gmra.mrb[0].mxu0 %v1548
      %v1587 = vpop.f32.mrb[0].mxu0
      %v1588 = vadd.f32 %v1533, %v1587
      %v1589 = vpop.f32.mrb[0].mxu0
      %v1590 = vpop.f32.mrb[0].mxu0
      %v1591 = vadd.f32 %v1533, %v1590
      %v1592 = vpop.f32.mrb[0].mxu0
      %1593 = vmatprep.mubr.bf16.mxu0 0
      %1594 = vmatmul.mubr.bf16.gmra.mrb[0].mxu0 %v1551
      %v1595 = vpop.f32.mrb[0].mxu0
      %v1596 = vadd.f32 %v1533, %v1595
      %v1597 = vpop.f32.mrb[0].mxu0
      %v1598 = vpop.f32.mrb[0].mxu0
      %v1599 = vpop.f32.mrb[0].mxu0
      %1600 = vdwg.mxu0
      %1604 = vrot.lane.b32.xlu0 %v1588, 112
      %v1605 = vpop.permute.xlu0 %1604
      %1606 = vrot.lane.b32.xlu0 %v1591, 112
      %v1607 = vpop.permute.xlu0 %1606
      %1608 = vrot.lane.b32.xlu0 %v1596, 112
      %v1609 = vpop.permute.xlu0 %1608
      %v1613 = vpack.c.bf16 %v1591, %v1588
      %v1614 = vpack.c.bf16 %v1596, %v1596
      %v1615 = vpack.c.bf16 %v1607, %v1605
      %v1616 = vpack.c.bf16 %v1609, %v1609
      %1619 = vrot.lane.b32.xlu0 %v1613, 96
      %v1620 = vpop.permute.xlu0 %1619
      %1621 = vrot.lane.b32.xlu0 %v1614, 96
      %v1622 = vpop.permute.xlu0 %1621
      %v1624 = vsel %vm734, %v1613, 0
      %v1627 = vsel %vm734, %v1614, 0
      %v1630 = vsel %vm734, %v1620, 0
      %v1633 = vsel %vm734, %v1622, 0
      %1635 = vmatprep.subr.bf16.mxu0 0
      %1636 = vmatpush1.bf16.xpose.msra.mxu0 %v1630
      %1637 = vmatprep.subr.bf16.mxu0 0
      %1638 = vmatpush1.bf16.xpose.msra.mxu0 %v1633
      %1639 = vmatprep.subr.bf16.mxu0 0
      %1640 = vmatpush1.bf16.xpose.msra.mxu0 0
      %1641 = vmatprep.subr.bf16.mxu0 0
      %1642 = vmatpush1.bf16.xpose.msra.mxu0 0
      %1643 = vmatprep.subr.bf16.mxu0 0
      %1644 = vmatpush1.bf16.xpose.msra.mxu0 0
      %1645 = vmatprep.subr.bf16.mxu0 0
      %1646 = vmatpush1.bf16.xpose.msra.mxu0 0
      %1647 = vmatprep.subr.bf16.mxu0 0
      %1648 = vmatpush1.bf16.xpose.msra.mxu0 0
      %1649 = vmatprep.subr.bf16.mxu0 0
      %1650 = vmatpush1.bf16.xpose.msra.mxu0 0
      %1651 = vmatprep.subr.bf16.mxu0 0
      %1652 = vmatpush1.bf16.xpose.msra.mxu0 0
      %1653 = vmatprep.subr.bf16.mxu0 0
      %1654 = vmatpush1.bf16.xpose.msra.mxu0 0
      %1655 = vmatprep.subr.bf16.mxu0 0
      %1656 = vmatpush1.bf16.xpose.msra.mxu0 0
      %1657 = vmatprep.subr.bf16.mxu0 0
      %1658 = vmatpush1.bf16.xpose.msra.mxu0 0
      %1659 = vmatprep.subr.bf16.mxu0 0
      %1660 = vmatpush1.bf16.xpose.msra.mxu0 0
      %1661 = vmatprep.subr.bf16.mxu0 0
      %1662 = vmatpush1.bf16.xpose.msra.mxu0 0
      %1663 = vmatprep.subr.bf16.mxu0 0
      %1664 = vmatpush1.bf16.xpose.msra.mxu0 0
      %1665 = vmatprep.subr.bf16.mxu0 0
      %1666 = vmatpush1.bf16.xpose.msra.mxu0 0
      %1667 = vmatprep.mubr.bf16.mxu0 0
      %1668 = vmatmul.mubr.bf16.gmra.mrb[0].mxu0 %v1624
      %v1669 = vpop.f32.mrb[0].mxu0
      %v1670 = vadd.f32 0.0, %v1669
      %v1671 = vpop.f32.mrb[0].mxu0
      %v1672 = vpop.f32.mrb[0].mxu0
      %v1673 = vadd.f32 0.0, %v1672
      %v1674 = vpop.f32.mrb[0].mxu0
      %1675 = vmatprep.mubr.bf16.mxu0 0
      %1676 = vmatmul.mubr.bf16.gmra.mrb[0].mxu0 %v1627
      %v1677 = vpop.f32.mrb[0].mxu0
      %v1678 = vadd.f32 0.0, %v1677
      %v1679 = vpop.f32.mrb[0].mxu0
      %v1680 = vpop.f32.mrb[0].mxu0
      %v1681 = vpop.f32.mrb[0].mxu0
      %1682 = vdwg.mxu0
      %1685 = vrot.lane.b32.xlu0 %v1615, 96
      %v1686 = vpop.permute.xlu0 %1685
      %1687 = vrot.lane.b32.xlu0 %v1616, 96
      %v1688 = vpop.permute.xlu0 %1687
      %v1690 = vsel %vm734, %v1615, 0
      %v1693 = vsel %vm734, %v1616, 0
      %v1696 = vsel %vm734, %v1686, 0
      %v1699 = vsel %vm734, %v1688, 0
      %1701 = vmatprep.subr.bf16.mxu0 0
      %1702 = vmatpush1.bf16.xpose.msra.mxu0 %v1696
      %1703 = vmatprep.subr.bf16.mxu0 0
      %1704 = vmatpush1.bf16.xpose.msra.mxu0 %v1699
      %1705 = vmatprep.subr.bf16.mxu0 0
      %1706 = vmatpush1.bf16.xpose.msra.mxu0 0
      %1707 = vmatprep.subr.bf16.mxu0 0
      %1708 = vmatpush1.bf16.xpose.msra.mxu0 0
      %1709 = vmatprep.subr.bf16.mxu0 0
      %1710 = vmatpush1.bf16.xpose.msra.mxu0 0
      %1711 = vmatprep.subr.bf16.mxu0 0
      %1712 = vmatpush1.bf16.xpose.msra.mxu0 0
      %1713 = vmatprep.subr.bf16.mxu0 0
      %1714 = vmatpush1.bf16.xpose.msra.mxu0 0
      %1715 = vmatprep.subr.bf16.mxu0 0
      %1716 = vmatpush1.bf16.xpose.msra.mxu0 0
      %1717 = vmatprep.subr.bf16.mxu0 0
      %1718 = vmatpush1.bf16.xpose.msra.mxu0 0
      %1719 = vmatprep.subr.bf16.mxu0 0
      %1720 = vmatpush1.bf16.xpose.msra.mxu0 0
      %1721 = vmatprep.subr.bf16.mxu0 0
      %1722 = vmatpush1.bf16.xpose.msra.mxu0 0
      %1723 = vmatprep.subr.bf16.mxu0 0
      %1724 = vmatpush1.bf16.xpose.msra.mxu0 0
      %1725 = vmatprep.subr.bf16.mxu0 0
      %1726 = vmatpush1.bf16.xpose.msra.mxu0 0
      %1727 = vmatprep.subr.bf16.mxu0 0
      %1728 = vmatpush1.bf16.xpose.msra.mxu0 0
      %1729 = vmatprep.subr.bf16.mxu0 0
      %1730 = vmatpush1.bf16.xpose.msra.mxu0 0
      %1731 = vmatprep.subr.bf16.mxu0 0
      %1732 = vmatpush1.bf16.xpose.msra.mxu0 0
      %1733 = vmatprep.mubr.bf16.mxu0 0
      %1734 = vmatmul.mubr.bf16.gmra.mrb[0].mxu0 %v1690
      %v1735 = vpop.f32.mrb[0].mxu0
      %v1736 = vadd.f32 0.0, %v1735
      %v1737 = vpop.f32.mrb[0].mxu0
      %v1738 = vpop.f32.mrb[0].mxu0
      %v1739 = vadd.f32 0.0, %v1738
      %v1740 = vpop.f32.mrb[0].mxu0
      %1741 = vmatprep.mubr.bf16.mxu0 0
      %1742 = vmatmul.mubr.bf16.gmra.mrb[0].mxu0 %v1693
      %v1743 = vpop.f32.mrb[0].mxu0
      %v1744 = vadd.f32 0.0, %v1743
      %v1745 = vpop.f32.mrb[0].mxu0
      %v1746 = vpop.f32.mrb[0].mxu0
      %v1747 = vpop.f32.mrb[0].mxu0
      %1748 = vdwg.mxu0
      %v1749 = vmul.f32 %v1670, 0.25
      %v1750 = vmul.f32 %v1673, 0.25
      %v1751 = vmul.f32 %v1678, 0.25
      %v1752 = vmul.f32 %v1736, 0.25
      %v1753 = vmul.f32 %v1739, 0.25
      %v1754 = vmul.f32 %v1744, 0.25
      %v1755 = vadd.f32 %v1749, %v630
      %v1756 = vadd.f32 %v1750, %v631
      %v1757 = vadd.f32 %v1751, %v632
      %v1758 = vadd.f32 %v1752, %v630
      %v1759 = vadd.f32 %v1753, %v631
      %v1760 = vadd.f32 %v1754, %v632
      %v1761 = vsel %vm873, %v1755, -inf
      %1762 = vmax.xlane.f32.xlu0 %v1761
      %v1763 = vpop.xlane.xlu0 %1762
      %v1764 = vsel %vm873, %v1756, -inf
      %1765 = vmax.xlane.f32.xlu0 %v1764
      %v1766 = vpop.xlane.xlu0 %1765
      %v1767 = vsel %vm873, %v1757, -inf
      %1768 = vmax.xlane.f32.xlu0 %v1767
      %v1769 = vpop.xlane.xlu0 %1768
      %v1770 = vsel %vm873, %v1758, -inf
      %1771 = vmax.xlane.f32.xlu0 %v1770
      %v1772 = vpop.xlane.xlu0 %1771
      %v1773 = vsel %vm873, %v1759, -inf
      %1774 = vmax.xlane.f32.xlu0 %v1773
      %v1775 = vpop.xlane.xlu0 %1774
      %v1776 = vsel %vm873, %v1760, -inf
      %1777 = vmax.xlane.f32.xlu0 %v1776
      %v1778 = vpop.xlane.xlu0 %1777
      %v1779 = vsub.f32 %v1755, %v1763
      %v1780 = vsub.f32 %v1756, %v1766
      %v1781 = vsub.f32 %v1757, %v1769
      %v1782 = vsub.f32 %v1758, %v1772
      %v1783 = vsub.f32 %v1759, %v1775
      %v1784 = vsub.f32 %v1760, %v1778
      %v1785 = vmul.f32 %v1779, 1.442695
      %v1786 = vpow.pop %v1785
      %v1787 = vmul.f32 %v1780, 1.442695
      %v1788 = vpow.pop %v1787
      %v1789 = vmul.f32 %v1781, 1.442695
      %v1790 = vpow.pop %v1789
      %v1791 = vmul.f32 %v1782, 1.442695
      %v1792 = vpow.pop %v1791
      %v1793 = vmul.f32 %v1783, 1.442695
      %v1794 = vpow.pop %v1793
      %v1795 = vmul.f32 %v1784, 1.442695
      %v1796 = vpow.pop %v1795
      %v1797 = vsel %vm873, %v1786, 0.0
      %1798 = vadd.xlane.f32.xlu0 %v1797
      %v1799 = vpop.xlane.xlu0 %1798
      %v1800 = vsel %vm873, %v1788, 0.0
      %1801 = vadd.xlane.f32.xlu0 %v1800
      %v1802 = vpop.xlane.xlu0 %1801
      %v1803 = vsel %vm873, %v1790, 0.0
      %1804 = vadd.xlane.f32.xlu0 %v1803
      %v1805 = vpop.xlane.xlu0 %1804
      %v1806 = vsel %vm873, %v1792, 0.0
      %1807 = vadd.xlane.f32.xlu0 %v1806
      %v1808 = vpop.xlane.xlu0 %1807
      %v1809 = vsel %vm873, %v1794, 0.0
      %1810 = vadd.xlane.f32.xlu0 %v1809
      %v1811 = vpop.xlane.xlu0 %1810
      %v1812 = vsel %vm873, %v1796, 0.0
      %1813 = vadd.xlane.f32.xlu0 %v1812
      %v1814 = vpop.xlane.xlu0 %1813
      %v1815 = vrcp.pop %v1799
      %v1816 = vrcp.pop %v1802
      %v1817 = vrcp.pop %v1805
      %v1818 = vrcp.pop %v1808
      %v1819 = vrcp.pop %v1811
      %v1820 = vrcp.pop %v1814
      %v1821 = vmul.f32 %v1786, %v1815
      %v1822 = vmul.f32 %v1788, %v1816
      %v1823 = vmul.f32 %v1790, %v1817
      %v1824 = vmul.f32 %v1792, %v1818
      %v1825 = vmul.f32 %v1794, %v1819
      %v1826 = vmul.f32 %v1796, %v1820
      %v1827 = vpack.c.bf16 %v1822, %v1821
      %v1828 = vpack.c.bf16 %v1823, %v1823
      %v1829 = vpack.c.bf16 %v1825, %v1824
      %v1830 = vpack.c.bf16 %v1826, %v1826
      %1831 = vrot.lane.b32.xlu0 %v1613, 64
      %v1832 = vpop.permute.xlu0 %1831
      %1833 = vrot.lane.b32.xlu0 %v1614, 64
      %v1834 = vpop.permute.xlu0 %1833
      %v1837 = vsel %vm873, %v1827, 0
      %v1840 = vsel %vm873, %v1828, 0
      %v1843 = vsel %vm955, %v1834, 0
      %1845 = vmatprep.subr.bf16.mxu0 0
      %1846 = vmatpush1.bf16.msra.mxu0 %v1832
      %1847 = vmatprep.subr.bf16.mxu0 0
      %1848 = vmatpush1.bf16.msra.mxu0 %v1843
      %1849 = vmatprep.subr.bf16.mxu0 0
      %1850 = vmatpush1.bf16.msra.mxu0 0
      %1851 = vmatprep.subr.bf16.mxu0 0
      %1852 = vmatpush1.bf16.msra.mxu0 0
      %1853 = vmatprep.subr.bf16.mxu0 0
      %1854 = vmatpush1.bf16.msra.mxu0 0
      %1855 = vmatprep.subr.bf16.mxu0 0
      %1856 = vmatpush1.bf16.msra.mxu0 0
      %1857 = vmatprep.subr.bf16.mxu0 0
      %1858 = vmatpush1.bf16.msra.mxu0 0
      %1859 = vmatprep.subr.bf16.mxu0 0
      %1860 = vmatpush1.bf16.msra.mxu0 0
      %1861 = vmatprep.subr.bf16.mxu0 0
      %1862 = vmatpush1.bf16.msra.mxu0 0
      %1863 = vmatprep.subr.bf16.mxu0 0
      %1864 = vmatpush1.bf16.msra.mxu0 0
      %1865 = vmatprep.subr.bf16.mxu0 0
      %1866 = vmatpush1.bf16.msra.mxu0 0
      %1867 = vmatprep.subr.bf16.mxu0 0
      %1868 = vmatpush1.bf16.msra.mxu0 0
      %1869 = vmatprep.subr.bf16.mxu0 0
      %1870 = vmatpush1.bf16.msra.mxu0 0
      %1871 = vmatprep.subr.bf16.mxu0 0
      %1872 = vmatpush1.bf16.msra.mxu0 0
      %1873 = vmatprep.subr.bf16.mxu0 0
      %1874 = vmatpush1.bf16.msra.mxu0 0
      %1875 = vmatprep.subr.bf16.mxu0 0
      %1876 = vmatpush1.bf16.msra.mxu0 0
      %1877 = vmatprep.mubr.bf16.mxu0 0
      %1878 = vmatmul.mubr.bf16.gmra.mrb[0].mxu0 %v1837
      %v1879 = vpop.f32.mrb[0].mxu0
      %v1880 = vadd.f32 0.0, %v1879
      %v1881 = vpop.f32.mrb[0].mxu0
      %v1882 = vpop.f32.mrb[0].mxu0
      %v1883 = vadd.f32 0.0, %v1882
      %v1884 = vpop.f32.mrb[0].mxu0
      %1885 = vmatprep.mubr.bf16.mxu0 0
      %1886 = vmatmul.mubr.bf16.gmra.mrb[0].mxu0 %v1840
      %v1887 = vpop.f32.mrb[0].mxu0
      %v1888 = vadd.f32 0.0, %v1887
      %v1889 = vpop.f32.mrb[0].mxu0
      %v1890 = vpop.f32.mrb[0].mxu0
      %v1891 = vpop.f32.mrb[0].mxu0
      %1892 = vdwg.mxu0
      %1893 = vrot.lane.b32.xlu0 %v1615, 64
      %v1894 = vpop.permute.xlu0 %1893
      %1895 = vrot.lane.b32.xlu0 %v1616, 64
      %v1896 = vpop.permute.xlu0 %1895
      %v1899 = vsel %vm873, %v1829, 0
      %v1902 = vsel %vm873, %v1830, 0
      %v1905 = vsel %vm955, %v1896, 0
      %1907 = vmatprep.subr.bf16.mxu0 0
      %1908 = vmatpush1.bf16.msra.mxu0 %v1894
      %1909 = vmatprep.subr.bf16.mxu0 0
      %1910 = vmatpush1.bf16.msra.mxu0 %v1905
      %1911 = vmatprep.subr.bf16.mxu0 0
      %1912 = vmatpush1.bf16.msra.mxu0 0
      %1913 = vmatprep.subr.bf16.mxu0 0
      %1914 = vmatpush1.bf16.msra.mxu0 0
      %1915 = vmatprep.subr.bf16.mxu0 0
      %1916 = vmatpush1.bf16.msra.mxu0 0
      %1917 = vmatprep.subr.bf16.mxu0 0
      %1918 = vmatpush1.bf16.msra.mxu0 0
      %1919 = vmatprep.subr.bf16.mxu0 0
      %1920 = vmatpush1.bf16.msra.mxu0 0
      %1921 = vmatprep.subr.bf16.mxu0 0
      %1922 = vmatpush1.bf16.msra.mxu0 0
      %1923 = vmatprep.subr.bf16.mxu0 0
      %1924 = vmatpush1.bf16.msra.mxu0 0
      %1925 = vmatprep.subr.bf16.mxu0 0
      %1926 = vmatpush1.bf16.msra.mxu0 0
      %1927 = vmatprep.subr.bf16.mxu0 0
      %1928 = vmatpush1.bf16.msra.mxu0 0
      %1929 = vmatprep.subr.bf16.mxu0 0
      %1930 = vmatpush1.bf16.msra.mxu0 0
      %1931 = vmatprep.subr.bf16.mxu0 0
      %1932 = vmatpush1.bf16.msra.mxu0 0
      %1933 = vmatprep.subr.bf16.mxu0 0
      %1934 = vmatpush1.bf16.msra.mxu0 0
      %1935 = vmatprep.subr.bf16.mxu0 0
      %1936 = vmatpush1.bf16.msra.mxu0 0
      %1937 = vmatprep.subr.bf16.mxu0 0
      %1938 = vmatpush1.bf16.msra.mxu0 0
      %1939 = vmatprep.mubr.bf16.mxu0 0
      %1940 = vmatmul.mubr.bf16.gmra.mrb[0].mxu0 %v1899
      %v1941 = vpop.f32.mrb[0].mxu0
      %v1942 = vadd.f32 0.0, %v1941
      %v1943 = vpop.f32.mrb[0].mxu0
      %v1944 = vpop.f32.mrb[0].mxu0
      %v1945 = vadd.f32 0.0, %v1944
      %v1946 = vpop.f32.mrb[0].mxu0
      %1947 = vmatprep.mubr.bf16.mxu0 0
      %1948 = vmatmul.mubr.bf16.gmra.mrb[0].mxu0 %v1902
      %v1949 = vpop.f32.mrb[0].mxu0
      %v1950 = vadd.f32 0.0, %v1949
      %v1951 = vpop.f32.mrb[0].mxu0
      %v1952 = vpop.f32.mrb[0].mxu0
      %v1953 = vpop.f32.mrb[0].mxu0
      %1954 = vdwg.mxu0
      %1958 = vrot.lane.b32.xlu0 %v1942, 16
      %v1959 = vpop.permute.xlu0 %1958
      %1960 = vrot.lane.b32.xlu0 %v1945, 16
      %v1961 = vpop.permute.xlu0 %1960
      %1962 = vrot.lane.b32.xlu0 %v1950, 16
      %v1963 = vpop.permute.xlu0 %1962
      %v1967 = vsel %vm734, %v1880, %v1959
      %v1968 = vsel %vm734, %v1883, %v1961
      %v1969 = vsel %vm734, %v1888, %v1963
      %v1970 = vpack.c.bf16 %v1968, %v1967
      %v1971 = vpack.c.bf16 %v1969, %v1969
      %s1972 = scalar_lea.vmem %s5, 16
      %v1973 = vld [vmem:[%s1972] sm:$0xf]
      %v1974 = vld [vmem:[%s1972 + $0x4] sm:$0xf]
      %v1975 = vld [vmem:[%s1972 + $0x8] sm:$0xf]
      %v1976 = vld [vmem:[%s1972 + $0xc] sm:$0xf]
      %s1977 = scalar_lea.vmem %s6, 1
      %v1978 = vld [vmem:[%s1977] sm:$0x1]
      %v1980 = vlaneseq
      %v1981 = vshrl.u32 %v1980, 7
      %v1982 = vsub.s32 0, %v1981
      %v1983 = vrot.slane %v1978, %v1982
      %v1989 = vunpack.c.l.b16 %v1973
      %v1990 = vunpack.c.l.b16 %v1974
      %v1991 = vunpack.c.l.b16 %v1975
      %v1992 = vunpack.c.l.b16 %v1976
      %v1993 = vpack.c.b16 %v1990, %v1989
      %v1994 = vpack.c.b16 %v1992, %v1991
      %v1998 = vsel %vm553, %v1970, 0
      %v2001 = vsel %vm553, %v1971, 0
      %2003 = vmatprep.subr.bf16.mxu0 0
      %2004 = vmatpush1.bf16.msra.mxu0 %v1993
      %2005 = vmatprep.subr.bf16.mxu0 0
      %2006 = vmatpush1.bf16.msra.mxu0 %v1994
      %2007 = vmatprep.subr.bf16.mxu0 0
      %2008 = vmatpush1.bf16.msra.mxu0 0
      %2009 = vmatprep.subr.bf16.mxu0 0
      %2010 = vmatpush1.bf16.msra.mxu0 0
      %2011 = vmatprep.subr.bf16.mxu0 0
      %2012 = vmatpush1.bf16.msra.mxu0 0
      %2013 = vmatprep.subr.bf16.mxu0 0
      %2014 = vmatpush1.bf16.msra.mxu0 0
      %2015 = vmatprep.subr.bf16.mxu0 0
      %2016 = vmatpush1.bf16.msra.mxu0 0
      %2017 = vmatprep.subr.bf16.mxu0 0
      %2018 = vmatpush1.bf16.msra.mxu0 0
      %2019 = vmatprep.subr.bf16.mxu0 0
      %2020 = vmatpush1.bf16.msra.mxu0 0
      %2021 = vmatprep.subr.bf16.mxu0 0
      %2022 = vmatpush1.bf16.msra.mxu0 0
      %2023 = vmatprep.subr.bf16.mxu0 0
      %2024 = vmatpush1.bf16.msra.mxu0 0
      %2025 = vmatprep.subr.bf16.mxu0 0
      %2026 = vmatpush1.bf16.msra.mxu0 0
      %2027 = vmatprep.subr.bf16.mxu0 0
      %2028 = vmatpush1.bf16.msra.mxu0 0
      %2029 = vmatprep.subr.bf16.mxu0 0
      %2030 = vmatpush1.bf16.msra.mxu0 0
      %2031 = vmatprep.subr.bf16.mxu0 0
      %2032 = vmatpush1.bf16.msra.mxu0 0
      %2033 = vmatprep.subr.bf16.mxu0 0
      %2034 = vmatpush1.bf16.msra.mxu0 0
      %2035 = vmatprep.mubr.bf16.mxu0 0
      %2036 = vmatmul.mubr.bf16.gmra.mrb[0].mxu0 %v1998
      %v2037 = vpop.f32.mrb[0].mxu0
      %v2038 = vadd.f32 %v1983, %v2037
      %v2039 = vpop.f32.mrb[0].mxu0
      %v2040 = vpop.f32.mrb[0].mxu0
      %v2041 = vadd.f32 %v1983, %v2040
      %v2042 = vpop.f32.mrb[0].mxu0
      %2043 = vmatprep.mubr.bf16.mxu0 0
      %2044 = vmatmul.mubr.bf16.gmra.mrb[0].mxu0 %v2001
      %v2045 = vpop.f32.mrb[0].mxu0
      %v2046 = vadd.f32 %v1983, %v2045
      %v2047 = vpop.f32.mrb[0].mxu0
      %v2048 = vpop.f32.mrb[0].mxu0
      %v2049 = vpop.f32.mrb[0].mxu0
      %2050 = vdwg.mxu0
      %v2051 = vadd.f32 %v1517, %v2038
      %v2052 = vadd.f32 %v1518, %v2041
      %v2053 = vadd.f32 %v1519, %v2046
      %s2054 = scalar_lea.vmem %s7, 1
      %v2055 = vld [vmem:[%s2054] sm:$0x1]
      %s2056 = scalar_lea.vmem %s8, 1
      %v2057 = vld [vmem:[%s2056] sm:$0x1]
      %v2058 = vsel %vm553, %v2051, 0.0
      %2059 = vadd.xlane.f32.xlu0 %v2058
      %v2060 = vpop.xlane.xlu0 %2059
      %v2061 = vsel %vm553, %v2052, 0.0
      %2062 = vadd.xlane.f32.xlu0 %v2061
      %v2063 = vpop.xlane.xlu0 %2062
      %v2064 = vsel %vm553, %v2053, 0.0
      %2065 = vadd.xlane.f32.xlu0 %v2064
      %v2066 = vpop.xlane.xlu0 %2065
      %v2067 = vmul.f32 %v2060, %v563
      %v2068 = vmul.f32 %v2063, %v563
      %v2069 = vmul.f32 %v2066, %v563
      %v2070 = vmul.f32 %v2051, %v2051
      %v2071 = vmul.f32 %v2052, %v2052
      %v2072 = vmul.f32 %v2053, %v2053
      %v2073 = vsel %vm553, %v2070, 0.0
      %2074 = vadd.xlane.f32.xlu0 %v2073
      %v2075 = vpop.xlane.xlu0 %2074
      %v2076 = vsel %vm553, %v2071, 0.0
      %2077 = vadd.xlane.f32.xlu0 %v2076
      %v2078 = vpop.xlane.xlu0 %2077
      %v2079 = vsel %vm553, %v2072, 0.0
      %2080 = vadd.xlane.f32.xlu0 %v2079
      %v2081 = vpop.xlane.xlu0 %2080
      %v2082 = vmul.f32 %v2075, %v563
      %v2083 = vmul.f32 %v2078, %v563
      %v2084 = vmul.f32 %v2081, %v563
      %v2085 = vmul.f32 %v2067, %v2067
      %v2086 = vmul.f32 %v2068, %v2068
      %v2087 = vmul.f32 %v2069, %v2069
      %v2088 = vsub.f32 %v2082, %v2085
      %v2089 = vsub.f32 %v2083, %v2086
      %v2090 = vsub.f32 %v2084, %v2087
      %v2091 = vmax.f32 %v2088, 0.0
      %v2092 = vmax.f32 %v2089, 0.0
      %v2093 = vmax.f32 %v2090, 0.0
      %v2094 = vsub.f32 %v2051, %v2067
      %v2095 = vsub.f32 %v2052, %v2068
      %v2096 = vsub.f32 %v2053, %v2069
      %v2097 = vadd.f32 %v2091, 1e-05
      %v2098 = vadd.f32 %v2092, 1e-05
      %v2099 = vadd.f32 %v2093, 1e-05
      %v2100 = vrsqrt.pop %v2097
      %v2101 = vrsqrt.pop %v2098
      %v2102 = vrsqrt.pop %v2099
      %v2103 = vmul.f32 %v2094, %v2100
      %v2104 = vmul.f32 %v2095, %v2101
      %v2105 = vmul.f32 %v2096, %v2102
      %v2107 = vlaneseq
      %v2108 = vshrl.u32 %v2107, 7
      %v2109 = vsub.s32 0, %v2108
      %v2110 = vrot.slane %v2055, %v2109
      %v2112 = vmul.f32 %v2103, %v2110
      %v2113 = vmul.f32 %v2104, %v2110
      %v2114 = vmul.f32 %v2105, %v2110
      %v2116 = vlaneseq
      %v2117 = vshrl.u32 %v2116, 7
      %v2118 = vsub.s32 0, %v2117
      %v2119 = vrot.slane %v2057, %v2118
      %v2121 = vadd.f32 %v2112, %v2119
      %v2122 = vadd.f32 %v2113, %v2119
      %v2123 = vadd.f32 %v2114, %v2119
      %v2124 = vpack.c.bf16 %v2122, %v2121
      %v2125 = vpack.c.bf16 %v2123, %v2123
      %s2126 = scalar_lea.vmem %s9, 16
      %v2127 = vld [vmem:[%s2126] sm:$0xf]
      %v2128 = vld [vmem:[%s2126 + $0x4] sm:$0xf]
      %v2129 = vld [vmem:[%s2126 + $0x8] sm:$0xf]
      %v2130 = vld [vmem:[%s2126 + $0xc] sm:$0xf]
      %s2131 = scalar_lea.vmem %s10, 1
      %v2132 = vld [vmem:[%s2131] sm:$0x1]
      %v2134 = vlaneseq
      %v2135 = vshrl.u32 %v2134, 7
      %v2136 = vsub.s32 0, %v2135
      %v2137 = vrot.slane %v2132, %v2136
      %v2143 = vunpack.c.l.b16 %v2127
      %v2144 = vunpack.c.l.b16 %v2128
      %v2145 = vunpack.c.l.b16 %v2129
      %v2146 = vunpack.c.l.b16 %v2130
      %v2147 = vpack.c.b16 %v2144, %v2143
      %v2148 = vpack.c.b16 %v2146, %v2145
      %v2152 = vsel %vm553, %v2124, 0
      %v2155 = vsel %vm553, %v2125, 0
      %2157 = vmatprep.subr.bf16.mxu0 0
      %2158 = vmatpush1.bf16.msra.mxu0 %v2147
      %2159 = vmatprep.subr.bf16.mxu0 0
      %2160 = vmatpush1.bf16.msra.mxu0 %v2148
      %2161 = vmatprep.subr.bf16.mxu0 0
      %2162 = vmatpush1.bf16.msra.mxu0 0
      %2163 = vmatprep.subr.bf16.mxu0 0
      %2164 = vmatpush1.bf16.msra.mxu0 0
      %2165 = vmatprep.subr.bf16.mxu0 0
      %2166 = vmatpush1.bf16.msra.mxu0 0
      %2167 = vmatprep.subr.bf16.mxu0 0
      %2168 = vmatpush1.bf16.msra.mxu0 0
      %2169 = vmatprep.subr.bf16.mxu0 0
      %2170 = vmatpush1.bf16.msra.mxu0 0
      %2171 = vmatprep.subr.bf16.mxu0 0
      %2172 = vmatpush1.bf16.msra.mxu0 0
      %2173 = vmatprep.subr.bf16.mxu0 0
      %2174 = vmatpush1.bf16.msra.mxu0 0
      %2175 = vmatprep.subr.bf16.mxu0 0
      %2176 = vmatpush1.bf16.msra.mxu0 0
      %2177 = vmatprep.subr.bf16.mxu0 0
      %2178 = vmatpush1.bf16.msra.mxu0 0
      %2179 = vmatprep.subr.bf16.mxu0 0
      %2180 = vmatpush1.bf16.msra.mxu0 0
      %2181 = vmatprep.subr.bf16.mxu0 0
      %2182 = vmatpush1.bf16.msra.mxu0 0
      %2183 = vmatprep.subr.bf16.mxu0 0
      %2184 = vmatpush1.bf16.msra.mxu0 0
      %2185 = vmatprep.subr.bf16.mxu0 0
      %2186 = vmatpush1.bf16.msra.mxu0 0
      %2187 = vmatprep.subr.bf16.mxu0 0
      %2188 = vmatpush1.bf16.msra.mxu0 0
      %2189 = vmatprep.mubr.bf16.mxu0 0
      %2190 = vmatmul.mubr.bf16.gmra.mrb[0].mxu0 %v2152
      %v2191 = vpop.f32.mrb[0].mxu0
      %v2192 = vadd.f32 %v2137, %v2191
      %v2193 = vpop.f32.mrb[0].mxu0
      %v2194 = vpop.f32.mrb[0].mxu0
      %v2195 = vadd.f32 %v2137, %v2194
      %v2196 = vpop.f32.mrb[0].mxu0
      %2197 = vmatprep.mubr.bf16.mxu0 0
      %2198 = vmatmul.mubr.bf16.gmra.mrb[0].mxu0 %v2155
      %v2199 = vpop.f32.mrb[0].mxu0
      %v2200 = vadd.f32 %v2137, %v2199
      %v2201 = vpop.f32.mrb[0].mxu0
      %v2202 = vpop.f32.mrb[0].mxu0
      %v2203 = vpop.f32.mrb[0].mxu0
      %2204 = vdwg.mxu0
      %v2205 = vmul.f32 %v2192, 0.5
      %v2206 = vmul.f32 %v2195, 0.5
      %v2207 = vmul.f32 %v2200, 0.5
      %v2208 = vmul.f32 %v2192, 0.70710677
      %v2209 = vmul.f32 %v2195, 0.70710677
      %v2210 = vmul.f32 %v2200, 0.70710677
      %v2211 = verf.f32.pop %v2208
      %v2212 = verf.f32.pop %v2209
      %v2213 = verf.f32.pop %v2210
      %v2214 = vadd.f32 %v2211, 1.0
      %v2215 = vadd.f32 %v2212, 1.0
      %v2216 = vadd.f32 %v2213, 1.0
      %v2217 = vmul.f32 %v2205, %v2214
      %v2218 = vmul.f32 %v2206, %v2215
      %v2219 = vmul.f32 %v2207, %v2216
      %v2220 = vpack.c.bf16 %v2218, %v2217
      %v2221 = vpack.c.bf16 %v2219, %v2219
      %s2222 = scalar_lea.vmem %s11, 64
      %v2223 = vld [vmem:[%s2222] sm:$0xf]
      %v2224 = vld [vmem:[%s2222 + $0x4] sm:$0xf]
      %v2225 = vld [vmem:[%s2222 + $0x8] sm:$0xf]
      %v2226 = vld [vmem:[%s2222 + $0xc] sm:$0xf]
      %v2227 = vld [vmem:[%s2222 + $0x10] sm:$0xf]
      %v2228 = vld [vmem:[%s2222 + $0x14] sm:$0xf]
      %v2229 = vld [vmem:[%s2222 + $0x18] sm:$0xf]
      %v2230 = vld [vmem:[%s2222 + $0x1c] sm:$0xf]
      %v2231 = vld [vmem:[%s2222 + $0x20] sm:$0xf]
      %v2232 = vld [vmem:[%s2222 + $0x24] sm:$0xf]
      %v2233 = vld [vmem:[%s2222 + $0x28] sm:$0xf]
      %v2234 = vld [vmem:[%s2222 + $0x2c] sm:$0xf]
      %v2235 = vld [vmem:[%s2222 + $0x30] sm:$0xf]
      %v2236 = vld [vmem:[%s2222 + $0x34] sm:$0xf]
      %v2237 = vld [vmem:[%s2222 + $0x38] sm:$0xf]
      %v2238 = vld [vmem:[%s2222 + $0x3c] sm:$0xf]
      %s2239 = scalar_lea.vmem %s12, 1
      %v2240 = vld [vmem:[%s2239] sm:$0x1]
      %v2242 = vlaneseq
      %v2243 = vshrl.u32 %v2242, 7
      %v2244 = vsub.s32 0, %v2243
      %v2245 = vrot.slane %v2240, %v2244
      %v2263 = vunpack.c.l.b16 %v2223
      %v2264 = vunpack.c.l.b16 %v2224
      %v2265 = vunpack.c.l.b16 %v2225
      %v2266 = vunpack.c.l.b16 %v2226
      %v2267 = vunpack.c.l.b16 %v2227
      %v2268 = vunpack.c.l.b16 %v2228
      %v2269 = vunpack.c.l.b16 %v2229
      %v2270 = vunpack.c.l.b16 %v2230
      %v2271 = vunpack.c.l.b16 %v2231
      %v2272 = vunpack.c.l.b16 %v2232
      %v2273 = vunpack.c.l.b16 %v2233
      %v2274 = vunpack.c.l.b16 %v2234
      %v2275 = vunpack.c.l.b16 %v2235
      %v2276 = vunpack.c.l.b16 %v2236
      %v2277 = vunpack.c.l.b16 %v2237
      %v2278 = vunpack.c.l.b16 %v2238
      %v2279 = vpack.c.b16 %v2264, %v2263
      %v2280 = vpack.c.b16 %v2266, %v2265
      %v2281 = vpack.c.b16 %v2268, %v2267
      %v2282 = vpack.c.b16 %v2270, %v2269
      %v2283 = vpack.c.b16 %v2272, %v2271
      %v2284 = vpack.c.b16 %v2274, %v2273
      %v2285 = vpack.c.b16 %v2276, %v2275
      %v2286 = vpack.c.b16 %v2278, %v2277
      %2295 = vmatprep.subr.bf16.mxu0 0
      %2296 = vmatpush1.bf16.msra.mxu0 %v2279
      %2297 = vmatprep.subr.bf16.mxu0 0
      %2298 = vmatpush1.bf16.msra.mxu0 %v2280
      %2299 = vmatprep.subr.bf16.mxu0 0
      %2300 = vmatpush1.bf16.msra.mxu0 %v2281
      %2301 = vmatprep.subr.bf16.mxu0 0
      %2302 = vmatpush1.bf16.msra.mxu0 %v2282
      %2303 = vmatprep.subr.bf16.mxu0 0
      %2304 = vmatpush1.bf16.msra.mxu0 %v2283
      %2305 = vmatprep.subr.bf16.mxu0 0
      %2306 = vmatpush1.bf16.msra.mxu0 %v2284
      %2307 = vmatprep.subr.bf16.mxu0 0
      %2308 = vmatpush1.bf16.msra.mxu0 %v2285
      %2309 = vmatprep.subr.bf16.mxu0 0
      %2310 = vmatpush1.bf16.msra.mxu0 %v2286
      %2311 = vmatprep.subr.bf16.mxu0 0
      %2312 = vmatpush1.bf16.msra.mxu0 0
      %2313 = vmatprep.subr.bf16.mxu0 0
      %2314 = vmatpush1.bf16.msra.mxu0 0
      %2315 = vmatprep.subr.bf16.mxu0 0
      %2316 = vmatpush1.bf16.msra.mxu0 0
      %2317 = vmatprep.subr.bf16.mxu0 0
      %2318 = vmatpush1.bf16.msra.mxu0 0
      %2319 = vmatprep.subr.bf16.mxu0 0
      %2320 = vmatpush1.bf16.msra.mxu0 0
      %2321 = vmatprep.subr.bf16.mxu0 0
      %2322 = vmatpush1.bf16.msra.mxu0 0
      %2323 = vmatprep.subr.bf16.mxu0 0
      %2324 = vmatpush1.bf16.msra.mxu0 0
      %2325 = vmatprep.subr.bf16.mxu0 0
      %2326 = vmatpush1.bf16.msra.mxu0 0
      %2327 = vmatprep.mubr.bf16.mxu0 0
      %2328 = vmatmul.mubr.bf16.gmra.mrb[0].mxu0 %v2220
      %v2329 = vpop.f32.mrb[0].mxu0
      %v2330 = vadd.f32 %v2245, %v2329
      %v2331 = vpop.f32.mrb[0].mxu0
      %v2332 = vpop.f32.mrb[0].mxu0
      %v2333 = vadd.f32 %v2245, %v2332
      %v2334 = vpop.f32.mrb[0].mxu0
      %2335 = vmatprep.mubr.bf16.mxu0 0
      %2336 = vmatmul.mubr.bf16.gmra.mrb[0].mxu0 %v2221
      %v2337 = vpop.f32.mrb[0].mxu0
      %v2338 = vadd.f32 %v2245, %v2337
      %v2339 = vpop.f32.mrb[0].mxu0
      %v2340 = vpop.f32.mrb[0].mxu0
      %v2341 = vpop.f32.mrb[0].mxu0
      %2342 = vdwg.mxu0
      %v2343 = vadd.f32 %v2121, %v2330
      %v2344 = vadd.f32 %v2122, %v2333
      %v2345 = vadd.f32 %v2123, %v2338
      %s2346 = scalar_lea.vmem %s13, 1
      %v2347 = vld [vmem:[%s2346] sm:$0x1]
      %s2348 = scalar_lea.vmem %s14, 1
      %v2349 = vld [vmem:[%s2348] sm:$0x1]
      %v2350 = vsel %vm553, %v2343, 0.0
      %2351 = vadd.xlane.f32.xlu0 %v2350
      %v2352 = vpop.xlane.xlu0 %2351
      %v2353 = vsel %vm553, %v2344, 0.0
      %2354 = vadd.xlane.f32.xlu0 %v2353
      %v2355 = vpop.xlane.xlu0 %2354
      %v2356 = vsel %vm553, %v2345, 0.0
      %2357 = vadd.xlane.f32.xlu0 %v2356
      %v2358 = vpop.xlane.xlu0 %2357
      %v2359 = vmul.f32 %v2352, %v563
      %v2360 = vmul.f32 %v2355, %v563
      %v2361 = vmul.f32 %v2358, %v563
      %v2362 = vmul.f32 %v2343, %v2343
      %v2363 = vmul.f32 %v2344, %v2344
      %v2364 = vmul.f32 %v2345, %v2345
      %v2365 = vsel %vm553, %v2362, 0.0
      %2366 = vadd.xlane.f32.xlu0 %v2365
      %v2367 = vpop.xlane.xlu0 %2366
      %v2368 = vsel %vm553, %v2363, 0.0
      %2369 = vadd.xlane.f32.xlu0 %v2368
      %v2370 = vpop.xlane.xlu0 %2369
      %v2371 = vsel %vm553, %v2364, 0.0
      %2372 = vadd.xlane.f32.xlu0 %v2371
      %v2373 = vpop.xlane.xlu0 %2372
      %v2374 = vmul.f32 %v2367, %v563
      %v2375 = vmul.f32 %v2370, %v563
      %v2376 = vmul.f32 %v2373, %v563
      %v2377 = vmul.f32 %v2359, %v2359
      %v2378 = vmul.f32 %v2360, %v2360
      %v2379 = vmul.f32 %v2361, %v2361
      %v2380 = vsub.f32 %v2374, %v2377
      %v2381 = vsub.f32 %v2375, %v2378
      %v2382 = vsub.f32 %v2376, %v2379
      %v2383 = vmax.f32 %v2380, 0.0
      %v2384 = vmax.f32 %v2381, 0.0
      %v2385 = vmax.f32 %v2382, 0.0
      %v2386 = vsub.f32 %v2343, %v2359
      %v2387 = vsub.f32 %v2344, %v2360
      %v2388 = vsub.f32 %v2345, %v2361
      %v2389 = vadd.f32 %v2383, 1e-05
      %v2390 = vadd.f32 %v2384, 1e-05
      %v2391 = vadd.f32 %v2385, 1e-05
      %v2392 = vrsqrt.pop %v2389
      %v2393 = vrsqrt.pop %v2390
      %v2394 = vrsqrt.pop %v2391
      %v2395 = vmul.f32 %v2386, %v2392
      %v2396 = vmul.f32 %v2387, %v2393
      %v2397 = vmul.f32 %v2388, %v2394
      %v2399 = vlaneseq
      %v2400 = vshrl.u32 %v2399, 7
      %v2401 = vsub.s32 0, %v2400
      %v2402 = vrot.slane %v2347, %v2401
      %v2404 = vmul.f32 %v2395, %v2402
      %v2405 = vmul.f32 %v2396, %v2402
      %v2406 = vmul.f32 %v2397, %v2402
      %v2408 = vlaneseq
      %v2409 = vshrl.u32 %v2408, 7
      %v2410 = vsub.s32 0, %v2409
      %v2411 = vrot.slane %v2349, %v2410
      %v2413 = vadd.f32 %v2404, %v2411
      %v2414 = vadd.f32 %v2405, %v2411
      %v2415 = vadd.f32 %v2406, %v2411
      %v2416 = vmul.u32 %v622, 3
      %v2417 = vadd.s32 %v2416, 1
      %vm2418 = vcmp.eq.s32.totalorder %v626, %v2417
      %v2419 = vsel %vm2418, 1, 0
      %v2420 = vcvt.s32.f32 %v2419
      %v2421 = vpack.c.bf16 %v2420, %v2420
      %v2422 = vpack.c.bf16 %v2414, %v2413
      %v2423 = vpack.c.bf16 %v2415, %v2415
      %v2425 = vsel %vm873, %v2421, 0
      %v2428 = vsel %vm955, %v2423, 0
      %2430 = vmatprep.subr.bf16.mxu0 0
      %2431 = vmatpush1.bf16.msra.mxu0 %v2422
      %2432 = vmatprep.subr.bf16.mxu0 0
      %2433 = vmatpush1.bf16.msra.mxu0 %v2428
      %2434 = vmatprep.subr.bf16.mxu0 0
      %2435 = vmatpush1.bf16.msra.mxu0 0
      %2436 = vmatprep.subr.bf16.mxu0 0
      %2437 = vmatpush1.bf16.msra.mxu0 0
      %2438 = vmatprep.subr.bf16.mxu0 0
      %2439 = vmatpush1.bf16.msra.mxu0 0
      %2440 = vmatprep.subr.bf16.mxu0 0
      %2441 = vmatpush1.bf16.msra.mxu0 0
      %2442 = vmatprep.subr.bf16.mxu0 0
      %2443 = vmatpush1.bf16.msra.mxu0 0
      %2444 = vmatprep.subr.bf16.mxu0 0
      %2445 = vmatpush1.bf16.msra.mxu0 0
      %2446 = vmatprep.subr.bf16.mxu0 0
      %2447 = vmatpush1.bf16.msra.mxu0 0
      %2448 = vmatprep.subr.bf16.mxu0 0
      %2449 = vmatpush1.bf16.msra.mxu0 0
      %2450 = vmatprep.subr.bf16.mxu0 0
      %2451 = vmatpush1.bf16.msra.mxu0 0
      %2452 = vmatprep.subr.bf16.mxu0 0
      %2453 = vmatpush1.bf16.msra.mxu0 0
      %2454 = vmatprep.subr.bf16.mxu0 0
      %2455 = vmatpush1.bf16.msra.mxu0 0
      %2456 = vmatprep.subr.bf16.mxu0 0
      %2457 = vmatpush1.bf16.msra.mxu0 0
      %2458 = vmatprep.subr.bf16.mxu0 0
      %2459 = vmatpush1.bf16.msra.mxu0 0
      %2460 = vmatprep.subr.bf16.mxu0 0
      %2461 = vmatpush1.bf16.msra.mxu0 0
      %2462 = vmatprep.mubr.bf16.mxu0 0
      %2463 = vmatmul.mubr.bf16.gmra.mrb[0].mxu0 %v2425
      %v2464 = vpop.f32.mrb[0].mxu0
      %v2465 = vadd.f32 0.0, %v2464
      %v2466 = vpop.f32.mrb[0].mxu0
      %v2467 = vpop.f32.mrb[0].mxu0
      %v2468 = vpop.f32.mrb[0].mxu0
      %2469 = vdwg.mxu0
      %v2470 = vpack.c.bf16 %v2465, %v2465
      %v2471 = vld [vmem:[%s15] sm:$0xf]
      %v2472 = vld [vmem:[%s15 + $0x4] sm:$0xf]
      %v2473 = vld [vmem:[%s15 + $0x8] sm:$0xf]
      %v2474 = vld [vmem:[%s15 + $0xc] sm:$0xf]
      %v2475 = vld [vmem:[%s16] sm:$0x1]
      %v2477 = vlaneseq
      %v2478 = vshrl.u32 %v2477, 7
      %v2479 = vsub.s32 0, %v2478
      %v2480 = vrot.slane %v2475, %v2479
      %v2486 = vunpack.c.l.b16 %v2471
      %v2487 = vunpack.c.l.b16 %v2472
      %v2488 = vunpack.c.l.b16 %v2473
      %v2489 = vunpack.c.l.b16 %v2474
      %v2490 = vpack.c.b16 %v2487, %v2486
      %v2491 = vpack.c.b16 %v2489, %v2488
      %v2495 = vsel %vm553, %v2470, 0
      %2497 = vmatprep.subr.bf16.mxu0 0
      %2498 = vmatpush1.bf16.msra.mxu0 %v2490
      %2499 = vmatprep.subr.bf16.mxu0 0
      %2500 = vmatpush1.bf16.msra.mxu0 %v2491
      %2501 = vmatprep.subr.bf16.mxu0 0
      %2502 = vmatpush1.bf16.msra.mxu0 0
      %2503 = vmatprep.subr.bf16.mxu0 0
      %2504 = vmatpush1.bf16.msra.mxu0 0
      %2505 = vmatprep.subr.bf16.mxu0 0
      %2506 = vmatpush1.bf16.msra.mxu0 0
      %2507 = vmatprep.subr.bf16.mxu0 0
      %2508 = vmatpush1.bf16.msra.mxu0 0
      %2509 = vmatprep.subr.bf16.mxu0 0
      %2510 = vmatpush1.bf16.msra.mxu0 0
      %2511 = vmatprep.subr.bf16.mxu0 0
      %2512 = vmatpush1.bf16.msra.mxu0 0
      %2513 = vmatprep.subr.bf16.mxu0 0
      %2514 = vmatpush1.bf16.msra.mxu0 0
      %2515 = vmatprep.subr.bf16.mxu0 0
      %2516 = vmatpush1.bf16.msra.mxu0 0
      %2517 = vmatprep.subr.bf16.mxu0 0
      %2518 = vmatpush1.bf16.msra.mxu0 0
      %2519 = vmatprep.subr.bf16.mxu0 0
      %2520 = vmatpush1.bf16.msra.mxu0 0
      %2521 = vmatprep.subr.bf16.mxu0 0
      %2522 = vmatpush1.bf16.msra.mxu0 0
      %2523 = vmatprep.subr.bf16.mxu0 0
      %2524 = vmatpush1.bf16.msra.mxu0 0
      %2525 = vmatprep.subr.bf16.mxu0 0
      %2526 = vmatpush1.bf16.msra.mxu0 0
      %2527 = vmatprep.subr.bf16.mxu0 0
      %2528 = vmatpush1.bf16.msra.mxu0 0
      %2529 = vmatprep.mubr.bf16.mxu0 0
      %2530 = vmatmul.mubr.bf16.gmra.mrb[0].mxu0 %v2495
      %v2531 = vpop.f32.mrb[0].mxu0
      %v2532 = vadd.f32 %v2480, %v2531
      %v2533 = vpop.f32.mrb[0].mxu0
      %v2534 = vpop.f32.mrb[0].mxu0
      %v2535 = vpop.f32.mrb[0].mxu0
      %2536 = vdwg.mxu0
      %2537 = vst [vmem:[%s546] sm:$0xff] %v2532
      %p2538 = scmp.lt.s32.totalorder %s28, 1
      %s2539 = scalar_select %p2538, %s28, 1
      %s2540 = smul.addr %s2539, 8
      %s2541 = scalar_lea.vmem %s17, %s2540
      // Predicated region
      $region89: #{_lambda_.1} parent=87 // pred_check
        %p2542 = pneg %p408
      $region90: #{_lambda_.1} parent=87 // pred_check_branch
        %2544 = sbr.rel (%p2542) target = $region92
      $region91: #{_lambda_.1} parent=87 // pred_region
        _
      $region92: #{_lambda_.1} parent=87 // pred_fallthru
        _
    $region88: #{_lambda_.1} parent=5 // pred_fallthru
      _
    %p2545 = scmp.le.s32.totalorder 2, %s23
    // Predicated region
    $region93: #{_lambda_.1} parent=5 // pred_check
      %p2546 = pneg %p2545
    $region94: #{_lambda_.1} parent=5 // pred_check_branch
      %2548 = sbr.rel (%p2546) target = $region96
    $region95: #{_lambda_.1} parent=5 // pred_region
      %s2549 = ssub.s32 %s23, 2
      // Predicated region
      $region97: #{_lambda_.1} parent=95 // pred_check
        %p2550 = pneg %p414
      $region98: #{_lambda_.1} parent=95 // pred_check_branch
        %2552 = sbr.rel (%p2550) target = $region100
      $region99: #{_lambda_.1} parent=95 // pred_region
        %p2553 = scmp.lt.s32.totalorder %s29, 1
        %s2554 = scalar_select %p2553, %s29, 1
        %s2555 = smul.addr %s2554, 8
        %s2556 = scalar_lea.vmem %s17, %s2555
      $region100: #{_lambda_.1} parent=95 // pred_fallthru
        _
    $region96: #{_lambda_.1} parent=5 // pred_fallthru
      _
  $region6: #{_lambda_.1} parent=0 // loop_footer
    %s27 = sadd.s32 1, %s23
  $region7: #{_lambda_.1} parent=0 // loop_footer_branch
    %22 = sbr.rel target = $region3
  $region8: #{_lambda_.1} parent=0 // loop_exit
    _

</llo_original>
